<compile_context>
chip_gen: v6e
topology: v6e:2x2x1
jax: 0.10.0
libtpu: 0.0.40
codegen_flags: <defaults>
</compile_context>

<pallas_src>
import math

import jax
import jax.numpy as jnp
from jax.experimental import pallas as pl
from jax.experimental.pallas import tpu as pltpu


# ----------------------------------------------------------------------------
# Kernel
# ----------------------------------------------------------------------------
def _pooler_kernel(x_ref, q_ref, wkv_ref, bkv_ref, wo_ref, bo_ref, out_ref):
    eps = 1e-5
    B, L, C = x_ref.shape              # (b_tile, seq_len, context_dim)
    H, NQ, HD = q_ref.shape            # (n_head, n_queries, head_dim)
    D = H * HD                         # d_model (un-padded)
    D_out = out_ref.shape[-1]          # d_model padded to a 128 multiple
    cdt = wkv_ref.dtype                # bf16 compute dtype for MXU operands

    # ---- ln_k over the channel dim (affine folded into wkv/bkv) ----
    x = x_ref[...].astype(jnp.float32)
    mu = jnp.mean(x, axis=-1, keepdims=True)
    xc = x - mu
    var = jnp.mean(xc * xc, axis=-1, keepdims=True)
    xhat = xc * jax.lax.rsqrt(var + eps)                       # (B, L, C) f32

    # ---- fused K|V projection: one (B*L, C) x (C, 2D) bf16 MXU matmul ----
    xh = xhat.reshape(B * L, C).astype(cdt)
    kv = jnp.dot(xh, wkv_ref[...], preferred_element_type=jnp.float32)
    kv = (kv + bkv_ref[...]).astype(cdt)                       # (B*L, 2D) bf16
    kv = kv.reshape(B, L, 2 * D)                               # keep K/V 3-D

    q = q_ref[...]                                             # (H, NQ, HD) bf16, pre-scaled

    head_outs = []
    # Short static loop over the batch tile only (b_tile is small, default 2);
    # every head is handled inside one batched 3-D dot — no per-head loop.
    for b in range(B):
        kvb = kv[b]                                            # (L, 2D), leading-dim index
        kb = jnp.transpose(kvb[:, :D].reshape(L, H, HD), (1, 0, 2))   # (H, L, HD)
        vb = jnp.transpose(kvb[:, D:].reshape(L, H, HD), (1, 0, 2))   # (H, L, HD)

        s = jnp.einsum("hqd,hkd->hqk", q, kb,
                       preferred_element_type=jnp.float32)     # (H, NQ, L)
        s = s - jnp.max(s, axis=-1, keepdims=True)
        p = jnp.exp(s)
        # EUP approx reciprocal for the softmax denominator (frees VALU slots).
        p = p * pl.reciprocal(jnp.sum(p, axis=-1, keepdims=True), approx=True)

        o = jnp.einsum("hqk,hkd->hqd", p.astype(cdt), vb,
                       preferred_element_type=jnp.float32)     # (H, NQ, HD)
        # Concatenate heads -> (NQ, D); cast to bf16 before the relayout.
        head_outs.append(jnp.transpose(o.astype(cdt), (1, 0, 2)).reshape(NQ, D))

    # ---- single out_proj matmul for the whole tile: (B*NQ, D) @ (D, D_out) ----
    o_all = jnp.concatenate(head_outs, axis=0)                 # (B*NQ, D) bf16
    y = jnp.dot(o_all, wo_ref[...], preferred_element_type=jnp.float32)
    y = y + bo_ref[...]                                        # (B*NQ, D_out) f32
    out_ref[...] = y.reshape(B, NQ, D_out).astype(out_ref.dtype)


# ----------------------------------------------------------------------------
# One-time weight preprocessing (run once per weight update, NOT per forward)
# ----------------------------------------------------------------------------
def prepare_pooler_params(params, n_head, *, compute_dtype=jnp.bfloat16):
    f32 = jnp.float32
    query = params["query"].astype(f32)
    n_queries, d_model = query.shape
    assert d_model % n_head == 0
    hd = d_model // n_head
    scale = 1.0 / math.sqrt(hd)
    d_out_pad = ((d_model + 127) // 128) * 128      # lane-dense output stores
    C = params["wk"].shape[1]

    def ln(v, w, b, eps=1e-5):
        mu = v.mean(-1, keepdims=True)
        var = ((v - mu) ** 2).mean(-1, keepdims=True)
        return (v - mu) * jax.lax.rsqrt(var + eps) * w + b

    # Batch-independent query path: ln_q + Wq + bias + 1/sqrt(hd), done once.
    qn = ln(query, params["lnq_w"].astype(f32), params["lnq_b"].astype(f32))
    qp = (qn @ params["wq"].T.astype(f32) + params["bq"].astype(f32)) * scale
    q_heads = jnp.transpose(qp.reshape(n_queries, n_head, hd),
                            (1, 0, 2)).astype(compute_dtype)   # (H, NQ, hd)

    # Fold ln_k's affine into the K/V projections; fuse into one [K|V] weight.
    g = params["lnk_w"].astype(f32)[:, None]                   # (C, 1)
    beta = params["lnk_b"].astype(f32)                         # (C,)

    def fold(w, b):                                            # w: (d, C) torch layout
        wt = g * w.T.astype(f32)                               # (C, d)
        be = beta @ w.T.astype(f32) + b.astype(f32)            # (d,)
        return wt, be

    wk_t, bk_e = fold(params["wk"], params["bk"])
    wv_t, bv_e = fold(params["wv"], params["bv"])
    wkv = jnp.concatenate([wk_t, wv_t], axis=1).astype(compute_dtype)   # (C, 2d)
    bkv = jnp.concatenate([bk_e, bv_e]).reshape(1, 2 * d_model)         # f32

    # out_proj: columns zero-padded to a 128 multiple (exact).
    wo = jnp.pad(params["wo"].T.astype(f32),
                 ((0, 0), (0, d_out_pad - d_model))).astype(compute_dtype)
    bo = jnp.pad(params["bo"].astype(f32),
                 (0, d_out_pad - d_model)).reshape(1, d_out_pad)

    return {
        "q_heads": q_heads, "wkv": wkv, "bkv": bkv, "wo": wo, "bo": bo,
        "n_head": n_head, "head_dim": hd, "d_model": d_model,
        "d_out_pad": d_out_pad, "context_dim": C, "n_queries": n_queries,
    }


# ----------------------------------------------------------------------------
# VMEM limit: derived from the footprint, never the full physical VMEM
# ----------------------------------------------------------------------------
def _pick_vmem_limit(b_tile, L, C, H, HD, NQ, d_out, x_itemsize):
    D = H * HD
    cb = 2                                        # bf16 MXU operand bytes
    x_tile = b_tile * L * C * x_itemsize          # double-buffered input tile
    out_tile = b_tile * NQ * d_out * x_itemsize
    consts = ((C * 2 * D + H * NQ * HD + D * d_out) * cb + (2 * D + d_out) * 4)
    interm = (2 * b_tile * L * C * 4              # LayerNorm temporaries (f32)
              + b_tile * L * 2 * D * (4 + cb)     # kv f32 accumulator + bf16 copy
              + 2 * H * NQ * (L + HD) * 4         # scores / probs / per-head out
              + b_tile * NQ * (D * cb + d_out * 4))
    need = 2 * x_tile + 2 * out_tile + 2 * consts + interm
    try:
        info = pltpu.get_tpu_info()
        phys = int(getattr(info, "vmem_capacity_bytes", 0)) or (64 << 20)
    except Exception:
        phys = 64 << 20                           # assume smallest (v7x per-TC)
    return int(min(int(0.75 * phys), max(32 << 20, 2 * need)))


# ----------------------------------------------------------------------------
# Forward wrapper
# ----------------------------------------------------------------------------
def attentional_pooler(x, prep, *, b_tile=None):
    """x: (N, L, context_dim) -> (N, n_queries, d_model)."""
    N, L, C = x.shape
    assert C == prep["context_dim"]
    H, HD = prep["n_head"], prep["head_dim"]
    NQ, D = prep["n_queries"], prep["d_model"]
    D_out = prep["d_out_pad"]

    # Grid >= 4 steps when possible (>= 2 per v7x TensorCore keeps each core's
    # pipeline alive).  On v6e/v5e (128 MiB VMEM) pass a larger b_tile.
    if b_tile is None:
        b_tile = max(1, min(8, N // 4)) if N >= 4 else 1
    b_tile = max(1, min(b_tile, N))

    # Padded batch tail instead of degrading b_tile for awkward N.
    n_pad = (-N) % b_tile
    x_p = jnp.pad(x, ((0, n_pad), (0, 0), (0, 0))) if n_pad else x
    N_p = N + n_pad
    grid = (N_p // b_tile,)

    flops = (2 * N_p * L * C * 2 * D             # K|V projection (dominant)
             + 4 * N_p * H * NQ * L * HD         # scores + PV
             + 2 * N_p * NQ * D * D_out)         # out_proj
    cost = pl.CostEstimate(
        flops=int(flops),
        transcendentals=int(N_p * H * NQ * (L + 1)),
        bytes_accessed=int(
            x_p.size * x_p.dtype.itemsize
            + N_p * NQ * D_out * x.dtype.itemsize
            + sum(int(prep[k].size) * prep[k].dtype.itemsize
                  for k in ("q_heads", "wkv", "bkv", "wo", "bo"))))

    vmem_limit = _pick_vmem_limit(b_tile, L, C, H, HD, NQ, D_out,
                                  x.dtype.itemsize)
    operands = (x_p, prep["q_heads"], prep["wkv"], prep["bkv"],
                prep["wo"], prep["bo"])

    def build(single_buffer_consts):
        def const_spec(arr):
            nd = arr.ndim
            idx = lambda i, _nd=nd: (0,) * _nd
            if single_buffer_consts:
                # Block index never changes -> no need to double-buffer.
                return pl.BlockSpec(arr.shape, idx, pipeline_mode=pl.Buffered(1))
            return pl.BlockSpec(arr.shape, idx)

        grid_spec = pltpu.PrefetchScalarGridSpec(
            num_scalar_prefetch=0,
            grid=grid,
            in_specs=[pl.BlockSpec((b_tile, L, C), lambda i: (i, 0, 0)),
                      const_spec(prep["q_heads"]), const_spec(prep["wkv"]),
                      const_spec(prep["bkv"]), const_spec(prep["wo"]),
                      const_spec(prep["bo"])],
            out_specs=pl.BlockSpec((b_tile, NQ, D_out), lambda i: (i, 0, 0)))

        return pl.pallas_call(
            _pooler_kernel,
            out_shape=jax.ShapeDtypeStruct((N_p, NQ, D_out), x.dtype),
            grid_spec=grid_spec,
            cost_estimate=cost,
            compiler_params=pltpu.CompilerParams(
                dimension_semantics=("parallel",),
                vmem_limit_bytes=vmem_limit))

    try:
        out = jax.block_until_ready(build(True)(*operands))
    except Exception:
        # Fallback if this JAX build rejects Buffered(1) on constant operands.
        out = build(False)(*operands)

    # Strip the batch tail and the lane padding added for dense stores.
    return out[:N, :, :D]


# ----------------------------------------------------------------------------
# Pure-JAX reference and parameter init (for the self-test)
# ----------------------------------------------------------------------------
def reference(x, p, n_head):
    """Pure-JAX reference matching nn.MultiheadAttention(kdim=vdim=context_dim)."""
    def ln(v, w, b):
        mu = v.mean(-1, keepdims=True)
        var = ((v - mu) ** 2).mean(-1, keepdims=True)
        return (v - mu) / jnp.sqrt(var + 1e-5) * w + b

    N, L, C = x.shape
    nq, d = p["query"].shape
    hd = d // n_head
    xk = ln(x, p["lnk_w"], p["lnk_b"])
    qn = ln(p["query"], p["lnq_w"], p["lnq_b"])
    Q = qn @ p["wq"].T + p["bq"]                 # (nq, d)
    K = xk @ p["wk"].T + p["bk"]                 # (N, L, d)
    V = xk @ p["wv"].T + p["bv"]                 # (N, L, d)
    Qh = Q.reshape(nq, n_head, hd)
    Kh = K.reshape(N, L, n_head, hd)
    Vh = V.reshape(N, L, n_head, hd)
    s = jnp.einsum("qhd,nlhd->nhql", Qh, Kh) / math.sqrt(hd)
    a = jax.nn.softmax(s, axis=-1)
    o = jnp.einsum("nhql,nlhd->nqhd", a, Vh).reshape(N, nq, d)
    return o @ p["wo"].T + p["bo"]


def init_params(key, d_model, context_dim, n_queries):
    ks = jax.random.split(key, 12)
    f32 = jnp.float32
    return {
        "query": jax.random.normal(ks[0], (n_queries, d_model), f32),
        "lnq_w": 1.0 + 0.1 * jax.random.normal(ks[1], (d_model,), f32),
        "lnq_b": 0.1 * jax.random.normal(ks[2], (d_model,), f32),
        "lnk_w": 1.0 + 0.1 * jax.random.normal(ks[3], (context_dim,), f32),
        "lnk_b": 0.1 * jax.random.normal(ks[4], (context_dim,), f32),
        "wq": 0.05 * jax.random.normal(ks[5], (d_model, d_model), f32),
        "wk": 0.05 * jax.random.normal(ks[6], (d_model, context_dim), f32),
        "wv": 0.05 * jax.random.normal(ks[7], (d_model, context_dim), f32),
        "bq": 0.05 * jax.random.normal(ks[8], (d_model,), f32),
        "bk": 0.05 * jax.random.normal(ks[9], (d_model,), f32),
        "bv": 0.05 * jax.random.normal(ks[10], (d_model,), f32),
        "wo": 0.05 * jax.random.normal(ks[11], (d_model, d_model), f32),
        "bo": jnp.zeros((d_model,), f32),
    }


if __name__ == "__main__":
    # Small shapes consistent with the module's forward pass.
    N, L = 8, 8               # batch, key/value sequence length
    context_dim = 32
    d_model = 32
    n_head = 4
    n_queries = 8

    key = jax.random.PRNGKey(0)
    kx, kp = jax.random.split(key)
    x = jax.random.normal(kx, (N, L, context_dim), jnp.float32)
    params = init_params(kp, d_model, context_dim, n_queries)

    prep = prepare_pooler_params(params, n_head)   # once per weight update
    out = attentional_pooler(x, prep)              # b_tile=2 -> grid=(4,)
    out = jax.block_until_ready(out)

    ref = reference(x, params, n_head)
    assert out.shape == (N, n_queries, d_model), out.shape
    err = float(jnp.max(jnp.abs(out - ref)))
    # bf16 MXU operands + approx softmax reciprocal -> relaxed tolerance.
    assert jnp.allclose(out, ref, atol=2e-2, rtol=2e-2), err

    print("KERNEL_OK")
</pallas_src>

<mosaic_0001>
module attributes {stable_mosaic.version = 11 : i64} {
  func.func @_pooler_kernel(%arg0: i32, %arg1: memref<2x8x32xf32, #tpu.memory_space<vmem>>, %arg2: memref<4x8x8xbf16, #tpu.memory_space<vmem>>, %arg3: memref<32x64xbf16, #tpu.memory_space<vmem>>, %arg4: memref<1x64xf32, #tpu.memory_space<vmem>>, %arg5: memref<32x128xbf16, #tpu.memory_space<vmem>>, %arg6: memref<1x128xf32, #tpu.memory_space<vmem>>, %arg7: memref<2x8x128xf32, #tpu.memory_space<vmem>>) attributes {dimension_semantics = [#tpu.dimension_semantics<parallel>], iteration_bounds = array<i64: 4>, scalar_prefetch = 0 : i64, scratch_operands = 0 : i64, tpu.core_type = #tpu.core_type<tc>, window_params = [{transform_indices = @transform_0, window_bounds = array<i64: 2, 8, 32>}, {pipeline_mode = #tpu.pipeline_mode<synchronous>, transform_indices = @transform_1, window_bounds = array<i64: 4, 8, 8>}, {pipeline_mode = #tpu.pipeline_mode<synchronous>, transform_indices = @transform_2, window_bounds = array<i64: 32, 64>}, {pipeline_mode = #tpu.pipeline_mode<synchronous>, transform_indices = @transform_3, window_bounds = array<i64: 1, 64>}, {pipeline_mode = #tpu.pipeline_mode<synchronous>, transform_indices = @transform_4, window_bounds = array<i64: 32, 128>}, {pipeline_mode = #tpu.pipeline_mode<synchronous>, transform_indices = @transform_5, window_bounds = array<i64: 1, 128>}, {transform_indices = @transform_6, window_bounds = array<i64: 2, 8, 128>}]} {
    %c0 = arith.constant 0 : index
    %c0_0 = arith.constant 0 : index
    %c0_1 = arith.constant 0 : index
    %0 = vector.load %arg1[%c0, %c0_0, %c0_1] : memref<2x8x32xf32, #tpu.memory_space<vmem>>, vector<2x8x32xf32>
    %cst = arith.constant dense<0.000000e+00> : vector<2x8xf32>
    %1 = vector.multi_reduction <add>, %0, %cst [2] : vector<2x8x32xf32> to vector<2x8xf32>
    %2 = vector.shape_cast %1 : vector<2x8xf32> to vector<2x8x1xf32>
    %cst_2 = arith.constant 3.200000e+01 : f32
    %3 = vector.broadcast %cst_2 : f32 to vector<2x8x1xf32>
    %4 = arith.divf %2, %3 : vector<2x8x1xf32>
    %5 = vector.broadcast %4 : vector<2x8x1xf32> to vector<2x8x32xf32>
    %6 = arith.subf %0, %5 : vector<2x8x32xf32>
    %7 = arith.mulf %6, %6 : vector<2x8x32xf32>
    %cst_3 = arith.constant dense<0.000000e+00> : vector<2x8xf32>
    %8 = vector.multi_reduction <add>, %7, %cst_3 [2] : vector<2x8x32xf32> to vector<2x8xf32>
    %9 = vector.shape_cast %8 : vector<2x8xf32> to vector<2x8x1xf32>
    %cst_4 = arith.constant 3.200000e+01 : f32
    %10 = vector.broadcast %cst_4 : f32 to vector<2x8x1xf32>
    %11 = arith.divf %9, %10 : vector<2x8x1xf32>
    %cst_5 = arith.constant 9.99999974E-6 : f32
    %12 = vector.broadcast %cst_5 : f32 to vector<2x8x1xf32>
    %13 = arith.addf %11, %12 : vector<2x8x1xf32>
    %14 = math.rsqrt %13 : vector<2x8x1xf32>
    %15 = vector.broadcast %14 : vector<2x8x1xf32> to vector<2x8x32xf32>
    %16 = arith.mulf %6, %15 : vector<2x8x32xf32>
    %17 = vector.shape_cast %16 : vector<2x8x32xf32> to vector<16x32xf32>
    %18 = arith.truncf %17 : vector<16x32xf32> to vector<16x32xbf16>
    %c0_6 = arith.constant 0 : index
    %c0_7 = arith.constant 0 : index
    %19 = vector.load %arg3[%c0_6, %c0_7] : memref<32x64xbf16, #tpu.memory_space<vmem>>, vector<32x64xbf16>
    %cst_8 = arith.constant dense<0.000000e+00> : vector<16x64xf32>
    %20 = tpu.matmul %18, %19, %cst_8 {dimension_numbers = #tpu.dot_dimension_numbers<[1], [0], [0], [1], [0, 0, 1, 1], [], []>} : vector<16x32xbf16>, vector<32x64xbf16>, vector<16x64xf32> -> vector<16x64xf32>
    %c0_9 = arith.constant 0 : index
    %c0_10 = arith.constant 0 : index
    %21 = vector.load %arg4[%c0_9, %c0_10] : memref<1x64xf32, #tpu.memory_space<vmem>>, vector<1x64xf32>
    %22 = vector.broadcast %21 : vector<1x64xf32> to vector<16x64xf32>
    %23 = arith.addf %20, %22 : vector<16x64xf32>
    %24 = arith.truncf %23 : vector<16x64xf32> to vector<16x64xbf16>
    %25 = vector.shape_cast %24 : vector<16x64xbf16> to vector<2x8x64xbf16>
    %c0_11 = arith.constant 0 : index
    %c0_12 = arith.constant 0 : index
    %c0_13 = arith.constant 0 : index
    %26 = vector.load %arg2[%c0_11, %c0_12, %c0_13] : memref<4x8x8xbf16, #tpu.memory_space<vmem>>, vector<4x8x8xbf16>
    %27 = vector.extract_strided_slice %25 {offsets = [0, 0, 0], sizes = [1, 8, 64], strides = [1, 1, 1]} : vector<2x8x64xbf16> to vector<1x8x64xbf16>
    %28 = vector.shape_cast %27 : vector<1x8x64xbf16> to vector<8x64xbf16>
    %29 = vector.extract_strided_slice %28 {offsets = [0, 0], sizes = [8, 32], strides = [1, 1]} : vector<8x64xbf16> to vector<8x32xbf16>
    %30 = vector.shape_cast %29 : vector<8x32xbf16> to vector<8x4x8xbf16>
    %31 = tpu.transpose %30, [1, 0, 2] : vector<8x4x8xbf16> -> vector<4x8x8xbf16>
    %32 = vector.extract_strided_slice %28 {offsets = [0, 32], sizes = [8, 32], strides = [1, 1]} : vector<8x64xbf16> to vector<8x32xbf16>
    %33 = vector.shape_cast %32 : vector<8x32xbf16> to vector<8x4x8xbf16>
    %34 = tpu.transpose %33, [1, 0, 2] : vector<8x4x8xbf16> -> vector<4x8x8xbf16>
    "tpu.trace_start"() <{level = 10 : i32, message = "hqd,hkd->hqk"}> : () -> ()
    %cst_14 = arith.constant dense<0.000000e+00> : vector<4x8x8xf32>
    %35 = tpu.matmul %26, %31, %cst_14 {dimension_numbers = #tpu.dot_dimension_numbers<[2], [2], [1], [1], [0, 0, 0, 1, 1, 1], [0], [0]>} : vector<4x8x8xbf16>, vector<4x8x8xbf16>, vector<4x8x8xf32> -> vector<4x8x8xf32>
    "tpu.trace_stop"() : () -> ()
    %cst_15 = arith.constant dense<0xFF800000> : vector<4x8xf32>
    %36 = vector.multi_reduction <maximumf>, %35, %cst_15 [2] : vector<4x8x8xf32> to vector<4x8xf32>
    %37 = vector.shape_cast %36 : vector<4x8xf32> to vector<4x8x1xf32>
    %38 = vector.broadcast %37 : vector<4x8x1xf32> to vector<4x8x8xf32>
    %39 = arith.subf %35, %38 : vector<4x8x8xf32>
    %40 = math.exp %39 : vector<4x8x8xf32>
    %cst_16 = arith.constant dense<0.000000e+00> : vector<4x8xf32>
    %41 = vector.multi_reduction <add>, %40, %cst_16 [2] : vector<4x8x8xf32> to vector<4x8xf32>
    %42 = vector.shape_cast %41 : vector<4x8xf32> to vector<4x8x1xf32>
    %43 = tpu.reciprocal %42 {approx = true} : vector<4x8x1xf32> -> vector<4x8x1xf32>
    %44 = vector.broadcast %43 : vector<4x8x1xf32> to vector<4x8x8xf32>
    %45 = arith.mulf %40, %44 : vector<4x8x8xf32>
    %46 = arith.truncf %45 : vector<4x8x8xf32> to vector<4x8x8xbf16>
    "tpu.trace_start"() <{level = 10 : i32, message = "hqk,hkd->hqd"}> : () -> ()
    %cst_17 = arith.constant dense<0.000000e+00> : vector<4x8x8xf32>
    %47 = tpu.matmul %46, %34, %cst_17 {dimension_numbers = #tpu.dot_dimension_numbers<[2], [1], [1], [2], [0, 0, 0, 1, 1, 2], [0], [0]>} : vector<4x8x8xbf16>, vector<4x8x8xbf16>, vector<4x8x8xf32> -> vector<4x8x8xf32>
    "tpu.trace_stop"() : () -> ()
    %48 = arith.truncf %47 : vector<4x8x8xf32> to vector<4x8x8xbf16>
    %49 = tpu.transpose %48, [1, 0, 2] : vector<4x8x8xbf16> -> vector<8x4x8xbf16>
    %50 = vector.shape_cast %49 : vector<8x4x8xbf16> to vector<8x32xbf16>
    %51 = vector.extract_strided_slice %25 {offsets = [1, 0, 0], sizes = [1, 8, 64], strides = [1, 1, 1]} : vector<2x8x64xbf16> to vector<1x8x64xbf16>
    %52 = vector.shape_cast %51 : vector<1x8x64xbf16> to vector<8x64xbf16>
    %53 = vector.extract_strided_slice %52 {offsets = [0, 0], sizes = [8, 32], strides = [1, 1]} : vector<8x64xbf16> to vector<8x32xbf16>
    %54 = vector.shape_cast %53 : vector<8x32xbf16> to vector<8x4x8xbf16>
    %55 = tpu.transpose %54, [1, 0, 2] : vector<8x4x8xbf16> -> vector<4x8x8xbf16>
    %56 = vector.extract_strided_slice %52 {offsets = [0, 32], sizes = [8, 32], strides = [1, 1]} : vector<8x64xbf16> to vector<8x32xbf16>
    %57 = vector.shape_cast %56 : vector<8x32xbf16> to vector<8x4x8xbf16>
    %58 = tpu.transpose %57, [1, 0, 2] : vector<8x4x8xbf16> -> vector<4x8x8xbf16>
    "tpu.trace_start"() <{level = 10 : i32, message = "hqd,hkd->hqk"}> : () -> ()
    %cst_18 = arith.constant dense<0.000000e+00> : vector<4x8x8xf32>
    %59 = tpu.matmul %26, %55, %cst_18 {dimension_numbers = #tpu.dot_dimension_numbers<[2], [2], [1], [1], [0, 0, 0, 1, 1, 1], [0], [0]>} : vector<4x8x8xbf16>, vector<4x8x8xbf16>, vector<4x8x8xf32> -> vector<4x8x8xf32>
    "tpu.trace_stop"() : () -> ()
    %cst_19 = arith.constant dense<0xFF800000> : vector<4x8xf32>
    %60 = vector.multi_reduction <maximumf>, %59, %cst_19 [2] : vector<4x8x8xf32> to vector<4x8xf32>
    %61 = vector.shape_cast %60 : vector<4x8xf32> to vector<4x8x1xf32>
    %62 = vector.broadcast %61 : vector<4x8x1xf32> to vector<4x8x8xf32>
    %63 = arith.subf %59, %62 : vector<4x8x8xf32>
    %64 = math.exp %63 : vector<4x8x8xf32>
    %cst_20 = arith.constant dense<0.000000e+00> : vector<4x8xf32>
    %65 = vector.multi_reduction <add>, %64, %cst_20 [2] : vector<4x8x8xf32> to vector<4x8xf32>
    %66 = vector.shape_cast %65 : vector<4x8xf32> to vector<4x8x1xf32>
    %67 = tpu.reciprocal %66 {approx = true} : vector<4x8x1xf32> -> vector<4x8x1xf32>
    %68 = vector.broadcast %67 : vector<4x8x1xf32> to vector<4x8x8xf32>
    %69 = arith.mulf %64, %68 : vector<4x8x8xf32>
    %70 = arith.truncf %69 : vector<4x8x8xf32> to vector<4x8x8xbf16>
    "tpu.trace_start"() <{level = 10 : i32, message = "hqk,hkd->hqd"}> : () -> ()
    %cst_21 = arith.constant dense<0.000000e+00> : vector<4x8x8xf32>
    %71 = tpu.matmul %70, %58, %cst_21 {dimension_numbers = #tpu.dot_dimension_numbers<[2], [1], [1], [2], [0, 0, 0, 1, 1, 2], [0], [0]>} : vector<4x8x8xbf16>, vector<4x8x8xbf16>, vector<4x8x8xf32> -> vector<4x8x8xf32>
    "tpu.trace_stop"() : () -> ()
    %72 = arith.truncf %71 : vector<4x8x8xf32> to vector<4x8x8xbf16>
    %73 = tpu.transpose %72, [1, 0, 2] : vector<4x8x8xbf16> -> vector<8x4x8xbf16>
    %74 = vector.shape_cast %73 : vector<8x4x8xbf16> to vector<8x32xbf16>
    %75 = tpu.concatenate %50, %74 in 0 : vector<8x32xbf16>, vector<8x32xbf16> -> vector<16x32xbf16>
    %c0_22 = arith.constant 0 : index
    %c0_23 = arith.constant 0 : index
    %76 = vector.load %arg5[%c0_22, %c0_23] : memref<32x128xbf16, #tpu.memory_space<vmem>>, vector<32x128xbf16>
    %cst_24 = arith.constant dense<0.000000e+00> : vector<16x128xf32>
    %77 = tpu.matmul %75, %76, %cst_24 {dimension_numbers = #tpu.dot_dimension_numbers<[1], [0], [0], [1], [0, 0, 1, 1], [], []>} : vector<16x32xbf16>, vector<32x128xbf16>, vector<16x128xf32> -> vector<16x128xf32>
    %c0_25 = arith.constant 0 : index
    %c0_26 = arith.constant 0 : index
    %78 = vector.load %arg6[%c0_25, %c0_26] : memref<1x128xf32, #tpu.memory_space<vmem>>, vector<1x128xf32>
    %79 = vector.broadcast %78 : vector<1x128xf32> to vector<16x128xf32>
    %80 = arith.addf %77, %79 : vector<16x128xf32>
    %81 = vector.shape_cast %80 : vector<16x128xf32> to vector<2x8x128xf32>
    %c0_27 = arith.constant 0 : index
    %c0_28 = arith.constant 0 : index
    %c0_29 = arith.constant 0 : index
    %82 = vector.load %arg7[%c0_27, %c0_28, %c0_29] : memref<2x8x128xf32, #tpu.memory_space<vmem>>, vector<2x8x128xf32>
    tpu.vector_store %arg7[%c0_27, %c0_28, %c0_29], %81 {strides = array<i32>} : memref<2x8x128xf32, #tpu.memory_space<vmem>>, vector<2x8x128xf32>,
    return
  }
  func.func @transform_0(%arg0: i32) -> (i32, i32, i32) {
    %c0_i32 = arith.constant 0 : i32
    %c0_i32_0 = arith.constant 0 : i32
    %c0_i32_1 = arith.constant 0 : i32
    return %arg0, %c0_i32, %c0_i32_0 : i32, i32, i32
  }
  func.func @transform_1(%arg0: i32) -> (i32, i32, i32) {
    %c0_i32 = arith.constant 0 : i32
    %c0_i32_0 = arith.constant 0 : i32
    %c0_i32_1 = arith.constant 0 : i32
    %c0_i32_2 = arith.constant 0 : i32
    return %c0_i32, %c0_i32_0, %c0_i32_1 : i32, i32, i32
  }
  func.func @transform_2(%arg0: i32) -> (i32, i32) {
    %c0_i32 = arith.constant 0 : i32
    %c0_i32_0 = arith.constant 0 : i32
    %c0_i32_1 = arith.constant 0 : i32
    return %c0_i32, %c0_i32_0 : i32, i32
  }
  func.func @transform_3(%arg0: i32) -> (i32, i32) {
    %c0_i32 = arith.constant 0 : i32
    %c0_i32_0 = arith.constant 0 : i32
    %c0_i32_1 = arith.constant 0 : i32
    return %c0_i32, %c0_i32_0 : i32, i32
  }
  func.func @transform_4(%arg0: i32) -> (i32, i32) {
    %c0_i32 = arith.constant 0 : i32
    %c0_i32_0 = arith.constant 0 : i32
    %c0_i32_1 = arith.constant 0 : i32
    return %c0_i32, %c0_i32_0 : i32, i32
  }
  func.func @transform_5(%arg0: i32) -> (i32, i32) {
    %c0_i32 = arith.constant 0 : i32
    %c0_i32_0 = arith.constant 0 : i32
    %c0_i32_1 = arith.constant 0 : i32
    return %c0_i32, %c0_i32_0 : i32, i32
  }
  func.func @transform_6(%arg0: i32) -> (i32, i32, i32) {
    %c0_i32 = arith.constant 0 : i32
    %c0_i32_0 = arith.constant 0 : i32
    %c0_i32_1 = arith.constant 0 : i32
    return %arg0, %c0_i32, %c0_i32_0 : i32, i32, i32
  }
}

module attributes {stable_mosaic.version = 11 : i64} {
  func.func @_pooler_kernel(%arg0: i32, %arg1: memref<2x8x32xf32, #tpu.memory_space<vmem>>, %arg2: memref<4x8x8xbf16, #tpu.memory_space<vmem>>, %arg3: memref<32x64xbf16, #tpu.memory_space<vmem>>, %arg4: memref<1x64xf32, #tpu.memory_space<vmem>>, %arg5: memref<32x128xbf16, #tpu.memory_space<vmem>>, %arg6: memref<1x128xf32, #tpu.memory_space<vmem>>, %arg7: memref<2x8x128xf32, #tpu.memory_space<vmem>>) attributes {dimension_semantics = [#tpu.dimension_semantics<parallel>], iteration_bounds = array<i64: 4>, scalar_prefetch = 0 : i64, scratch_operands = 0 : i64, tpu.core_type = #tpu.core_type<tc>, window_params = [{transform_indices = @transform_0, window_bounds = array<i64: 2, 8, 32>}, {pipeline_mode = #tpu.pipeline_mode<synchronous>, transform_indices = @transform_1, window_bounds = array<i64: 4, 8, 8>}, {pipeline_mode = #tpu.pipeline_mode<synchronous>, transform_indices = @transform_2, window_bounds = array<i64: 32, 64>}, {pipeline_mode = #tpu.pipeline_mode<synchronous>, transform_indices = @transform_3, window_bounds = array<i64: 1, 64>}, {pipeline_mode = #tpu.pipeline_mode<synchronous>, transform_indices = @transform_4, window_bounds = array<i64: 32, 128>}, {pipeline_mode = #tpu.pipeline_mode<synchronous>, transform_indices = @transform_5, window_bounds = array<i64: 1, 128>}, {transform_indices = @transform_6, window_bounds = array<i64: 2, 8, 128>}]} {
    %c0 = arith.constant 0 : index
    %c0_0 = arith.constant 0 : index
    %c0_1 = arith.constant 0 : index
    %0 = vector.load %arg1[%c0, %c0_0, %c0_1] : memref<2x8x32xf32, #tpu.memory_space<vmem>>, vector<2x8x32xf32>
    %cst = arith.constant dense<0.000000e+00> : vector<2x8xf32>
    %1 = vector.multi_reduction <add>, %0, %cst [2] : vector<2x8x32xf32> to vector<2x8xf32>
    %2 = vector.shape_cast %1 : vector<2x8xf32> to vector<2x8x1xf32>
    %cst_2 = arith.constant 3.200000e+01 : f32
    %3 = vector.broadcast %cst_2 : f32 to vector<2x8x1xf32>
    %4 = arith.divf %2, %3 : vector<2x8x1xf32>
    %5 = vector.broadcast %4 : vector<2x8x1xf32> to vector<2x8x32xf32>
    %6 = arith.subf %0, %5 : vector<2x8x32xf32>
    %7 = arith.mulf %6, %6 : vector<2x8x32xf32>
    %cst_3 = arith.constant dense<0.000000e+00> : vector<2x8xf32>
    %8 = vector.multi_reduction <add>, %7, %cst_3 [2] : vector<2x8x32xf32> to vector<2x8xf32>
    %9 = vector.shape_cast %8 : vector<2x8xf32> to vector<2x8x1xf32>
    %cst_4 = arith.constant 3.200000e+01 : f32
    %10 = vector.broadcast %cst_4 : f32 to vector<2x8x1xf32>
    %11 = arith.divf %9, %10 : vector<2x8x1xf32>
    %cst_5 = arith.constant 9.99999974E-6 : f32
    %12 = vector.broadcast %cst_5 : f32 to vector<2x8x1xf32>
    %13 = arith.addf %11, %12 : vector<2x8x1xf32>
    %14 = math.rsqrt %13 : vector<2x8x1xf32>
    %15 = vector.broadcast %14 : vector<2x8x1xf32> to vector<2x8x32xf32>
    %16 = arith.mulf %6, %15 : vector<2x8x32xf32>
    %17 = vector.shape_cast %16 : vector<2x8x32xf32> to vector<16x32xf32>
    %18 = arith.truncf %17 : vector<16x32xf32> to vector<16x32xbf16>
    %c0_6 = arith.constant 0 : index
    %c0_7 = arith.constant 0 : index
    %19 = vector.load %arg3[%c0_6, %c0_7] : memref<32x64xbf16, #tpu.memory_space<vmem>>, vector<32x64xbf16>
    %cst_8 = arith.constant dense<0.000000e+00> : vector<16x64xf32>
    %20 = tpu.matmul %18, %19, %cst_8 {dimension_numbers = #tpu.dot_dimension_numbers<[1], [0], [0], [1], [0, 0, 1, 1], [], []>} : vector<16x32xbf16>, vector<32x64xbf16>, vector<16x64xf32> -> vector<16x64xf32>
    %c0_9 = arith.constant 0 : index
    %c0_10 = arith.constant 0 : index
    %21 = vector.load %arg4[%c0_9, %c0_10] : memref<1x64xf32, #tpu.memory_space<vmem>>, vector<1x64xf32>
    %22 = vector.broadcast %21 : vector<1x64xf32> to vector<16x64xf32>
    %23 = arith.addf %20, %22 : vector<16x64xf32>
    %24 = arith.truncf %23 : vector<16x64xf32> to vector<16x64xbf16>
    %25 = vector.shape_cast %24 : vector<16x64xbf16> to vector<2x8x64xbf16>
    %c0_11 = arith.constant 0 : index
    %c0_12 = arith.constant 0 : index
    %c0_13 = arith.constant 0 : index
    %26 = vector.load %arg2[%c0_11, %c0_12, %c0_13] : memref<4x8x8xbf16, #tpu.memory_space<vmem>>, vector<4x8x8xbf16>
    %27 = vector.extract_strided_slice %25 {offsets = [0, 0, 0], sizes = [1, 8, 64], strides = [1, 1, 1]} : vector<2x8x64xbf16> to vector<1x8x64xbf16>
    %28 = vector.shape_cast %27 : vector<1x8x64xbf16> to vector<8x64xbf16>
    %29 = vector.extract_strided_slice %28 {offsets = [0, 0], sizes = [8, 32], strides = [1, 1]} : vector<8x64xbf16> to vector<8x32xbf16>
    %30 = vector.shape_cast %29 : vector<8x32xbf16> to vector<8x4x8xbf16>
    %31 = tpu.transpose %30, [1, 0, 2] : vector<8x4x8xbf16> -> vector<4x8x8xbf16>
    %32 = vector.extract_strided_slice %28 {offsets = [0, 32], sizes = [8, 32], strides = [1, 1]} : vector<8x64xbf16> to vector<8x32xbf16>
    %33 = vector.shape_cast %32 : vector<8x32xbf16> to vector<8x4x8xbf16>
    %34 = tpu.transpose %33, [1, 0, 2] : vector<8x4x8xbf16> -> vector<4x8x8xbf16>
    "tpu.trace_start"() <{level = 10 : i32, message = "hqd,hkd->hqk"}> : () -> ()
    %cst_14 = arith.constant dense<0.000000e+00> : vector<4x8x8xf32>
    %35 = tpu.matmul %26, %31, %cst_14 {dimension_numbers = #tpu.dot_dimension_numbers<[2], [2], [1], [1], [0, 0, 0, 1, 1, 1], [0], [0]>} : vector<4x8x8xbf16>, vector<4x8x8xbf16>, vector<4x8x8xf32> -> vector<4x8x8xf32>
    "tpu.trace_stop"() : () -> ()
    %cst_15 = arith.constant dense<0xFF800000> : vector<4x8xf32>
    %36 = vector.multi_reduction <maximumf>, %35, %cst_15 [2] : vector<4x8x8xf32> to vector<4x8xf32>
    %37 = vector.shape_cast %36 : vector<4x8xf32> to vector<4x8x1xf32>
    %38 = vector.broadcast %37 : vector<4x8x1xf32> to vector<4x8x8xf32>
    %39 = arith.subf %35, %38 : vector<4x8x8xf32>
    %40 = math.exp %39 : vector<4x8x8xf32>
    %cst_16 = arith.constant dense<0.000000e+00> : vector<4x8xf32>
    %41 = vector.multi_reduction <add>, %40, %cst_16 [2] : vector<4x8x8xf32> to vector<4x8xf32>
    %42 = vector.shape_cast %41 : vector<4x8xf32> to vector<4x8x1xf32>
    %43 = tpu.reciprocal %42 {approx = true} : vector<4x8x1xf32> -> vector<4x8x1xf32>
    %44 = vector.broadcast %43 : vector<4x8x1xf32> to vector<4x8x8xf32>
    %45 = arith.mulf %40, %44 : vector<4x8x8xf32>
    %46 = arith.truncf %45 : vector<4x8x8xf32> to vector<4x8x8xbf16>
    "tpu.trace_start"() <{level = 10 : i32, message = "hqk,hkd->hqd"}> : () -> ()
    %cst_17 = arith.constant dense<0.000000e+00> : vector<4x8x8xf32>
    %47 = tpu.matmul %46, %34, %cst_17 {dimension_numbers = #tpu.dot_dimension_numbers<[2], [1], [1], [2], [0, 0, 0, 1, 1, 2], [0], [0]>} : vector<4x8x8xbf16>, vector<4x8x8xbf16>, vector<4x8x8xf32> -> vector<4x8x8xf32>
    "tpu.trace_stop"() : () -> ()
    %48 = arith.truncf %47 : vector<4x8x8xf32> to vector<4x8x8xbf16>
    %49 = tpu.transpose %48, [1, 0, 2] : vector<4x8x8xbf16> -> vector<8x4x8xbf16>
    %50 = vector.shape_cast %49 : vector<8x4x8xbf16> to vector<8x32xbf16>
    %51 = vector.extract_strided_slice %25 {offsets = [1, 0, 0], sizes = [1, 8, 64], strides = [1, 1, 1]} : vector<2x8x64xbf16> to vector<1x8x64xbf16>
    %52 = vector.shape_cast %51 : vector<1x8x64xbf16> to vector<8x64xbf16>
    %53 = vector.extract_strided_slice %52 {offsets = [0, 0], sizes = [8, 32], strides = [1, 1]} : vector<8x64xbf16> to vector<8x32xbf16>
    %54 = vector.shape_cast %53 : vector<8x32xbf16> to vector<8x4x8xbf16>
    %55 = tpu.transpose %54, [1, 0, 2] : vector<8x4x8xbf16> -> vector<4x8x8xbf16>
    %56 = vector.extract_strided_slice %52 {offsets = [0, 32], sizes = [8, 32], strides = [1, 1]} : vector<8x64xbf16> to vector<8x32xbf16>
    %57 = vector.shape_cast %56 : vector<8x32xbf16> to vector<8x4x8xbf16>
    %58 = tpu.transpose %57, [1, 0, 2] : vector<8x4x8xbf16> -> vector<4x8x8xbf16>
    "tpu.trace_start"() <{level = 10 : i32, message = "hqd,hkd->hqk"}> : () -> ()
    %cst_18 = arith.constant dense<0.000000e+00> : vector<4x8x8xf32>
    %59 = tpu.matmul %26, %55, %cst_18 {dimension_numbers = #tpu.dot_dimension_numbers<[2], [2], [1], [1], [0, 0, 0, 1, 1, 1], [0], [0]>} : vector<4x8x8xbf16>, vector<4x8x8xbf16>, vector<4x8x8xf32> -> vector<4x8x8xf32>
    "tpu.trace_stop"() : () -> ()
    %cst_19 = arith.constant dense<0xFF800000> : vector<4x8xf32>
    %60 = vector.multi_reduction <maximumf>, %59, %cst_19 [2] : vector<4x8x8xf32> to vector<4x8xf32>
    %61 = vector.shape_cast %60 : vector<4x8xf32> to vector<4x8x1xf32>
    %62 = vector.broadcast %61 : vector<4x8x1xf32> to vector<4x8x8xf32>
    %63 = arith.subf %59, %62 : vector<4x8x8xf32>
    %64 = math.exp %63 : vector<4x8x8xf32>
    %cst_20 = arith.constant dense<0.000000e+00> : vector<4x8xf32>
    %65 = vector.multi_reduction <add>, %64, %cst_20 [2] : vector<4x8x8xf32> to vector<4x8xf32>
    %66 = vector.shape_cast %65 : vector<4x8xf32> to vector<4x8x1xf32>
    %67 = tpu.reciprocal %66 {approx = true} : vector<4x8x1xf32> -> vector<4x8x1xf32>
    %68 = vector.broadcast %67 : vector<4x8x1xf32> to vector<4x8x8xf32>
    %69 = arith.mulf %64, %68 : vector<4x8x8xf32>
    %70 = arith.truncf %69 : vector<4x8x8xf32> to vector<4x8x8xbf16>
    "tpu.trace_start"() <{level = 10 : i32, message = "hqk,hkd->hqd"}> : () -> ()
    %cst_21 = arith.constant dense<0.000000e+00> : vector<4x8x8xf32>
    %71 = tpu.matmul %70, %58, %cst_21 {dimension_numbers = #tpu.dot_dimension_numbers<[2], [1], [1], [2], [0, 0, 0, 1, 1, 2], [0], [0]>} : vector<4x8x8xbf16>, vector<4x8x8xbf16>, vector<4x8x8xf32> -> vector<4x8x8xf32>
    "tpu.trace_stop"() : () -> ()
    %72 = arith.truncf %71 : vector<4x8x8xf32> to vector<4x8x8xbf16>
    %73 = tpu.transpose %72, [1, 0, 2] : vector<4x8x8xbf16> -> vector<8x4x8xbf16>
    %74 = vector.shape_cast %73 : vector<8x4x8xbf16> to vector<8x32xbf16>
    %75 = tpu.concatenate %50, %74 in 0 : vector<8x32xbf16>, vector<8x32xbf16> -> vector<16x32xbf16>
    %c0_22 = arith.constant 0 : index
    %c0_23 = arith.constant 0 : index
    %76 = vector.load %arg5[%c0_22, %c0_23] : memref<32x128xbf16, #tpu.memory_space<vmem>>, vector<32x128xbf16>
    %cst_24 = arith.constant dense<0.000000e+00> : vector<16x128xf32>
    %77 = tpu.matmul %75, %76, %cst_24 {dimension_numbers = #tpu.dot_dimension_numbers<[1], [0], [0], [1], [0, 0, 1, 1], [], []>} : vector<16x32xbf16>, vector<32x128xbf16>, vector<16x128xf32> -> vector<16x128xf32>
    %c0_25 = arith.constant 0 : index
    %c0_26 = arith.constant 0 : index
    %78 = vector.load %arg6[%c0_25, %c0_26] : memref<1x128xf32, #tpu.memory_space<vmem>>, vector<1x128xf32>
    %79 = vector.broadcast %78 : vector<1x128xf32> to vector<16x128xf32>
    %80 = arith.addf %77, %79 : vector<16x128xf32>
    %81 = vector.shape_cast %80 : vector<16x128xf32> to vector<2x8x128xf32>
    %c0_27 = arith.constant 0 : index
    %c0_28 = arith.constant 0 : index
    %c0_29 = arith.constant 0 : index
    %82 = vector.load %arg7[%c0_27, %c0_28, %c0_29] : memref<2x8x128xf32, #tpu.memory_space<vmem>>, vector<2x8x128xf32>
    tpu.vector_store %arg7[%c0_27, %c0_28, %c0_29], %81 {strides = array<i32>} : memref<2x8x128xf32, #tpu.memory_space<vmem>>, vector<2x8x128xf32>,
    return
  }
  func.func @transform_0(%arg0: i32) -> (i32, i32, i32) {
    %c0_i32 = arith.constant 0 : i32
    %c0_i32_0 = arith.constant 0 : i32
    %c0_i32_1 = arith.constant 0 : i32
    return %arg0, %c0_i32, %c0_i32_0 : i32, i32, i32
  }
  func.func @transform_1(%arg0: i32) -> (i32, i32, i32) {
    %c0_i32 = arith.constant 0 : i32
    %c0_i32_0 = arith.constant 0 : i32
    %c0_i32_1 = arith.constant 0 : i32
    %c0_i32_2 = arith.constant 0 : i32
    return %c0_i32, %c0_i32_0, %c0_i32_1 : i32, i32, i32
  }
  func.func @transform_2(%arg0: i32) -> (i32, i32) {
    %c0_i32 = arith.constant 0 : i32
    %c0_i32_0 = arith.constant 0 : i32
    %c0_i32_1 = arith.constant 0 : i32
    return %c0_i32, %c0_i32_0 : i32, i32
  }
  func.func @transform_3(%arg0: i32) -> (i32, i32) {
    %c0_i32 = arith.constant 0 : i32
    %c0_i32_0 = arith.constant 0 : i32
    %c0_i32_1 = arith.constant 0 : i32
    return %c0_i32, %c0_i32_0 : i32, i32
  }
  func.func @transform_4(%arg0: i32) -> (i32, i32) {
    %c0_i32 = arith.constant 0 : i32
    %c0_i32_0 = arith.constant 0 : i32
    %c0_i32_1 = arith.constant 0 : i32
    return %c0_i32, %c0_i32_0 : i32, i32
  }
  func.func @transform_5(%arg0: i32) -> (i32, i32) {
    %c0_i32 = arith.constant 0 : i32
    %c0_i32_0 = arith.constant 0 : i32
    %c0_i32_1 = arith.constant 0 : i32
    return %c0_i32, %c0_i32_0 : i32, i32
  }
  func.func @transform_6(%arg0: i32) -> (i32, i32, i32) {
    %c0_i32 = arith.constant 0 : i32
    %c0_i32_0 = arith.constant 0 : i32
    %c0_i32_1 = arith.constant 0 : i32
    return %arg0, %c0_i32, %c0_i32_0 : i32, i32, i32
  }
}

</mosaic_0001>

<llo_original>
// kernel: tpu_custom_call.1
$region0: #{tpu_custom_call.1}
  #allocation0 [shape = 'u32[]', space=smem, size = 0x4, offset = 0x4, fixed_abs, tag = 'smem constant byte address 0x4 - core index']
  #allocation1 [shape = 'u32[144,128]{1,0:T(1,128)}', space=vmem, size = 0x12000, scoped, tag = 'internal scratch']
  %s0 = inlined_call_operand.hbm [shape: f32[8,8,32], index: 0, kind: input, shape index: {}]
  %s1 = inlined_call_operand.hbm [shape: bf16[4,8,8], index: 1, kind: input, shape index: {}]
  %s2 = inlined_call_operand.hbm [shape: bf16[32,64], index: 2, kind: input, shape index: {}]
  %s3 = inlined_call_operand.vmem [shape: f32[1,64], index: 3, kind: input, shape index: {}]
  %s4 = inlined_call_operand.hbm [shape: bf16[32,128], index: 4, kind: input, shape index: {}]
  %s5 = inlined_call_operand.vmem [shape: f32[1,128], index: 5, kind: input, shape index: {}]
  %s6 = inlined_call_operand.hbm [shape: f32[8,8,128], index: 6, kind: output, shape index: {}]
  %s7 = sld [smem:[#allocation0]]
  $region73: #{tpu_custom_call.1} parent=0
    _
  %s9 = ssub.s32 1, %s7
  %s10 = scalar_select 0, %s9, %s7
  $region1: #{tpu_custom_call.1} parent=0
    #allocation2 [shape = 'u8[16384]{0}', space=vmem, size = 0x4000, scoped, tag = 'input window, operand 0']
    #allocation3 [shape = 's32[2]{0}', space=sflag, size = 0x8, scoped, tag = 'scoped memory for tpu_custom_call.1']
    #allocation4 [shape = 's32[2]{0}', space=sflag, size = 0x8, scoped, tag = 'scoped memory for tpu_custom_call.1']
    #allocation5 [shape = 'u8[8192]{0}', space=vmem, size = 0x2000, scoped, tag = 'input window, operand 1, single buffered']
    #allocation6 [shape = 's32[1]{0}', space=sflag, size = 0x4, scoped, tag = 'scoped memory for tpu_custom_call.1']
    #allocation7 [shape = 'u8[8192]{0}', space=vmem, size = 0x2000, scoped, tag = 'input window, operand 2, single buffered']
    #allocation8 [shape = 'u8[8192]{0}', space=vmem, size = 0x2000, scoped, tag = 'input window, operand 4, single buffered']
    #allocation9 [shape = 's32[1]{0}', space=sflag, size = 0x4, scoped, tag = 'scoped memory for tpu_custom_call.1']
    #allocation10 [shape = 'u8[16384]{0}', space=vmem, size = 0x4000, scoped, tag = 'output window, operand 0']
    %11 = vsyncpa [#allocation3], 0
    %s12 = scalar_lea.sflag [#allocation3], 1
    %13 = vsyncpa %s12, 0
    %14 = vsyncpa [#allocation6], 0
    %15 = vsyncpa [#allocation9], 0
    %16 = vsyncpa [#allocation4], 0
    %s17 = scalar_lea.sflag [#allocation4], 1
    %18 = vsyncpa %s17, 0
    loop: start=0, step=1, limit=6
    $region2: #{tpu_custom_call.1} parent=1 // loop_pre_header
      _
    $region3: #{tpu_custom_call.1} parent=1 // loop_header
      %s20 = sphi 0, %s24
      %p21 = scmp.ge.s32.totalorder %s20, 6
      %s30 = sphi 0, %s32
      %s33 = sphi 0, %s30
      %s34 = sphi 0, %s33
      %s50 = sphi 0, %s34
      %s54 = sphi 0, %s54
      %s56 = sphi 0, %s54
      %s57 = sphi 0, %s56
      %s71 = sphi 0, %s57
      %s75 = sphi 0, %s75
      %s77 = sphi 0, %s75
      %s78 = sphi 0, %s77
      %s92 = sphi 0, %s78
      %s96 = sphi 0, %s96
      %s98 = sphi 0, %s96
      %s99 = sphi 0, %s98
      %s113 = sphi 0, %s99
      %s117 = sphi 0, %s117
      %s119 = sphi 0, %s117
      %s120 = sphi 0, %s119
      %s134 = sphi 0, %s120
      %s138 = sphi 0, %s138
      %s140 = sphi 0, %s138
      %s141 = sphi 0, %s140
      %s155 = sphi 0, %s141
      %s161 = sphi 0, %s163
      %s164 = sphi 0, %s161
      %s165 = sphi 0, %s164
      %s181 = sphi 0, %s165
    $region4: #{tpu_custom_call.1} parent=1 // loop_header_branch
      %23 = sbr.rel (%p21) target = $region8
    $region5: #{tpu_custom_call.1} parent=1 // loop_body
      %s25 = ssub.s32 %s20, 1
      %s26 = ssub.s32 %s20, 2
      %s27 = sadd.s32 %s20, 1
      %s28 = ssub.s32 %s20, %s27
      %p29 = scmp.eq.s32.totalorder %s28, 0
      %s31 = sadd.s32 %s30, 1
      %s32 = scalar_select %p29, %s30, %s31
      %p35 = pneg %p29
      %p36 = scmp.eq.s32.totalorder %s20, 3
      %p37 = por %p35, %p36
      %p38 = scmp.ne.s32.totalorder %s30, %s33
      %p39 = scmp.eq.s32.totalorder %s20, 0
      %p40 = por %p38, %p39
      %p41 = scmp.ne.s32.totalorder %s30, %s33
      %p42 = scmp.eq.s32.totalorder %s25, 3
      %p43 = por %p41, %p42
      %p44 = scmp.ne.s32.totalorder %s33, %s34
      %p45 = scmp.eq.s32.totalorder %s25, 0
      %p46 = por %p44, %p45
      %p47 = scmp.ne.s32.totalorder %s33, %s34
      %p48 = scmp.eq.s32.totalorder %s26, 3
      %p49 = por %p47, %p48
      %p51 = scmp.ne.s32.totalorder %s34, %s50
      %p52 = scmp.eq.s32.totalorder %s26, 0
      %p53 = por %p51, %p52
      %s55 = sadd.s32 %s54, 1
      %p58 = scmp.eq.s32.totalorder %s20, 3
      %p59 = scmp.ne.s32.totalorder %s54, %s56
      %p60 = scmp.eq.s32.totalorder %s20, 0
      %p61 = por %p59, %p60
      %p62 = scmp.ne.s32.totalorder %s54, %s56
      %p63 = scmp.eq.s32.totalorder %s25, 3
      %p64 = por %p62, %p63
      %p65 = scmp.ne.s32.totalorder %s56, %s57
      %p66 = scmp.eq.s32.totalorder %s25, 0
      %p67 = por %p65, %p66
      %p68 = scmp.ne.s32.totalorder %s56, %s57
      %p69 = scmp.eq.s32.totalorder %s26, 3
      %p70 = por %p68, %p69
      %p72 = scmp.ne.s32.totalorder %s57, %s71
      %p73 = scmp.eq.s32.totalorder %s26, 0
      %p74 = por %p72, %p73
      %s76 = sadd.s32 %s75, 1
      %p79 = scmp.eq.s32.totalorder %s20, 3
      %p80 = scmp.ne.s32.totalorder %s75, %s77
      %p81 = scmp.eq.s32.totalorder %s20, 0
      %p82 = por %p80, %p81
      %p83 = scmp.ne.s32.totalorder %s75, %s77
      %p84 = scmp.eq.s32.totalorder %s25, 3
      %p85 = por %p83, %p84
      %p86 = scmp.ne.s32.totalorder %s77, %s78
      %p87 = scmp.eq.s32.totalorder %s25, 0
      %p88 = por %p86, %p87
      %p89 = scmp.ne.s32.totalorder %s77, %s78
      %p90 = scmp.eq.s32.totalorder %s26, 3
      %p91 = por %p89, %p90
      %p93 = scmp.ne.s32.totalorder %s78, %s92
      %p94 = scmp.eq.s32.totalorder %s26, 0
      %p95 = por %p93, %p94
      %s97 = sadd.s32 %s96, 1
      %p100 = scmp.eq.s32.totalorder %s20, 3
      %p101 = scmp.ne.s32.totalorder %s96, %s98
      %p102 = scmp.eq.s32.totalorder %s20, 0
      %p103 = por %p101, %p102
      %p104 = scmp.ne.s32.totalorder %s96, %s98
      %p105 = scmp.eq.s32.totalorder %s25, 3
      %p106 = por %p104, %p105
      %p107 = scmp.ne.s32.totalorder %s98, %s99
      %p108 = scmp.eq.s32.totalorder %s25, 0
      %p109 = por %p107, %p108
      %p110 = scmp.ne.s32.totalorder %s98, %s99
      %p111 = scmp.eq.s32.totalorder %s26, 3
      %p112 = por %p110, %p111
      %p114 = scmp.ne.s32.totalorder %s99, %s113
      %p115 = scmp.eq.s32.totalorder %s26, 0
      %p116 = por %p114, %p115
      %s118 = sadd.s32 %s117, 1
      %p121 = scmp.eq.s32.totalorder %s20, 3
      %p122 = scmp.ne.s32.totalorder %s117, %s119
      %p123 = scmp.eq.s32.totalorder %s20, 0
      %p124 = por %p122, %p123
      %p125 = scmp.ne.s32.totalorder %s117, %s119
      %p126 = scmp.eq.s32.totalorder %s25, 3
      %p127 = por %p125, %p126
      %p128 = scmp.ne.s32.totalorder %s119, %s120
      %p129 = scmp.eq.s32.totalorder %s25, 0
      %p130 = por %p128, %p129
      %p131 = scmp.ne.s32.totalorder %s119, %s120
      %p132 = scmp.eq.s32.totalorder %s26, 3
      %p133 = por %p131, %p132
      %p135 = scmp.ne.s32.totalorder %s120, %s134
      %p136 = scmp.eq.s32.totalorder %s26, 0
      %p137 = por %p135, %p136
      %s139 = sadd.s32 %s138, 1
      %p142 = scmp.eq.s32.totalorder %s20, 3
      %p143 = scmp.ne.s32.totalorder %s138, %s140
      %p144 = scmp.eq.s32.totalorder %s20, 0
      %p145 = por %p143, %p144
      %p146 = scmp.ne.s32.totalorder %s138, %s140
      %p147 = scmp.eq.s32.totalorder %s25, 3
      %p148 = por %p146, %p147
      %p149 = scmp.ne.s32.totalorder %s140, %s141
      %p150 = scmp.eq.s32.totalorder %s25, 0
      %p151 = por %p149, %p150
      %p152 = scmp.ne.s32.totalorder %s140, %s141
      %p153 = scmp.eq.s32.totalorder %s26, 3
      %p154 = por %p152, %p153
      %p156 = scmp.ne.s32.totalorder %s141, %s155
      %p157 = scmp.eq.s32.totalorder %s26, 0
      %p158 = por %p156, %p157
      %s159 = ssub.s32 %s20, %s27
      %p160 = scmp.eq.s32.totalorder %s159, 0
      %s162 = sadd.s32 %s161, 1
      %s163 = scalar_select %p160, %s161, %s162
      %p166 = pneg %p160
      %p167 = scmp.eq.s32.totalorder %s20, 3
      %p168 = por %p166, %p167
      %p169 = scmp.ne.s32.totalorder %s161, %s164
      %p170 = scmp.eq.s32.totalorder %s20, 0
      %p171 = por %p169, %p170
      %p172 = scmp.ne.s32.totalorder %s161, %s164
      %p173 = scmp.eq.s32.totalorder %s25, 3
      %p174 = por %p172, %p173
      %p175 = scmp.ne.s32.totalorder %s164, %s165
      %p176 = scmp.eq.s32.totalorder %s25, 0
      %p177 = por %p175, %p176
      %p178 = scmp.ne.s32.totalorder %s164, %s165
      %p179 = scmp.eq.s32.totalorder %s26, 3
      %p180 = por %p178, %p179
      %p182 = scmp.ne.s32.totalorder %s165, %s181
      %p183 = scmp.eq.s32.totalorder %s26, 0
      %p184 = por %p182, %p183
      %p185 = scmp.le.s32.totalorder 1, %s20
      %p186 = scmp.lt.s32.totalorder %s20, 5
      %p187 = pnand %p185, %p186
      %p188 = pneg %p187
      // Predicated region
      $region9: #{tpu_custom_call.1} parent=5 // pred_check
        _
      $region10: #{tpu_custom_call.1} parent=5 // pred_check_branch
        %190 = sbr.rel (%p187) target = $region12
      $region11: #{tpu_custom_call.1} parent=5 // pred_region
        %s191 = ssub.s32 %s20, 1
        // Predicated region
        $region13: #{tpu_custom_call.1} parent=11 // pred_check
          %p192 = pneg %p67
        $region14: #{tpu_custom_call.1} parent=11 // pred_check_branch
          %194 = sbr.rel (%p192) target = $region16
        $region15: #{tpu_custom_call.1} parent=11 // pred_region
          %s196 = ssub.s32 256, 256
          %197 = vsyncadd [#allocation6], %s196
          %s198 = sshll.u32 [#allocation5], 4
          %s199 = int_to_ptr.vmem [resolvable:$true] %s198
          %204 = dma.hbm_to_vmem [thread:$0]  %s1, 256, %s199, [#allocation6], 64, 64, 4
        $region16: #{tpu_custom_call.1} parent=11 // pred_fallthru
          _
        // Predicated region
        $region17: #{tpu_custom_call.1} parent=11 // pred_check
          %p205 = pneg %p88
        $region18: #{tpu_custom_call.1} parent=11 // pred_check_branch
          %207 = sbr.rel (%p205) target = $region20
        $region19: #{tpu_custom_call.1} parent=11 // pred_region
          %s209 = ssub.s32 256, 256
          %210 = vsyncadd [#allocation6], %s209
          %s211 = sshll.u32 [#allocation7], 4
          %s212 = int_to_ptr.vmem [resolvable:$true] %s211
          %217 = dma.hbm_to_vmem [thread:$0]  %s2, 256, %s212, [#allocation6], 64, 64, 4
        $region20: #{tpu_custom_call.1} parent=11 // pred_fallthru
          _
        // Predicated region
        $region21: #{tpu_custom_call.1} parent=11 // pred_check
          %p218 = pneg %p109
        $region22: #{tpu_custom_call.1} parent=11 // pred_check_branch
          %220 = sbr.rel (%p218) target = $region24
        $region23: #{tpu_custom_call.1} parent=11 // pred_region
          _
        $region24: #{tpu_custom_call.1} parent=11 // pred_fallthru
          _
        // Predicated region
        $region25: #{tpu_custom_call.1} parent=11 // pred_check
          %p221 = pneg %p130
        $region26: #{tpu_custom_call.1} parent=11 // pred_check_branch
          %223 = sbr.rel (%p221) target = $region28
        $region27: #{tpu_custom_call.1} parent=11 // pred_region
          %s225 = ssub.s32 256, 256
          %226 = vsyncadd [#allocation9], %s225
          %s227 = sshll.u32 [#allocation8], 4
          %s228 = int_to_ptr.vmem [resolvable:$true] %s227
          %233 = dma.hbm_to_vmem [thread:$0]  %s4, 256, %s228, [#allocation9], 64, 64, 4
        $region28: #{tpu_custom_call.1} parent=11 // pred_fallthru
          _
        // Predicated region
        $region29: #{tpu_custom_call.1} parent=11 // pred_check
          %p234 = pneg %p151
        $region30: #{tpu_custom_call.1} parent=11 // pred_check_branch
          %236 = sbr.rel (%p234) target = $region32
        $region31: #{tpu_custom_call.1} parent=11 // pred_region
          _
        $region32: #{tpu_custom_call.1} parent=11 // pred_fallthru
          _
      $region12: #{tpu_custom_call.1} parent=5 // pred_fallthru
        _
      %p237 = scmp.lt.s32.totalorder %s20, 4
      // Predicated region
      $region33: #{tpu_custom_call.1} parent=5 // pred_check
        %p238 = pneg %p237
      $region34: #{tpu_custom_call.1} parent=5 // pred_check_branch
        %240 = sbr.rel (%p238) target = $region36
      $region35: #{tpu_custom_call.1} parent=5 // pred_region
        // Predicated region
        $region37: #{tpu_custom_call.1} parent=35 // pred_check
          %p241 = pneg %p40
        $region38: #{tpu_custom_call.1} parent=35 // pred_check_branch
          %243 = sbr.rel (%p241) target = $region40
        $region39: #{tpu_custom_call.1} parent=35 // pred_region
          %s244 = sand.u32 %s30, 1
          %s245 = scalar_lea.sflag [#allocation3], %s244
          %s246 = sand.u32 %s30, 1
          %s247 = smul.addr %s246, 16
          %s248 = scalar_lea.vmem [#allocation2], %s247
          %s249 = smul.u32 2, %s20
          %s251 = ssub.s32 256, 256
          %252 = vsyncadd %s245, %s251
          %s253 = smul.addr %s249, 128
          %s254 = scalar_lea.hbm %s0, %s253
          %s255 = sshll.u32 %s248, 4
          %s256 = int_to_ptr.vmem [resolvable:$true] %s255
          %261 = dma.hbm_to_vmem [thread:$0]  %s254, 256, %s256, %s245, 128, 128, 8
        $region40: #{tpu_custom_call.1} parent=35 // pred_fallthru
          _
      $region36: #{tpu_custom_call.1} parent=5 // pred_fallthru
        _
      %p262 = scmp.le.s32.totalorder 1, %s20
      %p263 = scmp.lt.s32.totalorder %s20, 5
      %p264 = pnand %p262, %p263
      %p265 = pneg %p264
      // Predicated region
      $region41: #{tpu_custom_call.1} parent=5 // pred_check
        _
      $region42: #{tpu_custom_call.1} parent=5 // pred_check_branch
        %267 = sbr.rel (%p264) target = $region44
      $region43: #{tpu_custom_call.1} parent=5 // pred_region
        %s268 = ssub.s32 %s20, 1
        %s269 = sand.u32 %s33, 1
        %s270 = scalar_lea.sflag [#allocation3], %s269
        %s271 = sand.u32 %s33, 1
        %s272 = smul.addr %s271, 16
        %s273 = scalar_lea.vmem [#allocation2], %s272
        // Predicated region
        $region45: #{tpu_custom_call.1} parent=43 // pred_check
          %p274 = pneg %p46
        $region46: #{tpu_custom_call.1} parent=43 // pred_check_branch
          %276 = sbr.rel (%p274) target = $region48
        $region47: #{tpu_custom_call.1} parent=43 // pred_region
          %277 = dma.done %s270, 256
        $region48: #{tpu_custom_call.1} parent=43 // pred_fallthru
          _
        // Predicated region
        $region49: #{tpu_custom_call.1} parent=43 // pred_check
          %p278 = pneg %p67
        $region50: #{tpu_custom_call.1} parent=43 // pred_check_branch
          %280 = sbr.rel (%p278) target = $region52
        $region51: #{tpu_custom_call.1} parent=43 // pred_region
          %281 = dma.done [#allocation6], 256
        $region52: #{tpu_custom_call.1} parent=43 // pred_fallthru
          _
        // Predicated region
        $region53: #{tpu_custom_call.1} parent=43 // pred_check
          %p282 = pneg %p88
        $region54: #{tpu_custom_call.1} parent=43 // pred_check_branch
          %284 = sbr.rel (%p282) target = $region56
        $region55: #{tpu_custom_call.1} parent=43 // pred_region
          %285 = dma.done [#allocation6], 256
        $region56: #{tpu_custom_call.1} parent=43 // pred_fallthru
          _
        // Predicated region
        $region57: #{tpu_custom_call.1} parent=43 // pred_check
          %p286 = pneg %p130
        $region58: #{tpu_custom_call.1} parent=43 // pred_check_branch
          %288 = sbr.rel (%p286) target = $region60
        $region59: #{tpu_custom_call.1} parent=43 // pred_region
          %289 = dma.done [#allocation9], 256
        $region60: #{tpu_custom_call.1} parent=43 // pred_fallthru
          _
        %s290 = sand.u32 %s33, 1
        %s291 = scalar_lea.sflag [#allocation3], %s290
        %s292 = sand.u32 %s33, 1
        %s293 = smul.addr %s292, 16
        %s294 = scalar_lea.vmem [#allocation2], %s293
        %p295 = pneg %p46
        %p296 = pneg %p43
        %p297 = pneg %p67
        %p298 = pneg %p64
        %p299 = pneg %p88
        %p300 = pneg %p85
        %p301 = pneg %p109
        %p302 = pneg %p106
        %p303 = pneg %p130
        %p304 = pneg %p127
        %p305 = pneg %p151
        %p306 = pneg %p148
        %p307 = pneg %p177
        %p308 = pneg %p174
        %s309 = sand.u32 %s164, 1
        %s310 = scalar_lea.sflag [#allocation4], %s309
        %s311 = sand.u32 %s164, 1
        %s312 = smul.addr %s311, 16
        %s313 = scalar_lea.vmem [#allocation10], %s312
        %s314 = smul.u32 2, %s25
        %s315 = smul.u32 2, %s25
        %v317 = vld [vmem:[%s273] sm:$0xff]
        %v318 = vld [vmem:[%s273 + $0x8] sm:$0xff]
        %vm319 = vcmask 261120
        %v320 = vsel %vm319, %v317, 0.0
        %321 = vadd.xlane.f32.xlu0 %v320
        %v322 = vpop.xlane.xlu0 %321
        %v323 = vsel %vm319, %v318, 0.0
        %324 = vadd.xlane.f32.xlu0 %v323
        %v325 = vpop.xlane.xlu0 %324
        %v326 = vrcp.pop 32.0
        %v327 = vmul.f32 %v322, %v326
        %v328 = vmul.f32 %v325, %v326
        %v329 = vsub.f32 %v317, %v327
        %v330 = vsub.f32 %v318, %v328
        %v331 = vmul.f32 %v329, %v329
        %v332 = vmul.f32 %v330, %v330
        %v333 = vsel %vm319, %v331, 0.0
        %334 = vadd.xlane.f32.xlu0 %v333
        %v335 = vpop.xlane.xlu0 %334
        %v336 = vsel %vm319, %v332, 0.0
        %337 = vadd.xlane.f32.xlu0 %v336
        %v338 = vpop.xlane.xlu0 %337
        %v339 = vmul.f32 %v335, %v326
        %v340 = vmul.f32 %v338, %v326
        %v341 = vadd.f32 %v339, 1e-05
        %v342 = vadd.f32 %v340, 1e-05
        %v343 = vrsqrt.pop %v341
        %v344 = vrsqrt.pop %v342
        %v345 = vmul.f32 %v329, %v343
        %v346 = vmul.f32 %v330, %v344
        %v347 = vpack.c.bf16 %v346, %v345
        %v348 = vld [vmem:[#allocation7] sm:$0xf]
        %v349 = vld [vmem:[#allocation7 + $0x4] sm:$0xf]
        %v350 = vld [vmem:[#allocation7 + $0x8] sm:$0xf]
        %v351 = vld [vmem:[#allocation7 + $0xc] sm:$0xf]
        %v352 = vld [vmem:[%s3] sm:$0x1]
        %v354 = vlaneseq
        %v355 = vshrl.u32 %v354, 7
        %v356 = vsub.s32 0, %v355
        %v357 = vrot.slane %v352, %v356
        %v363 = vunpack.c.l.b16 %v348
        %v364 = vunpack.c.l.b16 %v349
        %v365 = vunpack.c.l.b16 %v350
        %v366 = vunpack.c.l.b16 %v351
        %v367 = vpack.c.b16 %v364, %v363
        %v368 = vpack.c.b16 %v366, %v365
        %v372 = vsel %vm319, %v347, 0
        %374 = vmatprep.subr.bf16.mxu0 0
        %375 = vmatpush1.bf16.msra.mxu0 0
        %376 = vmatprep.subr.bf16.mxu0 0
        %377 = vmatpush1.bf16.msra.mxu0 0
        %378 = vmatprep.subr.bf16.mxu0 0
        %379 = vmatpush1.bf16.msra.mxu0 0
        %380 = vmatprep.subr.bf16.mxu0 0
        %381 = vmatpush1.bf16.msra.mxu0 0
        %382 = vmatprep.subr.bf16.mxu0 0
        %383 = vmatpush1.bf16.msra.mxu0 0
        %384 = vmatprep.subr.bf16.mxu0 0
        %385 = vmatpush1.bf16.msra.mxu0 0
        %386 = vmatprep.subr.bf16.mxu0 0
        %387 = vmatpush1.bf16.msra.mxu0 %v368
        %388 = vmatprep.subr.bf16.mxu0 0
        %389 = vmatpush1.bf16.msra.mxu0 %v367
        %390 = vmatprep.subr.bf16.mxu0 0
        %391 = vmatpush2.bf16.msra.mxu0 0
        %392 = vmatprep.subr.bf16.mxu0 0
        %393 = vmatpush2.bf16.msra.mxu0 0
        %394 = vmatprep.subr.bf16.mxu0 0
        %395 = vmatpush2.bf16.msra.mxu0 0
        %396 = vmatprep.subr.bf16.mxu0 0
        %397 = vmatpush2.bf16.msra.mxu0 0
        %398 = vmatprep.subr.bf16.mxu0 0
        %399 = vmatpush2.bf16.msra.mxu0 0
        %400 = vmatprep.subr.bf16.mxu0 0
        %401 = vmatpush2.bf16.msra.mxu0 0
        %402 = vmatprep.subr.bf16.mxu0 0
        %403 = vmatpush2.bf16.msra.mxu0 0
        %404 = vmatprep.subr.bf16.mxu0 0
        %405 = vmatpush2.bf16.msra.mxu0 0
        %406 = vmatprep.mubr.bf16.mxu0 0
        %407 = vmatmul.mubr.bf16.gmra.mxu0 %v372
        %v408 = vpop.f32.mrf.mxu0
        %v409 = vadd.f32 %v357, %v408
        %v410 = vpop.f32.mrf.mxu0
        %v411 = vpop.f32.mrf.mxu0
        %v412 = vadd.f32 %v357, %v411
        %v413 = vpop.f32.mrf.mxu0
        %414 = vdwg.mxu0
        %v415 = vpack.c.bf16 %v412, %v409
        %v417 = vunpack.c.l.b16 %v415
        %v418 = vunpack.c.h.b16 %v415
        %v419 = vpack.c.b16 %v417, %v417
        %v420 = vpack.c.b16 %v418, %v418
        %v421 = vld [vmem:[#allocation5] sm:$0xf]
        %v422 = vld [vmem:[#allocation5 + $0x4] sm:$0xf]
        %v423 = vld [vmem:[#allocation5 + $0x8] sm:$0xf]
        %v424 = vld [vmem:[#allocation5 + $0xc] sm:$0xf]
        %425 = vrot.lane.b32.xlu0 %v419, 120
        %v426 = vpop.permute.xlu0 %425
        %427 = vrot.lane.b32.xlu0 %v419, 112
        %v428 = vpop.permute.xlu0 %427
        %429 = vrot.lane.b32.xlu0 %v419, 104
        %v430 = vpop.permute.xlu0 %429
        %v433 = vpack.i.b16 %v426, %v419
        %v434 = vshrl.u32 %v419, 16
        %v435 = vshrl.u32 %v426, 16
        %v436 = vpack.i.b16 %v435, %v434
        %v439 = vpack.i.b16 %v430, %v428
        %v440 = vshrl.u32 %v428, 16
        %v441 = vshrl.u32 %v430, 16
        %v442 = vpack.i.b16 %v441, %v440
        %v445 = vunpack.c.l.s4 1983009808
        %v446 = vunpack.c.0.s8 %v445
        %v447 = vlaneseq
        %v448 = vshrl.u32 %v447, 7
        %v449 = vsub.s32 %v446, %v448
        %v450 = vrot.slane %v433, %v449
        %v453 = vunpack.c.l.s4 1983009808
        %v454 = vunpack.c.0.s8 %v453
        %v455 = vlaneseq
        %v456 = vshrl.u32 %v455, 7
        %v457 = vsub.s32 %v454, %v456
        %v458 = vrot.slane %v439, %v457
        %v459 = vcombine.low %v450, %v458
        %v460 = vcombine.high %v450, %v458
        %v462 = vunpack.c.l.s4 1934713408
        %v463 = vunpack.c.0.s8 %v462
        %v464 = vlaneseq
        %v465 = vshrl.u32 %v464, 7
        %v466 = vsub.s32 %v463, %v465
        %v467 = vrot.slane %v459, %v466
        %v469 = vunpack.c.l.s4 1934713408
        %v470 = vunpack.c.0.s8 %v469
        %v471 = vlaneseq
        %v472 = vshrl.u32 %v471, 7
        %v473 = vsub.s32 %v470, %v472
        %v474 = vrot.slane %v460, %v473
        %v475 = vcombine.high %v467, 0
        %v476 = vcombine.high %v474, 0
        %v479 = vunpack.c.l.s4 1983009808
        %v480 = vunpack.c.0.s8 %v479
        %v481 = vlaneseq
        %v482 = vshrl.u32 %v481, 7
        %v483 = vsub.s32 %v480, %v482
        %v484 = vrot.slane %v436, %v483
        %v487 = vunpack.c.l.s4 1983009808
        %v488 = vunpack.c.0.s8 %v487
        %v489 = vlaneseq
        %v490 = vshrl.u32 %v489, 7
        %v491 = vsub.s32 %v488, %v490
        %v492 = vrot.slane %v442, %v491
        %v493 = vcombine.low %v484, %v492
        %v494 = vcombine.high %v484, %v492
        %v496 = vunpack.c.l.s4 1934713408
        %v497 = vunpack.c.0.s8 %v496
        %v498 = vlaneseq
        %v499 = vshrl.u32 %v498, 7
        %v500 = vsub.s32 %v497, %v499
        %v501 = vrot.slane %v493, %v500
        %v503 = vunpack.c.l.s4 1934713408
        %v504 = vunpack.c.0.s8 %v503
        %v505 = vlaneseq
        %v506 = vshrl.u32 %v505, 7
        %v507 = vsub.s32 %v504, %v506
        %v508 = vrot.slane %v494, %v507
        %v509 = vcombine.high %v501, 0
        %v510 = vcombine.high %v508, 0
        %v511 = vcombine.low %v467, %v474
        %v513 = vunpack.c.l.s4 1983009808
        %v514 = vunpack.c.0.s8 %v513
        %v515 = vlaneseq
        %v516 = vshrl.u32 %v515, 7
        %v517 = vsub.s32 %v514, %v516
        %v518 = vrot.slane %v511, %v517
        %v519 = vcombine.low %v475, %v476
        %v521 = vunpack.c.l.s4 1983009808
        %v522 = vunpack.c.0.s8 %v521
        %v523 = vlaneseq
        %v524 = vshrl.u32 %v523, 7
        %v525 = vsub.s32 %v522, %v524
        %v526 = vrot.slane %v519, %v525
        %v527 = vcombine.low %v518, %v526
        %v529 = vunpack.c.l.s4 1934713408
        %v530 = vunpack.c.0.s8 %v529
        %v531 = vlaneseq
        %v532 = vshrl.u32 %v531, 7
        %v533 = vsub.s32 %v530, %v532
        %v534 = vrot.slane %v527, %v533
        %v535 = vcombine.high %v534, 0
        %v536 = vcombine.low %v501, %v508
        %v538 = vunpack.c.l.s4 1983009808
        %v539 = vunpack.c.0.s8 %v538
        %v540 = vlaneseq
        %v541 = vshrl.u32 %v540, 7
        %v542 = vsub.s32 %v539, %v541
        %v543 = vrot.slane %v536, %v542
        %v544 = vcombine.low %v509, %v510
        %v546 = vunpack.c.l.s4 1983009808
        %v547 = vunpack.c.0.s8 %v546
        %v548 = vlaneseq
        %v549 = vshrl.u32 %v548, 7
        %v550 = vsub.s32 %v547, %v549
        %v551 = vrot.slane %v544, %v550
        %v552 = vcombine.low %v543, %v551
        %v554 = vunpack.c.l.s4 1934713408
        %v555 = vunpack.c.0.s8 %v554
        %v556 = vlaneseq
        %v557 = vshrl.u32 %v556, 7
        %v558 = vsub.s32 %v555, %v557
        %v559 = vrot.slane %v552, %v558
        %v560 = vcombine.high %v559, 0
        %v563 = vpack.i.b16 %v559, %v534
        %v564 = vshrl.u32 %v534, 16
        %v565 = vshrl.u32 %v559, 16
        %v566 = vpack.i.b16 %v565, %v564
        %v569 = vpack.i.b16 %v560, %v535
        %v570 = vshrl.u32 %v535, 16
        %v571 = vshrl.u32 %v560, 16
        %v572 = vpack.i.b16 %v571, %v570
        %573 = vrot.lane.b32.xlu0 %v419, 96
        %v574 = vpop.permute.xlu0 %573
        %575 = vrot.lane.b32.xlu0 %v426, 96
        %v576 = vpop.permute.xlu0 %575
        %577 = vrot.lane.b32.xlu0 %v428, 96
        %v578 = vpop.permute.xlu0 %577
        %579 = vrot.lane.b32.xlu0 %v430, 96
        %v580 = vpop.permute.xlu0 %579
        %v583 = vpack.i.b16 %v576, %v574
        %v584 = vshrl.u32 %v574, 16
        %v585 = vshrl.u32 %v576, 16
        %v586 = vpack.i.b16 %v585, %v584
        %v589 = vpack.i.b16 %v580, %v578
        %v590 = vshrl.u32 %v578, 16
        %v591 = vshrl.u32 %v580, 16
        %v592 = vpack.i.b16 %v591, %v590
        %v595 = vunpack.c.l.s4 1983009808
        %v596 = vunpack.c.0.s8 %v595
        %v597 = vlaneseq
        %v598 = vshrl.u32 %v597, 7
        %v599 = vsub.s32 %v596, %v598
        %v600 = vrot.slane %v583, %v599
        %v603 = vunpack.c.l.s4 1983009808
        %v604 = vunpack.c.0.s8 %v603
        %v605 = vlaneseq
        %v606 = vshrl.u32 %v605, 7
        %v607 = vsub.s32 %v604, %v606
        %v608 = vrot.slane %v589, %v607
        %v609 = vcombine.low %v600, %v608
        %v610 = vcombine.high %v600, %v608
        %v612 = vunpack.c.l.s4 1934713408
        %v613 = vunpack.c.0.s8 %v612
        %v614 = vlaneseq
        %v615 = vshrl.u32 %v614, 7
        %v616 = vsub.s32 %v613, %v615
        %v617 = vrot.slane %v609, %v616
        %v619 = vunpack.c.l.s4 1934713408
        %v620 = vunpack.c.0.s8 %v619
        %v621 = vlaneseq
        %v622 = vshrl.u32 %v621, 7
        %v623 = vsub.s32 %v620, %v622
        %v624 = vrot.slane %v610, %v623
        %v625 = vcombine.high %v617, 0
        %v626 = vcombine.high %v624, 0
        %v629 = vunpack.c.l.s4 1983009808
        %v630 = vunpack.c.0.s8 %v629
        %v631 = vlaneseq
        %v632 = vshrl.u32 %v631, 7
        %v633 = vsub.s32 %v630, %v632
        %v634 = vrot.slane %v586, %v633
        %v637 = vunpack.c.l.s4 1983009808
        %v638 = vunpack.c.0.s8 %v637
        %v639 = vlaneseq
        %v640 = vshrl.u32 %v639, 7
        %v641 = vsub.s32 %v638, %v640
        %v642 = vrot.slane %v592, %v641
        %v643 = vcombine.low %v634, %v642
        %v644 = vcombine.high %v634, %v642
        %v646 = vunpack.c.l.s4 1934713408
        %v647 = vunpack.c.0.s8 %v646
        %v648 = vlaneseq
        %v649 = vshrl.u32 %v648, 7
        %v650 = vsub.s32 %v647, %v649
        %v651 = vrot.slane %v643, %v650
        %v653 = vunpack.c.l.s4 1934713408
        %v654 = vunpack.c.0.s8 %v653
        %v655 = vlaneseq
        %v656 = vshrl.u32 %v655, 7
        %v657 = vsub.s32 %v654, %v656
        %v658 = vrot.slane %v644, %v657
        %v659 = vcombine.high %v651, 0
        %v660 = vcombine.high %v658, 0
        %v661 = vcombine.low %v617, %v624
        %v663 = vunpack.c.l.s4 1983009808
        %v664 = vunpack.c.0.s8 %v663
        %v665 = vlaneseq
        %v666 = vshrl.u32 %v665, 7
        %v667 = vsub.s32 %v664, %v666
        %v668 = vrot.slane %v661, %v667
        %v669 = vcombine.low %v625, %v626
        %v671 = vunpack.c.l.s4 1983009808
        %v672 = vunpack.c.0.s8 %v671
        %v673 = vlaneseq
        %v674 = vshrl.u32 %v673, 7
        %v675 = vsub.s32 %v672, %v674
        %v676 = vrot.slane %v669, %v675
        %v677 = vcombine.low %v668, %v676
        %v679 = vunpack.c.l.s4 1934713408
        %v680 = vunpack.c.0.s8 %v679
        %v681 = vlaneseq
        %v682 = vshrl.u32 %v681, 7
        %v683 = vsub.s32 %v680, %v682
        %v684 = vrot.slane %v677, %v683
        %v685 = vcombine.high %v684, 0
        %v686 = vcombine.low %v651, %v658
        %v688 = vunpack.c.l.s4 1983009808
        %v689 = vunpack.c.0.s8 %v688
        %v690 = vlaneseq
        %v691 = vshrl.u32 %v690, 7
        %v692 = vsub.s32 %v689, %v691
        %v693 = vrot.slane %v686, %v692
        %v694 = vcombine.low %v659, %v660
        %v696 = vunpack.c.l.s4 1983009808
        %v697 = vunpack.c.0.s8 %v696
        %v698 = vlaneseq
        %v699 = vshrl.u32 %v698, 7
        %v700 = vsub.s32 %v697, %v699
        %v701 = vrot.slane %v694, %v700
        %v702 = vcombine.low %v693, %v701
        %v704 = vunpack.c.l.s4 1934713408
        %v705 = vunpack.c.0.s8 %v704
        %v706 = vlaneseq
        %v707 = vshrl.u32 %v706, 7
        %v708 = vsub.s32 %v705, %v707
        %v709 = vrot.slane %v702, %v708
        %v710 = vcombine.high %v709, 0
        %v713 = vpack.i.b16 %v709, %v684
        %v714 = vshrl.u32 %v684, 16
        %v715 = vshrl.u32 %v709, 16
        %v716 = vpack.i.b16 %v715, %v714
        %v719 = vpack.i.b16 %v710, %v685
        %v720 = vshrl.u32 %v685, 16
        %v721 = vshrl.u32 %v710, 16
        %v722 = vpack.i.b16 %v721, %v720
        %vm723 = vcmask 64512
        %v725 = vsel %vm723, %v421, 0
        %v728 = vsel %vm723, %v563, 0
        %730 = vmatprep.subr.bf16.mxu0 0
        %731 = vmatpush1.bf16.xpose.msra.mxu0 0
        %732 = vmatprep.subr.bf16.mxu0 0
        %733 = vmatpush1.bf16.xpose.msra.mxu0 0
        %734 = vmatprep.subr.bf16.mxu0 0
        %735 = vmatpush1.bf16.xpose.msra.mxu0 0
        %736 = vmatprep.subr.bf16.mxu0 0
        %737 = vmatpush1.bf16.xpose.msra.mxu0 0
        %738 = vmatprep.subr.bf16.mxu0 0
        %739 = vmatpush1.bf16.xpose.msra.mxu0 0
        %740 = vmatprep.subr.bf16.mxu0 0
        %741 = vmatpush1.bf16.xpose.msra.mxu0 0
        %742 = vmatprep.subr.bf16.mxu0 0
        %743 = vmatpush1.bf16.xpose.msra.mxu0 0
        %744 = vmatprep.subr.bf16.mxu0 0
        %745 = vmatpush1.bf16.xpose.msra.mxu0 %v728
        %746 = vmatprep.subr.bf16.mxu0 0
        %747 = vmatpush2.bf16.xpose.msra.mxu0 0
        %748 = vmatprep.subr.bf16.mxu0 0
        %749 = vmatpush2.bf16.xpose.msra.mxu0 0
        %750 = vmatprep.subr.bf16.mxu0 0
        %751 = vmatpush2.bf16.xpose.msra.mxu0 0
        %752 = vmatprep.subr.bf16.mxu0 0
        %753 = vmatpush2.bf16.xpose.msra.mxu0 0
        %754 = vmatprep.subr.bf16.mxu0 0
        %755 = vmatpush2.bf16.xpose.msra.mxu0 0
        %756 = vmatprep.subr.bf16.mxu0 0
        %757 = vmatpush2.bf16.xpose.msra.mxu0 0
        %758 = vmatprep.subr.bf16.mxu0 0
        %759 = vmatpush2.bf16.xpose.msra.mxu0 0
        %760 = vmatprep.subr.bf16.mxu0 0
        %761 = vmatpush2.bf16.xpose.msra.mxu0 0
        %762 = vmatprep.mubr.bf16.mxu0 0
        %763 = vmatmul.mubr.bf16.gmra.mxu0 %v725
        %v764 = vpop.f32.mrf.mxu0
        %v765 = vadd.f32 0.0, %v764
        %v766 = vpop.f32.mrf.mxu0
        %v767 = vpop.f32.mrf.mxu0
        %v768 = vpop.f32.mrf.mxu0
        %769 = vdwg.mxu0
        %v771 = vsel %vm723, %v422, 0
        %v774 = vsel %vm723, %v566, 0
        %776 = vmatprep.subr.bf16.mxu0 0
        %777 = vmatpush1.bf16.xpose.msra.mxu0 0
        %778 = vmatprep.subr.bf16.mxu0 0
        %779 = vmatpush1.bf16.xpose.msra.mxu0 0
        %780 = vmatprep.subr.bf16.mxu0 0
        %781 = vmatpush1.bf16.xpose.msra.mxu0 0
        %782 = vmatprep.subr.bf16.mxu0 0
        %783 = vmatpush1.bf16.xpose.msra.mxu0 0
        %784 = vmatprep.subr.bf16.mxu0 0
        %785 = vmatpush1.bf16.xpose.msra.mxu0 0
        %786 = vmatprep.subr.bf16.mxu0 0
        %787 = vmatpush1.bf16.xpose.msra.mxu0 0
        %788 = vmatprep.subr.bf16.mxu0 0
        %789 = vmatpush1.bf16.xpose.msra.mxu0 0
        %790 = vmatprep.subr.bf16.mxu0 0
        %791 = vmatpush1.bf16.xpose.msra.mxu0 %v774
        %792 = vmatprep.subr.bf16.mxu0 0
        %793 = vmatpush2.bf16.xpose.msra.mxu0 0
        %794 = vmatprep.subr.bf16.mxu0 0
        %795 = vmatpush2.bf16.xpose.msra.mxu0 0
        %796 = vmatprep.subr.bf16.mxu0 0
        %797 = vmatpush2.bf16.xpose.msra.mxu0 0
        %798 = vmatprep.subr.bf16.mxu0 0
        %799 = vmatpush2.bf16.xpose.msra.mxu0 0
        %800 = vmatprep.subr.bf16.mxu0 0
        %801 = vmatpush2.bf16.xpose.msra.mxu0 0
        %802 = vmatprep.subr.bf16.mxu0 0
        %803 = vmatpush2.bf16.xpose.msra.mxu0 0
        %804 = vmatprep.subr.bf16.mxu0 0
        %805 = vmatpush2.bf16.xpose.msra.mxu0 0
        %806 = vmatprep.subr.bf16.mxu0 0
        %807 = vmatpush2.bf16.xpose.msra.mxu0 0
        %808 = vmatprep.mubr.bf16.mxu0 0
        %809 = vmatmul.mubr.bf16.gmra.mxu0 %v771
        %v810 = vpop.f32.mrf.mxu0
        %v811 = vadd.f32 0.0, %v810
        %v812 = vpop.f32.mrf.mxu0
        %v813 = vpop.f32.mrf.mxu0
        %v814 = vpop.f32.mrf.mxu0
        %815 = vdwg.mxu0
        %v817 = vsel %vm723, %v423, 0
        %v820 = vsel %vm723, %v569, 0
        %822 = vmatprep.subr.bf16.mxu0 0
        %823 = vmatpush1.bf16.xpose.msra.mxu0 0
        %824 = vmatprep.subr.bf16.mxu0 0
        %825 = vmatpush1.bf16.xpose.msra.mxu0 0
        %826 = vmatprep.subr.bf16.mxu0 0
        %827 = vmatpush1.bf16.xpose.msra.mxu0 0
        %828 = vmatprep.subr.bf16.mxu0 0
        %829 = vmatpush1.bf16.xpose.msra.mxu0 0
        %830 = vmatprep.subr.bf16.mxu0 0
        %831 = vmatpush1.bf16.xpose.msra.mxu0 0
        %832 = vmatprep.subr.bf16.mxu0 0
        %833 = vmatpush1.bf16.xpose.msra.mxu0 0
        %834 = vmatprep.subr.bf16.mxu0 0
        %835 = vmatpush1.bf16.xpose.msra.mxu0 0
        %836 = vmatprep.subr.bf16.mxu0 0
        %837 = vmatpush1.bf16.xpose.msra.mxu0 %v820
        %838 = vmatprep.subr.bf16.mxu0 0
        %839 = vmatpush2.bf16.xpose.msra.mxu0 0
        %840 = vmatprep.subr.bf16.mxu0 0
        %841 = vmatpush2.bf16.xpose.msra.mxu0 0
        %842 = vmatprep.subr.bf16.mxu0 0
        %843 = vmatpush2.bf16.xpose.msra.mxu0 0
        %844 = vmatprep.subr.bf16.mxu0 0
        %845 = vmatpush2.bf16.xpose.msra.mxu0 0
        %846 = vmatprep.subr.bf16.mxu0 0
        %847 = vmatpush2.bf16.xpose.msra.mxu0 0
        %848 = vmatprep.subr.bf16.mxu0 0
        %849 = vmatpush2.bf16.xpose.msra.mxu0 0
        %850 = vmatprep.subr.bf16.mxu0 0
        %851 = vmatpush2.bf16.xpose.msra.mxu0 0
        %852 = vmatprep.subr.bf16.mxu0 0
        %853 = vmatpush2.bf16.xpose.msra.mxu0 0
        %854 = vmatprep.mubr.bf16.mxu0 0
        %855 = vmatmul.mubr.bf16.gmra.mxu0 %v817
        %v856 = vpop.f32.mrf.mxu0
        %v857 = vadd.f32 0.0, %v856
        %v858 = vpop.f32.mrf.mxu0
        %v859 = vpop.f32.mrf.mxu0
        %v860 = vpop.f32.mrf.mxu0
        %861 = vdwg.mxu0
        %v863 = vsel %vm723, %v424, 0
        %v866 = vsel %vm723, %v572, 0
        %868 = vmatprep.subr.bf16.mxu0 0
        %869 = vmatpush1.bf16.xpose.msra.mxu0 0
        %870 = vmatprep.subr.bf16.mxu0 0
        %871 = vmatpush1.bf16.xpose.msra.mxu0 0
        %872 = vmatprep.subr.bf16.mxu0 0
        %873 = vmatpush1.bf16.xpose.msra.mxu0 0
        %874 = vmatprep.subr.bf16.mxu0 0
        %875 = vmatpush1.bf16.xpose.msra.mxu0 0
        %876 = vmatprep.subr.bf16.mxu0 0
        %877 = vmatpush1.bf16.xpose.msra.mxu0 0
        %878 = vmatprep.subr.bf16.mxu0 0
        %879 = vmatpush1.bf16.xpose.msra.mxu0 0
        %880 = vmatprep.subr.bf16.mxu0 0
        %881 = vmatpush1.bf16.xpose.msra.mxu0 0
        %882 = vmatprep.subr.bf16.mxu0 0
        %883 = vmatpush1.bf16.xpose.msra.mxu0 %v866
        %884 = vmatprep.subr.bf16.mxu0 0
        %885 = vmatpush2.bf16.xpose.msra.mxu0 0
        %886 = vmatprep.subr.bf16.mxu0 0
        %887 = vmatpush2.bf16.xpose.msra.mxu0 0
        %888 = vmatprep.subr.bf16.mxu0 0
        %889 = vmatpush2.bf16.xpose.msra.mxu0 0
        %890 = vmatprep.subr.bf16.mxu0 0
        %891 = vmatpush2.bf16.xpose.msra.mxu0 0
        %892 = vmatprep.subr.bf16.mxu0 0
        %893 = vmatpush2.bf16.xpose.msra.mxu0 0
        %894 = vmatprep.subr.bf16.mxu0 0
        %895 = vmatpush2.bf16.xpose.msra.mxu0 0
        %896 = vmatprep.subr.bf16.mxu0 0
        %897 = vmatpush2.bf16.xpose.msra.mxu0 0
        %898 = vmatprep.subr.bf16.mxu0 0
        %899 = vmatpush2.bf16.xpose.msra.mxu0 0
        %900 = vmatprep.mubr.bf16.mxu0 0
        %901 = vmatmul.mubr.bf16.gmra.mxu0 %v863
        %v902 = vpop.f32.mrf.mxu0
        %v903 = vadd.f32 0.0, %v902
        %v904 = vpop.f32.mrf.mxu0
        %v905 = vpop.f32.mrf.mxu0
        %v906 = vpop.f32.mrf.mxu0
        %907 = vdwg.mxu0
        %v908 = vsel %vm723, %v765, -inf
        %909 = vmax.xlane.f32.xlu0 %v908
        %v910 = vpop.xlane.xlu0 %909
        %v911 = vsel %vm723, %v811, -inf
        %912 = vmax.xlane.f32.xlu0 %v911
        %v913 = vpop.xlane.xlu0 %912
        %v914 = vsel %vm723, %v857, -inf
        %915 = vmax.xlane.f32.xlu0 %v914
        %v916 = vpop.xlane.xlu0 %915
        %v917 = vsel %vm723, %v903, -inf
        %918 = vmax.xlane.f32.xlu0 %v917
        %v919 = vpop.xlane.xlu0 %918
        %v920 = vsub.f32 %v765, %v910
        %v921 = vsub.f32 %v811, %v913
        %v922 = vsub.f32 %v857, %v916
        %v923 = vsub.f32 %v903, %v919
        %v924 = vmul.f32 %v920, 1.442695
        %v925 = vpow.pop %v924
        %v926 = vmul.f32 %v921, 1.442695
        %v927 = vpow.pop %v926
        %v928 = vmul.f32 %v922, 1.442695
        %v929 = vpow.pop %v928
        %v930 = vmul.f32 %v923, 1.442695
        %v931 = vpow.pop %v930
        %v932 = vsel %vm723, %v925, 0.0
        %933 = vadd.xlane.f32.xlu0 %v932
        %v934 = vpop.xlane.xlu0 %933
        %v935 = vsel %vm723, %v927, 0.0
        %936 = vadd.xlane.f32.xlu0 %v935
        %v937 = vpop.xlane.xlu0 %936
        %v938 = vsel %vm723, %v929, 0.0
        %939 = vadd.xlane.f32.xlu0 %v938
        %v940 = vpop.xlane.xlu0 %939
        %v941 = vsel %vm723, %v931, 0.0
        %942 = vadd.xlane.f32.xlu0 %v941
        %v943 = vpop.xlane.xlu0 %942
        %v944 = vrcp.pop %v934
        %v945 = vrcp.pop %v937
        %v946 = vrcp.pop %v940
        %v947 = vrcp.pop %v943
        %v948 = vmul.f32 %v925, %v944
        %v949 = vmul.f32 %v927, %v945
        %v950 = vmul.f32 %v929, %v946
        %v951 = vmul.f32 %v931, %v947
        %v952 = vpack.c.bf16 %v948, %v948
        %v953 = vpack.c.bf16 %v949, %v949
        %v954 = vpack.c.bf16 %v950, %v950
        %v955 = vpack.c.bf16 %v951, %v951
        %v957 = vsel %vm723, %v952, 0
        %vm959 = vcmask 1043456
        %v961 = vsel %vm959, %v713, 0
        %963 = vmatprep.subr.bf16.mxu0 0
        %964 = vmatpush1.bf16.msra.mxu0 0
        %965 = vmatprep.subr.bf16.mxu0 0
        %966 = vmatpush1.bf16.msra.mxu0 0
        %967 = vmatprep.subr.bf16.mxu0 0
        %968 = vmatpush1.bf16.msra.mxu0 0
        %969 = vmatprep.subr.bf16.mxu0 0
        %970 = vmatpush1.bf16.msra.mxu0 0
        %971 = vmatprep.subr.bf16.mxu0 0
        %972 = vmatpush1.bf16.msra.mxu0 0
        %973 = vmatprep.subr.bf16.mxu0 0
        %974 = vmatpush1.bf16.msra.mxu0 0
        %975 = vmatprep.subr.bf16.mxu0 0
        %976 = vmatpush1.bf16.msra.mxu0 0
        %977 = vmatprep.subr.bf16.mxu0 0
        %978 = vmatpush1.bf16.msra.mxu0 %v961
        %979 = vmatprep.subr.bf16.mxu0 0
        %980 = vmatpush2.bf16.msra.mxu0 0
        %981 = vmatprep.subr.bf16.mxu0 0
        %982 = vmatpush2.bf16.msra.mxu0 0
        %983 = vmatprep.subr.bf16.mxu0 0
        %984 = vmatpush2.bf16.msra.mxu0 0
        %985 = vmatprep.subr.bf16.mxu0 0
        %986 = vmatpush2.bf16.msra.mxu0 0
        %987 = vmatprep.subr.bf16.mxu0 0
        %988 = vmatpush2.bf16.msra.mxu0 0
        %989 = vmatprep.subr.bf16.mxu0 0
        %990 = vmatpush2.bf16.msra.mxu0 0
        %991 = vmatprep.subr.bf16.mxu0 0
        %992 = vmatpush2.bf16.msra.mxu0 0
        %993 = vmatprep.subr.bf16.mxu0 0
        %994 = vmatpush2.bf16.msra.mxu0 0
        %995 = vmatprep.mubr.bf16.mxu0 0
        %996 = vmatmul.mubr.bf16.gmra.mxu0 %v957
        %v997 = vpop.f32.mrf.mxu0
        %v998 = vadd.f32 0.0, %v997
        %v999 = vpop.f32.mrf.mxu0
        %v1000 = vpop.f32.mrf.mxu0
        %v1001 = vpop.f32.mrf.mxu0
        %1002 = vdwg.mxu0
        %v1004 = vsel %vm723, %v953, 0
        %v1007 = vsel %vm959, %v716, 0
        %1009 = vmatprep.subr.bf16.mxu0 0
        %1010 = vmatpush1.bf16.msra.mxu0 0
        %1011 = vmatprep.subr.bf16.mxu0 0
        %1012 = vmatpush1.bf16.msra.mxu0 0
        %1013 = vmatprep.subr.bf16.mxu0 0
        %1014 = vmatpush1.bf16.msra.mxu0 0
        %1015 = vmatprep.subr.bf16.mxu0 0
        %1016 = vmatpush1.bf16.msra.mxu0 0
        %1017 = vmatprep.subr.bf16.mxu0 0
        %1018 = vmatpush1.bf16.msra.mxu0 0
        %1019 = vmatprep.subr.bf16.mxu0 0
        %1020 = vmatpush1.bf16.msra.mxu0 0
        %1021 = vmatprep.subr.bf16.mxu0 0
        %1022 = vmatpush1.bf16.msra.mxu0 0
        %1023 = vmatprep.subr.bf16.mxu0 0
        %1024 = vmatpush1.bf16.msra.mxu0 %v1007
        %1025 = vmatprep.subr.bf16.mxu0 0
        %1026 = vmatpush2.bf16.msra.mxu0 0
        %1027 = vmatprep.subr.bf16.mxu0 0
        %1028 = vmatpush2.bf16.msra.mxu0 0
        %1029 = vmatprep.subr.bf16.mxu0 0
        %1030 = vmatpush2.bf16.msra.mxu0 0
        %1031 = vmatprep.subr.bf16.mxu0 0
        %1032 = vmatpush2.bf16.msra.mxu0 0
        %1033 = vmatprep.subr.bf16.mxu0 0
        %1034 = vmatpush2.bf16.msra.mxu0 0
        %1035 = vmatprep.subr.bf16.mxu0 0
        %1036 = vmatpush2.bf16.msra.mxu0 0
        %1037 = vmatprep.subr.bf16.mxu0 0
        %1038 = vmatpush2.bf16.msra.mxu0 0
        %1039 = vmatprep.subr.bf16.mxu0 0
        %1040 = vmatpush2.bf16.msra.mxu0 0
        %1041 = vmatprep.mubr.bf16.mxu0 0
        %1042 = vmatmul.mubr.bf16.gmra.mxu0 %v1004
        %v1043 = vpop.f32.mrf.mxu0
        %v1044 = vadd.f32 0.0, %v1043
        %v1045 = vpop.f32.mrf.mxu0
        %v1046 = vpop.f32.mrf.mxu0
        %v1047 = vpop.f32.mrf.mxu0
        %1048 = vdwg.mxu0
        %v1050 = vsel %vm723, %v954, 0
        %v1053 = vsel %vm959, %v719, 0
        %1055 = vmatprep.subr.bf16.mxu0 0
        %1056 = vmatpush1.bf16.msra.mxu0 0
        %1057 = vmatprep.subr.bf16.mxu0 0
        %1058 = vmatpush1.bf16.msra.mxu0 0
        %1059 = vmatprep.subr.bf16.mxu0 0
        %1060 = vmatpush1.bf16.msra.mxu0 0
        %1061 = vmatprep.subr.bf16.mxu0 0
        %1062 = vmatpush1.bf16.msra.mxu0 0
        %1063 = vmatprep.subr.bf16.mxu0 0
        %1064 = vmatpush1.bf16.msra.mxu0 0
        %1065 = vmatprep.subr.bf16.mxu0 0
        %1066 = vmatpush1.bf16.msra.mxu0 0
        %1067 = vmatprep.subr.bf16.mxu0 0
        %1068 = vmatpush1.bf16.msra.mxu0 0
        %1069 = vmatprep.subr.bf16.mxu0 0
        %1070 = vmatpush1.bf16.msra.mxu0 %v1053
        %1071 = vmatprep.subr.bf16.mxu0 0
        %1072 = vmatpush2.bf16.msra.mxu0 0
        %1073 = vmatprep.subr.bf16.mxu0 0
        %1074 = vmatpush2.bf16.msra.mxu0 0
        %1075 = vmatprep.subr.bf16.mxu0 0
        %1076 = vmatpush2.bf16.msra.mxu0 0
        %1077 = vmatprep.subr.bf16.mxu0 0
        %1078 = vmatpush2.bf16.msra.mxu0 0
        %1079 = vmatprep.subr.bf16.mxu0 0
        %1080 = vmatpush2.bf16.msra.mxu0 0
        %1081 = vmatprep.subr.bf16.mxu0 0
        %1082 = vmatpush2.bf16.msra.mxu0 0
        %1083 = vmatprep.subr.bf16.mxu0 0
        %1084 = vmatpush2.bf16.msra.mxu0 0
        %1085 = vmatprep.subr.bf16.mxu0 0
        %1086 = vmatpush2.bf16.msra.mxu0 0
        %1087 = vmatprep.mubr.bf16.mxu0 0
        %1088 = vmatmul.mubr.bf16.gmra.mxu0 %v1050
        %v1089 = vpop.f32.mrf.mxu0
        %v1090 = vadd.f32 0.0, %v1089
        %v1091 = vpop.f32.mrf.mxu0
        %v1092 = vpop.f32.mrf.mxu0
        %v1093 = vpop.f32.mrf.mxu0
        %1094 = vdwg.mxu0
        %v1096 = vsel %vm723, %v955, 0
        %v1099 = vsel %vm959, %v722, 0
        %1101 = vmatprep.subr.bf16.mxu0 0
        %1102 = vmatpush1.bf16.msra.mxu0 0
        %1103 = vmatprep.subr.bf16.mxu0 0
        %1104 = vmatpush1.bf16.msra.mxu0 0
        %1105 = vmatprep.subr.bf16.mxu0 0
        %1106 = vmatpush1.bf16.msra.mxu0 0
        %1107 = vmatprep.subr.bf16.mxu0 0
        %1108 = vmatpush1.bf16.msra.mxu0 0
        %1109 = vmatprep.subr.bf16.mxu0 0
        %1110 = vmatpush1.bf16.msra.mxu0 0
        %1111 = vmatprep.subr.bf16.mxu0 0
        %1112 = vmatpush1.bf16.msra.mxu0 0
        %1113 = vmatprep.subr.bf16.mxu0 0
        %1114 = vmatpush1.bf16.msra.mxu0 0
        %1115 = vmatprep.subr.bf16.mxu0 0
        %1116 = vmatpush1.bf16.msra.mxu0 %v1099
        %1117 = vmatprep.subr.bf16.mxu0 0
        %1118 = vmatpush2.bf16.msra.mxu0 0
        %1119 = vmatprep.subr.bf16.mxu0 0
        %1120 = vmatpush2.bf16.msra.mxu0 0
        %1121 = vmatprep.subr.bf16.mxu0 0
        %1122 = vmatpush2.bf16.msra.mxu0 0
        %1123 = vmatprep.subr.bf16.mxu0 0
        %1124 = vmatpush2.bf16.msra.mxu0 0
        %1125 = vmatprep.subr.bf16.mxu0 0
        %1126 = vmatpush2.bf16.msra.mxu0 0
        %1127 = vmatprep.subr.bf16.mxu0 0
        %1128 = vmatpush2.bf16.msra.mxu0 0
        %1129 = vmatprep.subr.bf16.mxu0 0
        %1130 = vmatpush2.bf16.msra.mxu0 0
        %1131 = vmatprep.subr.bf16.mxu0 0
        %1132 = vmatpush2.bf16.msra.mxu0 0
        %1133 = vmatprep.mubr.bf16.mxu0 0
        %1134 = vmatmul.mubr.bf16.gmra.mxu0 %v1096
        %v1135 = vpop.f32.mrf.mxu0
        %v1136 = vadd.f32 0.0, %v1135
        %v1137 = vpop.f32.mrf.mxu0
        %v1138 = vpop.f32.mrf.mxu0
        %v1139 = vpop.f32.mrf.mxu0
        %1140 = vdwg.mxu0
        %v1141 = vpack.c.bf16 %v998, %v998
        %v1143 = vunpack.c.l.s4 1983009808
        %v1144 = vunpack.c.0.s8 %v1143
        %v1145 = vlaneseq
        %v1146 = vshrl.u32 %v1145, 7
        %v1147 = vsub.s32 %v1144, %v1146
        %v1148 = vrot.slane %v1141, %v1147
        %v1149 = vpack.c.bf16 %v1090, %v1090
        %v1151 = vunpack.c.l.s4 1983009808
        %v1152 = vunpack.c.0.s8 %v1151
        %v1153 = vlaneseq
        %v1154 = vshrl.u32 %v1153, 7
        %v1155 = vsub.s32 %v1152, %v1154
        %v1156 = vrot.slane %v1149, %v1155
        %v1157 = vcombine.low %v1148, %v1156
        %v1158 = vcombine.high %v1148, %v1156
        %v1160 = vunpack.c.l.s4 1934713408
        %v1161 = vunpack.c.0.s8 %v1160
        %v1162 = vlaneseq
        %v1163 = vshrl.u32 %v1162, 7
        %v1164 = vsub.s32 %v1161, %v1163
        %v1165 = vrot.slane %v1157, %v1164
        %v1167 = vunpack.c.l.s4 1934713408
        %v1168 = vunpack.c.0.s8 %v1167
        %v1169 = vlaneseq
        %v1170 = vshrl.u32 %v1169, 7
        %v1171 = vsub.s32 %v1168, %v1170
        %v1172 = vrot.slane %v1158, %v1171
        %v1173 = vcombine.high %v1165, 0
        %v1174 = vcombine.high %v1172, 0
        %v1175 = vpack.c.bf16 %v1044, %v1044
        %v1177 = vunpack.c.l.s4 1983009808
        %v1178 = vunpack.c.0.s8 %v1177
        %v1179 = vlaneseq
        %v1180 = vshrl.u32 %v1179, 7
        %v1181 = vsub.s32 %v1178, %v1180
        %v1182 = vrot.slane %v1175, %v1181
        %v1183 = vpack.c.bf16 %v1136, %v1136
        %v1185 = vunpack.c.l.s4 1983009808
        %v1186 = vunpack.c.0.s8 %v1185
        %v1187 = vlaneseq
        %v1188 = vshrl.u32 %v1187, 7
        %v1189 = vsub.s32 %v1186, %v1188
        %v1190 = vrot.slane %v1183, %v1189
        %v1191 = vcombine.low %v1182, %v1190
        %v1192 = vcombine.high %v1182, %v1190
        %v1194 = vunpack.c.l.s4 1934713408
        %v1195 = vunpack.c.0.s8 %v1194
        %v1196 = vlaneseq
        %v1197 = vshrl.u32 %v1196, 7
        %v1198 = vsub.s32 %v1195, %v1197
        %v1199 = vrot.slane %v1191, %v1198
        %v1201 = vunpack.c.l.s4 1934713408
        %v1202 = vunpack.c.0.s8 %v1201
        %v1203 = vlaneseq
        %v1204 = vshrl.u32 %v1203, 7
        %v1205 = vsub.s32 %v1202, %v1204
        %v1206 = vrot.slane %v1192, %v1205
        %v1207 = vcombine.high %v1199, 0
        %v1208 = vcombine.high %v1206, 0
        %v1211 = vpack.i.b16 %v1199, %v1165
        %v1213 = vshrl.u32 %v1165, 16
        %v1214 = vshrl.u32 %v1199, 16
        %v1215 = vpack.i.b16 %v1214, %v1213
        %v1219 = vpack.i.b16 %v1207, %v1173
        %v1221 = vshrl.u32 %v1173, 16
        %v1222 = vshrl.u32 %v1207, 16
        %v1223 = vpack.i.b16 %v1222, %v1221
        %v1227 = vpack.i.b16 %v1206, %v1172
        %v1229 = vshrl.u32 %v1172, 16
        %v1230 = vshrl.u32 %v1206, 16
        %v1231 = vpack.i.b16 %v1230, %v1229
        %v1235 = vpack.i.b16 %v1208, %v1174
        %v1237 = vshrl.u32 %v1174, 16
        %v1238 = vshrl.u32 %v1208, 16
        %v1239 = vpack.i.b16 %v1238, %v1237
        %v1241 = vcombine.low %v1211, %v1227
        %v1243 = vunpack.c.l.s4 1983009808
        %v1244 = vunpack.c.0.s8 %v1243
        %v1245 = vlaneseq
        %v1246 = vshrl.u32 %v1245, 7
        %v1247 = vsub.s32 %v1244, %v1246
        %v1248 = vrot.slane %v1241, %v1247
        %v1249 = vcombine.low %v1219, %v1235
        %v1251 = vunpack.c.l.s4 1983009808
        %v1252 = vunpack.c.0.s8 %v1251
        %v1253 = vlaneseq
        %v1254 = vshrl.u32 %v1253, 7
        %v1255 = vsub.s32 %v1252, %v1254
        %v1256 = vrot.slane %v1249, %v1255
        %v1257 = vcombine.low %v1248, %v1256
        %v1259 = vunpack.c.l.s4 1934713408
        %v1260 = vunpack.c.0.s8 %v1259
        %v1261 = vlaneseq
        %v1262 = vshrl.u32 %v1261, 7
        %v1263 = vsub.s32 %v1260, %v1262
        %v1264 = vrot.slane %v1257, %v1263
        %v1265 = vcombine.high %v1264, 0
        %v1266 = vcombine.low %v1215, %v1231
        %v1268 = vunpack.c.l.s4 1983009808
        %v1269 = vunpack.c.0.s8 %v1268
        %v1270 = vlaneseq
        %v1271 = vshrl.u32 %v1270, 7
        %v1272 = vsub.s32 %v1269, %v1271
        %v1273 = vrot.slane %v1266, %v1272
        %v1274 = vcombine.low %v1223, %v1239
        %v1276 = vunpack.c.l.s4 1983009808
        %v1277 = vunpack.c.0.s8 %v1276
        %v1278 = vlaneseq
        %v1279 = vshrl.u32 %v1278, 7
        %v1280 = vsub.s32 %v1277, %v1279
        %v1281 = vrot.slane %v1274, %v1280
        %v1282 = vcombine.low %v1273, %v1281
        %v1284 = vunpack.c.l.s4 1934713408
        %v1285 = vunpack.c.0.s8 %v1284
        %v1286 = vlaneseq
        %v1287 = vshrl.u32 %v1286, 7
        %v1288 = vsub.s32 %v1285, %v1287
        %v1289 = vrot.slane %v1282, %v1288
        %v1290 = vcombine.high %v1289, 0
        %v1293 = vpack.i.b16 %v1289, %v1264
        %v1294 = vshrl.u32 %v1264, 16
        %v1295 = vshrl.u32 %v1289, 16
        %v1296 = vpack.i.b16 %v1295, %v1294
        %v1299 = vpack.i.b16 %v1290, %v1265
        %v1300 = vshrl.u32 %v1265, 16
        %v1301 = vshrl.u32 %v1290, 16
        %v1302 = vpack.i.b16 %v1301, %v1300
        %1303 = vrot.lane.b32.xlu0 %v1296, 8
        %v1304 = vpop.permute.xlu0 %1303
        %1305 = vrot.lane.b32.xlu0 %v1299, 16
        %v1306 = vpop.permute.xlu0 %1305
        %1307 = vrot.lane.b32.xlu0 %v1302, 24
        %v1308 = vpop.permute.xlu0 %1307
        %v1311 = vsel %vm723, %v1293, %v1304
        %vm1312 = vcmask 130048
        %v1314 = vsel %vm1312, %v1311, %v1306
        %vm1315 = vcmask 195584
        %v1317 = vsel %vm1315, %v1314, %v1308
        %1318 = vrot.lane.b32.xlu0 %v420, 120
        %v1319 = vpop.permute.xlu0 %1318
        %1320 = vrot.lane.b32.xlu0 %v420, 112
        %v1321 = vpop.permute.xlu0 %1320
        %1322 = vrot.lane.b32.xlu0 %v420, 104
        %v1323 = vpop.permute.xlu0 %1322
        %v1326 = vpack.i.b16 %v1319, %v420
        %v1327 = vshrl.u32 %v420, 16
        %v1328 = vshrl.u32 %v1319, 16
        %v1329 = vpack.i.b16 %v1328, %v1327
        %v1332 = vpack.i.b16 %v1323, %v1321
        %v1333 = vshrl.u32 %v1321, 16
        %v1334 = vshrl.u32 %v1323, 16
        %v1335 = vpack.i.b16 %v1334, %v1333
        %v1338 = vunpack.c.l.s4 1983009808
        %v1339 = vunpack.c.0.s8 %v1338
        %v1340 = vlaneseq
        %v1341 = vshrl.u32 %v1340, 7
        %v1342 = vsub.s32 %v1339, %v1341
        %v1343 = vrot.slane %v1326, %v1342
        %v1346 = vunpack.c.l.s4 1983009808
        %v1347 = vunpack.c.0.s8 %v1346
        %v1348 = vlaneseq
        %v1349 = vshrl.u32 %v1348, 7
        %v1350 = vsub.s32 %v1347, %v1349
        %v1351 = vrot.slane %v1332, %v1350
        %v1352 = vcombine.low %v1343, %v1351
        %v1353 = vcombine.high %v1343, %v1351
        %v1355 = vunpack.c.l.s4 1934713408
        %v1356 = vunpack.c.0.s8 %v1355
        %v1357 = vlaneseq
        %v1358 = vshrl.u32 %v1357, 7
        %v1359 = vsub.s32 %v1356, %v1358
        %v1360 = vrot.slane %v1352, %v1359
        %v1362 = vunpack.c.l.s4 1934713408
        %v1363 = vunpack.c.0.s8 %v1362
        %v1364 = vlaneseq
        %v1365 = vshrl.u32 %v1364, 7
        %v1366 = vsub.s32 %v1363, %v1365
        %v1367 = vrot.slane %v1353, %v1366
        %v1368 = vcombine.high %v1360, 0
        %v1369 = vcombine.high %v1367, 0
        %v1372 = vunpack.c.l.s4 1983009808
        %v1373 = vunpack.c.0.s8 %v1372
        %v1374 = vlaneseq
        %v1375 = vshrl.u32 %v1374, 7
        %v1376 = vsub.s32 %v1373, %v1375
        %v1377 = vrot.slane %v1329, %v1376
        %v1380 = vunpack.c.l.s4 1983009808
        %v1381 = vunpack.c.0.s8 %v1380
        %v1382 = vlaneseq
        %v1383 = vshrl.u32 %v1382, 7
        %v1384 = vsub.s32 %v1381, %v1383
        %v1385 = vrot.slane %v1335, %v1384
        %v1386 = vcombine.low %v1377, %v1385
        %v1387 = vcombine.high %v1377, %v1385
        %v1389 = vunpack.c.l.s4 1934713408
        %v1390 = vunpack.c.0.s8 %v1389
        %v1391 = vlaneseq
        %v1392 = vshrl.u32 %v1391, 7
        %v1393 = vsub.s32 %v1390, %v1392
        %v1394 = vrot.slane %v1386, %v1393
        %v1396 = vunpack.c.l.s4 1934713408
        %v1397 = vunpack.c.0.s8 %v1396
        %v1398 = vlaneseq
        %v1399 = vshrl.u32 %v1398, 7
        %v1400 = vsub.s32 %v1397, %v1399
        %v1401 = vrot.slane %v1387, %v1400
        %v1402 = vcombine.high %v1394, 0
        %v1403 = vcombine.high %v1401, 0
        %v1404 = vcombine.low %v1360, %v1367
        %v1406 = vunpack.c.l.s4 1983009808
        %v1407 = vunpack.c.0.s8 %v1406
        %v1408 = vlaneseq
        %v1409 = vshrl.u32 %v1408, 7
        %v1410 = vsub.s32 %v1407, %v1409
        %v1411 = vrot.slane %v1404, %v1410
        %v1412 = vcombine.low %v1368, %v1369
        %v1414 = vunpack.c.l.s4 1983009808
        %v1415 = vunpack.c.0.s8 %v1414
        %v1416 = vlaneseq
        %v1417 = vshrl.u32 %v1416, 7
        %v1418 = vsub.s32 %v1415, %v1417
        %v1419 = vrot.slane %v1412, %v1418
        %v1420 = vcombine.low %v1411, %v1419
        %v1422 = vunpack.c.l.s4 1934713408
        %v1423 = vunpack.c.0.s8 %v1422
        %v1424 = vlaneseq
        %v1425 = vshrl.u32 %v1424, 7
        %v1426 = vsub.s32 %v1423, %v1425
        %v1427 = vrot.slane %v1420, %v1426
        %v1428 = vcombine.high %v1427, 0
        %v1429 = vcombine.low %v1394, %v1401
        %v1431 = vunpack.c.l.s4 1983009808
        %v1432 = vunpack.c.0.s8 %v1431
        %v1433 = vlaneseq
        %v1434 = vshrl.u32 %v1433, 7
        %v1435 = vsub.s32 %v1432, %v1434
        %v1436 = vrot.slane %v1429, %v1435
        %v1437 = vcombine.low %v1402, %v1403
        %v1439 = vunpack.c.l.s4 1983009808
        %v1440 = vunpack.c.0.s8 %v1439
        %v1441 = vlaneseq
        %v1442 = vshrl.u32 %v1441, 7
        %v1443 = vsub.s32 %v1440, %v1442
        %v1444 = vrot.slane %v1437, %v1443
        %v1445 = vcombine.low %v1436, %v1444
        %v1447 = vunpack.c.l.s4 1934713408
        %v1448 = vunpack.c.0.s8 %v1447
        %v1449 = vlaneseq
        %v1450 = vshrl.u32 %v1449, 7
        %v1451 = vsub.s32 %v1448, %v1450
        %v1452 = vrot.slane %v1445, %v1451
        %v1453 = vcombine.high %v1452, 0
        %v1456 = vpack.i.b16 %v1452, %v1427
        %v1457 = vshrl.u32 %v1427, 16
        %v1458 = vshrl.u32 %v1452, 16
        %v1459 = vpack.i.b16 %v1458, %v1457
        %v1462 = vpack.i.b16 %v1453, %v1428
        %v1463 = vshrl.u32 %v1428, 16
        %v1464 = vshrl.u32 %v1453, 16
        %v1465 = vpack.i.b16 %v1464, %v1463
        %1466 = vrot.lane.b32.xlu0 %v420, 96
        %v1467 = vpop.permute.xlu0 %1466
        %1468 = vrot.lane.b32.xlu0 %v1319, 96
        %v1469 = vpop.permute.xlu0 %1468
        %1470 = vrot.lane.b32.xlu0 %v1321, 96
        %v1471 = vpop.permute.xlu0 %1470
        %1472 = vrot.lane.b32.xlu0 %v1323, 96
        %v1473 = vpop.permute.xlu0 %1472
        %v1476 = vpack.i.b16 %v1469, %v1467
        %v1477 = vshrl.u32 %v1467, 16
        %v1478 = vshrl.u32 %v1469, 16
        %v1479 = vpack.i.b16 %v1478, %v1477
        %v1482 = vpack.i.b16 %v1473, %v1471
        %v1483 = vshrl.u32 %v1471, 16
        %v1484 = vshrl.u32 %v1473, 16
        %v1485 = vpack.i.b16 %v1484, %v1483
        %v1488 = vunpack.c.l.s4 1983009808
        %v1489 = vunpack.c.0.s8 %v1488
        %v1490 = vlaneseq
        %v1491 = vshrl.u32 %v1490, 7
        %v1492 = vsub.s32 %v1489, %v1491
        %v1493 = vrot.slane %v1476, %v1492
        %v1496 = vunpack.c.l.s4 1983009808
        %v1497 = vunpack.c.0.s8 %v1496
        %v1498 = vlaneseq
        %v1499 = vshrl.u32 %v1498, 7
        %v1500 = vsub.s32 %v1497, %v1499
        %v1501 = vrot.slane %v1482, %v1500
        %v1502 = vcombine.low %v1493, %v1501
        %v1503 = vcombine.high %v1493, %v1501
        %v1505 = vunpack.c.l.s4 1934713408
        %v1506 = vunpack.c.0.s8 %v1505
        %v1507 = vlaneseq
        %v1508 = vshrl.u32 %v1507, 7
        %v1509 = vsub.s32 %v1506, %v1508
        %v1510 = vrot.slane %v1502, %v1509
        %v1512 = vunpack.c.l.s4 1934713408
        %v1513 = vunpack.c.0.s8 %v1512
        %v1514 = vlaneseq
        %v1515 = vshrl.u32 %v1514, 7
        %v1516 = vsub.s32 %v1513, %v1515
        %v1517 = vrot.slane %v1503, %v1516
        %v1518 = vcombine.high %v1510, 0
        %v1519 = vcombine.high %v1517, 0
        %v1522 = vunpack.c.l.s4 1983009808
        %v1523 = vunpack.c.0.s8 %v1522
        %v1524 = vlaneseq
        %v1525 = vshrl.u32 %v1524, 7
        %v1526 = vsub.s32 %v1523, %v1525
        %v1527 = vrot.slane %v1479, %v1526
        %v1530 = vunpack.c.l.s4 1983009808
        %v1531 = vunpack.c.0.s8 %v1530
        %v1532 = vlaneseq
        %v1533 = vshrl.u32 %v1532, 7
        %v1534 = vsub.s32 %v1531, %v1533
        %v1535 = vrot.slane %v1485, %v1534
        %v1536 = vcombine.low %v1527, %v1535
        %v1537 = vcombine.high %v1527, %v1535
        %v1539 = vunpack.c.l.s4 1934713408
        %v1540 = vunpack.c.0.s8 %v1539
        %v1541 = vlaneseq
        %v1542 = vshrl.u32 %v1541, 7
        %v1543 = vsub.s32 %v1540, %v1542
        %v1544 = vrot.slane %v1536, %v1543
        %v1546 = vunpack.c.l.s4 1934713408
        %v1547 = vunpack.c.0.s8 %v1546
        %v1548 = vlaneseq
        %v1549 = vshrl.u32 %v1548, 7
        %v1550 = vsub.s32 %v1547, %v1549
        %v1551 = vrot.slane %v1537, %v1550
        %v1552 = vcombine.high %v1544, 0
        %v1553 = vcombine.high %v1551, 0
        %v1554 = vcombine.low %v1510, %v1517
        %v1556 = vunpack.c.l.s4 1983009808
        %v1557 = vunpack.c.0.s8 %v1556
        %v1558 = vlaneseq
        %v1559 = vshrl.u32 %v1558, 7
        %v1560 = vsub.s32 %v1557, %v1559
        %v1561 = vrot.slane %v1554, %v1560
        %v1562 = vcombine.low %v1518, %v1519
        %v1564 = vunpack.c.l.s4 1983009808
        %v1565 = vunpack.c.0.s8 %v1564
        %v1566 = vlaneseq
        %v1567 = vshrl.u32 %v1566, 7
        %v1568 = vsub.s32 %v1565, %v1567
        %v1569 = vrot.slane %v1562, %v1568
        %v1570 = vcombine.low %v1561, %v1569
        %v1572 = vunpack.c.l.s4 1934713408
        %v1573 = vunpack.c.0.s8 %v1572
        %v1574 = vlaneseq
        %v1575 = vshrl.u32 %v1574, 7
        %v1576 = vsub.s32 %v1573, %v1575
        %v1577 = vrot.slane %v1570, %v1576
        %v1578 = vcombine.high %v1577, 0
        %v1579 = vcombine.low %v1544, %v1551
        %v1581 = vunpack.c.l.s4 1983009808
        %v1582 = vunpack.c.0.s8 %v1581
        %v1583 = vlaneseq
        %v1584 = vshrl.u32 %v1583, 7
        %v1585 = vsub.s32 %v1582, %v1584
        %v1586 = vrot.slane %v1579, %v1585
        %v1587 = vcombine.low %v1552, %v1553
        %v1589 = vunpack.c.l.s4 1983009808
        %v1590 = vunpack.c.0.s8 %v1589
        %v1591 = vlaneseq
        %v1592 = vshrl.u32 %v1591, 7
        %v1593 = vsub.s32 %v1590, %v1592
        %v1594 = vrot.slane %v1587, %v1593
        %v1595 = vcombine.low %v1586, %v1594
        %v1597 = vunpack.c.l.s4 1934713408
        %v1598 = vunpack.c.0.s8 %v1597
        %v1599 = vlaneseq
        %v1600 = vshrl.u32 %v1599, 7
        %v1601 = vsub.s32 %v1598, %v1600
        %v1602 = vrot.slane %v1595, %v1601
        %v1603 = vcombine.high %v1602, 0
        %v1606 = vpack.i.b16 %v1602, %v1577
        %v1607 = vshrl.u32 %v1577, 16
        %v1608 = vshrl.u32 %v1602, 16
        %v1609 = vpack.i.b16 %v1608, %v1607
        %v1612 = vpack.i.b16 %v1603, %v1578
        %v1613 = vshrl.u32 %v1578, 16
        %v1614 = vshrl.u32 %v1603, 16
        %v1615 = vpack.i.b16 %v1614, %v1613
        %v1617 = vsel %vm723, %v1456, 0
        %1619 = vmatprep.subr.bf16.mxu0 0
        %1620 = vmatpush1.bf16.xpose.msra.mxu0 0
        %1621 = vmatprep.subr.bf16.mxu0 0
        %1622 = vmatpush1.bf16.xpose.msra.mxu0 0
        %1623 = vmatprep.subr.bf16.mxu0 0
        %1624 = vmatpush1.bf16.xpose.msra.mxu0 0
        %1625 = vmatprep.subr.bf16.mxu0 0
        %1626 = vmatpush1.bf16.xpose.msra.mxu0 0
        %1627 = vmatprep.subr.bf16.mxu0 0
        %1628 = vmatpush1.bf16.xpose.msra.mxu0 0
        %1629 = vmatprep.subr.bf16.mxu0 0
        %1630 = vmatpush1.bf16.xpose.msra.mxu0 0
        %1631 = vmatprep.subr.bf16.mxu0 0
        %1632 = vmatpush1.bf16.xpose.msra.mxu0 0
        %1633 = vmatprep.subr.bf16.mxu0 0
        %1634 = vmatpush1.bf16.xpose.msra.mxu0 %v1617
        %1635 = vmatprep.subr.bf16.mxu0 0
        %1636 = vmatpush2.bf16.xpose.msra.mxu0 0
        %1637 = vmatprep.subr.bf16.mxu0 0
        %1638 = vmatpush2.bf16.xpose.msra.mxu0 0
        %1639 = vmatprep.subr.bf16.mxu0 0
        %1640 = vmatpush2.bf16.xpose.msra.mxu0 0
        %1641 = vmatprep.subr.bf16.mxu0 0
        %1642 = vmatpush2.bf16.xpose.msra.mxu0 0
        %1643 = vmatprep.subr.bf16.mxu0 0
        %1644 = vmatpush2.bf16.xpose.msra.mxu0 0
        %1645 = vmatprep.subr.bf16.mxu0 0
        %1646 = vmatpush2.bf16.xpose.msra.mxu0 0
        %1647 = vmatprep.subr.bf16.mxu0 0
        %1648 = vmatpush2.bf16.xpose.msra.mxu0 0
        %1649 = vmatprep.subr.bf16.mxu0 0
        %1650 = vmatpush2.bf16.xpose.msra.mxu0 0
        %1651 = vmatprep.mubr.bf16.mxu0 0
        %1652 = vmatmul.mubr.bf16.gmra.mxu0 %v725
        %v1653 = vpop.f32.mrf.mxu0
        %v1654 = vadd.f32 0.0, %v1653
        %v1655 = vpop.f32.mrf.mxu0
        %v1656 = vpop.f32.mrf.mxu0
        %v1657 = vpop.f32.mrf.mxu0
        %1658 = vdwg.mxu0
        %v1660 = vsel %vm723, %v1459, 0
        %1662 = vmatprep.subr.bf16.mxu0 0
        %1663 = vmatpush1.bf16.xpose.msra.mxu0 0
        %1664 = vmatprep.subr.bf16.mxu0 0
        %1665 = vmatpush1.bf16.xpose.msra.mxu0 0
        %1666 = vmatprep.subr.bf16.mxu0 0
        %1667 = vmatpush1.bf16.xpose.msra.mxu0 0
        %1668 = vmatprep.subr.bf16.mxu0 0
        %1669 = vmatpush1.bf16.xpose.msra.mxu0 0
        %1670 = vmatprep.subr.bf16.mxu0 0
        %1671 = vmatpush1.bf16.xpose.msra.mxu0 0
        %1672 = vmatprep.subr.bf16.mxu0 0
        %1673 = vmatpush1.bf16.xpose.msra.mxu0 0
        %1674 = vmatprep.subr.bf16.mxu0 0
        %1675 = vmatpush1.bf16.xpose.msra.mxu0 0
        %1676 = vmatprep.subr.bf16.mxu0 0
        %1677 = vmatpush1.bf16.xpose.msra.mxu0 %v1660
        %1678 = vmatprep.subr.bf16.mxu0 0
        %1679 = vmatpush2.bf16.xpose.msra.mxu0 0
        %1680 = vmatprep.subr.bf16.mxu0 0
        %1681 = vmatpush2.bf16.xpose.msra.mxu0 0
        %1682 = vmatprep.subr.bf16.mxu0 0
        %1683 = vmatpush2.bf16.xpose.msra.mxu0 0
        %1684 = vmatprep.subr.bf16.mxu0 0
        %1685 = vmatpush2.bf16.xpose.msra.mxu0 0
        %1686 = vmatprep.subr.bf16.mxu0 0
        %1687 = vmatpush2.bf16.xpose.msra.mxu0 0
        %1688 = vmatprep.subr.bf16.mxu0 0
        %1689 = vmatpush2.bf16.xpose.msra.mxu0 0
        %1690 = vmatprep.subr.bf16.mxu0 0
        %1691 = vmatpush2.bf16.xpose.msra.mxu0 0
        %1692 = vmatprep.subr.bf16.mxu0 0
        %1693 = vmatpush2.bf16.xpose.msra.mxu0 0
        %1694 = vmatprep.mubr.bf16.mxu0 0
        %1695 = vmatmul.mubr.bf16.gmra.mxu0 %v771
        %v1696 = vpop.f32.mrf.mxu0
        %v1697 = vadd.f32 0.0, %v1696
        %v1698 = vpop.f32.mrf.mxu0
        %v1699 = vpop.f32.mrf.mxu0
        %v1700 = vpop.f32.mrf.mxu0
        %1701 = vdwg.mxu0
        %v1703 = vsel %vm723, %v1462, 0
        %1705 = vmatprep.subr.bf16.mxu0 0
        %1706 = vmatpush1.bf16.xpose.msra.mxu0 0
        %1707 = vmatprep.subr.bf16.mxu0 0
        %1708 = vmatpush1.bf16.xpose.msra.mxu0 0
        %1709 = vmatprep.subr.bf16.mxu0 0
        %1710 = vmatpush1.bf16.xpose.msra.mxu0 0
        %1711 = vmatprep.subr.bf16.mxu0 0
        %1712 = vmatpush1.bf16.xpose.msra.mxu0 0
        %1713 = vmatprep.subr.bf16.mxu0 0
        %1714 = vmatpush1.bf16.xpose.msra.mxu0 0
        %1715 = vmatprep.subr.bf16.mxu0 0
        %1716 = vmatpush1.bf16.xpose.msra.mxu0 0
        %1717 = vmatprep.subr.bf16.mxu0 0
        %1718 = vmatpush1.bf16.xpose.msra.mxu0 0
        %1719 = vmatprep.subr.bf16.mxu0 0
        %1720 = vmatpush1.bf16.xpose.msra.mxu0 %v1703
        %1721 = vmatprep.subr.bf16.mxu0 0
        %1722 = vmatpush2.bf16.xpose.msra.mxu0 0
        %1723 = vmatprep.subr.bf16.mxu0 0
        %1724 = vmatpush2.bf16.xpose.msra.mxu0 0
        %1725 = vmatprep.subr.bf16.mxu0 0
        %1726 = vmatpush2.bf16.xpose.msra.mxu0 0
        %1727 = vmatprep.subr.bf16.mxu0 0
        %1728 = vmatpush2.bf16.xpose.msra.mxu0 0
        %1729 = vmatprep.subr.bf16.mxu0 0
        %1730 = vmatpush2.bf16.xpose.msra.mxu0 0
        %1731 = vmatprep.subr.bf16.mxu0 0
        %1732 = vmatpush2.bf16.xpose.msra.mxu0 0
        %1733 = vmatprep.subr.bf16.mxu0 0
        %1734 = vmatpush2.bf16.xpose.msra.mxu0 0
        %1735 = vmatprep.subr.bf16.mxu0 0
        %1736 = vmatpush2.bf16.xpose.msra.mxu0 0
        %1737 = vmatprep.mubr.bf16.mxu0 0
        %1738 = vmatmul.mubr.bf16.gmra.mxu0 %v817
        %v1739 = vpop.f32.mrf.mxu0
        %v1740 = vadd.f32 0.0, %v1739
        %v1741 = vpop.f32.mrf.mxu0
        %v1742 = vpop.f32.mrf.mxu0
        %v1743 = vpop.f32.mrf.mxu0
        %1744 = vdwg.mxu0
        %v1746 = vsel %vm723, %v1465, 0
        %1748 = vmatprep.subr.bf16.mxu0 0
        %1749 = vmatpush1.bf16.xpose.msra.mxu0 0
        %1750 = vmatprep.subr.bf16.mxu0 0
        %1751 = vmatpush1.bf16.xpose.msra.mxu0 0
        %1752 = vmatprep.subr.bf16.mxu0 0
        %1753 = vmatpush1.bf16.xpose.msra.mxu0 0
        %1754 = vmatprep.subr.bf16.mxu0 0
        %1755 = vmatpush1.bf16.xpose.msra.mxu0 0
        %1756 = vmatprep.subr.bf16.mxu0 0
        %1757 = vmatpush1.bf16.xpose.msra.mxu0 0
        %1758 = vmatprep.subr.bf16.mxu0 0
        %1759 = vmatpush1.bf16.xpose.msra.mxu0 0
        %1760 = vmatprep.subr.bf16.mxu0 0
        %1761 = vmatpush1.bf16.xpose.msra.mxu0 0
        %1762 = vmatprep.subr.bf16.mxu0 0
        %1763 = vmatpush1.bf16.xpose.msra.mxu0 %v1746
        %1764 = vmatprep.subr.bf16.mxu0 0
        %1765 = vmatpush2.bf16.xpose.msra.mxu0 0
        %1766 = vmatprep.subr.bf16.mxu0 0
        %1767 = vmatpush2.bf16.xpose.msra.mxu0 0
        %1768 = vmatprep.subr.bf16.mxu0 0
        %1769 = vmatpush2.bf16.xpose.msra.mxu0 0
        %1770 = vmatprep.subr.bf16.mxu0 0
        %1771 = vmatpush2.bf16.xpose.msra.mxu0 0
        %1772 = vmatprep.subr.bf16.mxu0 0
        %1773 = vmatpush2.bf16.xpose.msra.mxu0 0
        %1774 = vmatprep.subr.bf16.mxu0 0
        %1775 = vmatpush2.bf16.xpose.msra.mxu0 0
        %1776 = vmatprep.subr.bf16.mxu0 0
        %1777 = vmatpush2.bf16.xpose.msra.mxu0 0
        %1778 = vmatprep.subr.bf16.mxu0 0
        %1779 = vmatpush2.bf16.xpose.msra.mxu0 0
        %1780 = vmatprep.mubr.bf16.mxu0 0
        %1781 = vmatmul.mubr.bf16.gmra.mxu0 %v863
        %v1782 = vpop.f32.mrf.mxu0
        %v1783 = vadd.f32 0.0, %v1782
        %v1784 = vpop.f32.mrf.mxu0
        %v1785 = vpop.f32.mrf.mxu0
        %v1786 = vpop.f32.mrf.mxu0
        %1787 = vdwg.mxu0
        %v1788 = vsel %vm723, %v1654, -inf
        %1789 = vmax.xlane.f32.xlu0 %v1788
        %v1790 = vpop.xlane.xlu0 %1789
        %v1791 = vsel %vm723, %v1697, -inf
        %1792 = vmax.xlane.f32.xlu0 %v1791
        %v1793 = vpop.xlane.xlu0 %1792
        %v1794 = vsel %vm723, %v1740, -inf
        %1795 = vmax.xlane.f32.xlu0 %v1794
        %v1796 = vpop.xlane.xlu0 %1795
        %v1797 = vsel %vm723, %v1783, -inf
        %1798 = vmax.xlane.f32.xlu0 %v1797
        %v1799 = vpop.xlane.xlu0 %1798
        %v1800 = vsub.f32 %v1654, %v1790
        %v1801 = vsub.f32 %v1697, %v1793
        %v1802 = vsub.f32 %v1740, %v1796
        %v1803 = vsub.f32 %v1783, %v1799
        %v1804 = vmul.f32 %v1800, 1.442695
        %v1805 = vpow.pop %v1804
        %v1806 = vmul.f32 %v1801, 1.442695
        %v1807 = vpow.pop %v1806
        %v1808 = vmul.f32 %v1802, 1.442695
        %v1809 = vpow.pop %v1808
        %v1810 = vmul.f32 %v1803, 1.442695
        %v1811 = vpow.pop %v1810
        %v1812 = vsel %vm723, %v1805, 0.0
        %1813 = vadd.xlane.f32.xlu0 %v1812
        %v1814 = vpop.xlane.xlu0 %1813
        %v1815 = vsel %vm723, %v1807, 0.0
        %1816 = vadd.xlane.f32.xlu0 %v1815
        %v1817 = vpop.xlane.xlu0 %1816
        %v1818 = vsel %vm723, %v1809, 0.0
        %1819 = vadd.xlane.f32.xlu0 %v1818
        %v1820 = vpop.xlane.xlu0 %1819
        %v1821 = vsel %vm723, %v1811, 0.0
        %1822 = vadd.xlane.f32.xlu0 %v1821
        %v1823 = vpop.xlane.xlu0 %1822
        %v1824 = vrcp.pop %v1814
        %v1825 = vrcp.pop %v1817
        %v1826 = vrcp.pop %v1820
        %v1827 = vrcp.pop %v1823
        %v1828 = vmul.f32 %v1805, %v1824
        %v1829 = vmul.f32 %v1807, %v1825
        %v1830 = vmul.f32 %v1809, %v1826
        %v1831 = vmul.f32 %v1811, %v1827
        %v1832 = vpack.c.bf16 %v1828, %v1828
        %v1833 = vpack.c.bf16 %v1829, %v1829
        %v1834 = vpack.c.bf16 %v1830, %v1830
        %v1835 = vpack.c.bf16 %v1831, %v1831
        %v1837 = vsel %vm723, %v1832, 0
        %v1840 = vsel %vm959, %v1606, 0
        %1842 = vmatprep.subr.bf16.mxu0 0
        %1843 = vmatpush1.bf16.msra.mxu0 0
        %1844 = vmatprep.subr.bf16.mxu0 0
        %1845 = vmatpush1.bf16.msra.mxu0 0
        %1846 = vmatprep.subr.bf16.mxu0 0
        %1847 = vmatpush1.bf16.msra.mxu0 0
        %1848 = vmatprep.subr.bf16.mxu0 0
        %1849 = vmatpush1.bf16.msra.mxu0 0
        %1850 = vmatprep.subr.bf16.mxu0 0
        %1851 = vmatpush1.bf16.msra.mxu0 0
        %1852 = vmatprep.subr.bf16.mxu0 0
        %1853 = vmatpush1.bf16.msra.mxu0 0
        %1854 = vmatprep.subr.bf16.mxu0 0
        %1855 = vmatpush1.bf16.msra.mxu0 0
        %1856 = vmatprep.subr.bf16.mxu0 0
        %1857 = vmatpush1.bf16.msra.mxu0 %v1840
        %1858 = vmatprep.subr.bf16.mxu0 0
        %1859 = vmatpush2.bf16.msra.mxu0 0
        %1860 = vmatprep.subr.bf16.mxu0 0
        %1861 = vmatpush2.bf16.msra.mxu0 0
        %1862 = vmatprep.subr.bf16.mxu0 0
        %1863 = vmatpush2.bf16.msra.mxu0 0
        %1864 = vmatprep.subr.bf16.mxu0 0
        %1865 = vmatpush2.bf16.msra.mxu0 0
        %1866 = vmatprep.subr.bf16.mxu0 0
        %1867 = vmatpush2.bf16.msra.mxu0 0
        %1868 = vmatprep.subr.bf16.mxu0 0
        %1869 = vmatpush2.bf16.msra.mxu0 0
        %1870 = vmatprep.subr.bf16.mxu0 0
        %1871 = vmatpush2.bf16.msra.mxu0 0
        %1872 = vmatprep.subr.bf16.mxu0 0
        %1873 = vmatpush2.bf16.msra.mxu0 0
        %1874 = vmatprep.mubr.bf16.mxu0 0
        %1875 = vmatmul.mubr.bf16.gmra.mxu0 %v1837
        %v1876 = vpop.f32.mrf.mxu0
        %v1877 = vadd.f32 0.0, %v1876
        %v1878 = vpop.f32.mrf.mxu0
        %v1879 = vpop.f32.mrf.mxu0
        %v1880 = vpop.f32.mrf.mxu0
        %1881 = vdwg.mxu0
        %v1883 = vsel %vm723, %v1833, 0
        %v1886 = vsel %vm959, %v1609, 0
        %1888 = vmatprep.subr.bf16.mxu0 0
        %1889 = vmatpush1.bf16.msra.mxu0 0
        %1890 = vmatprep.subr.bf16.mxu0 0
        %1891 = vmatpush1.bf16.msra.mxu0 0
        %1892 = vmatprep.subr.bf16.mxu0 0
        %1893 = vmatpush1.bf16.msra.mxu0 0
        %1894 = vmatprep.subr.bf16.mxu0 0
        %1895 = vmatpush1.bf16.msra.mxu0 0
        %1896 = vmatprep.subr.bf16.mxu0 0
        %1897 = vmatpush1.bf16.msra.mxu0 0
        %1898 = vmatprep.subr.bf16.mxu0 0
        %1899 = vmatpush1.bf16.msra.mxu0 0
        %1900 = vmatprep.subr.bf16.mxu0 0
        %1901 = vmatpush1.bf16.msra.mxu0 0
        %1902 = vmatprep.subr.bf16.mxu0 0
        %1903 = vmatpush1.bf16.msra.mxu0 %v1886
        %1904 = vmatprep.subr.bf16.mxu0 0
        %1905 = vmatpush2.bf16.msra.mxu0 0
        %1906 = vmatprep.subr.bf16.mxu0 0
        %1907 = vmatpush2.bf16.msra.mxu0 0
        %1908 = vmatprep.subr.bf16.mxu0 0
        %1909 = vmatpush2.bf16.msra.mxu0 0
        %1910 = vmatprep.subr.bf16.mxu0 0
        %1911 = vmatpush2.bf16.msra.mxu0 0
        %1912 = vmatprep.subr.bf16.mxu0 0
        %1913 = vmatpush2.bf16.msra.mxu0 0
        %1914 = vmatprep.subr.bf16.mxu0 0
        %1915 = vmatpush2.bf16.msra.mxu0 0
        %1916 = vmatprep.subr.bf16.mxu0 0
        %1917 = vmatpush2.bf16.msra.mxu0 0
        %1918 = vmatprep.subr.bf16.mxu0 0
        %1919 = vmatpush2.bf16.msra.mxu0 0
        %1920 = vmatprep.mubr.bf16.mxu0 0
        %1921 = vmatmul.mubr.bf16.gmra.mxu0 %v1883
        %v1922 = vpop.f32.mrf.mxu0
        %v1923 = vadd.f32 0.0, %v1922
        %v1924 = vpop.f32.mrf.mxu0
        %v1925 = vpop.f32.mrf.mxu0
        %v1926 = vpop.f32.mrf.mxu0
        %1927 = vdwg.mxu0
        %v1929 = vsel %vm723, %v1834, 0
        %v1932 = vsel %vm959, %v1612, 0
        %1934 = vmatprep.subr.bf16.mxu0 0
        %1935 = vmatpush1.bf16.msra.mxu0 0
        %1936 = vmatprep.subr.bf16.mxu0 0
        %1937 = vmatpush1.bf16.msra.mxu0 0
        %1938 = vmatprep.subr.bf16.mxu0 0
        %1939 = vmatpush1.bf16.msra.mxu0 0
        %1940 = vmatprep.subr.bf16.mxu0 0
        %1941 = vmatpush1.bf16.msra.mxu0 0
        %1942 = vmatprep.subr.bf16.mxu0 0
        %1943 = vmatpush1.bf16.msra.mxu0 0
        %1944 = vmatprep.subr.bf16.mxu0 0
        %1945 = vmatpush1.bf16.msra.mxu0 0
        %1946 = vmatprep.subr.bf16.mxu0 0
        %1947 = vmatpush1.bf16.msra.mxu0 0
        %1948 = vmatprep.subr.bf16.mxu0 0
        %1949 = vmatpush1.bf16.msra.mxu0 %v1932
        %1950 = vmatprep.subr.bf16.mxu0 0
        %1951 = vmatpush2.bf16.msra.mxu0 0
        %1952 = vmatprep.subr.bf16.mxu0 0
        %1953 = vmatpush2.bf16.msra.mxu0 0
        %1954 = vmatprep.subr.bf16.mxu0 0
        %1955 = vmatpush2.bf16.msra.mxu0 0
        %1956 = vmatprep.subr.bf16.mxu0 0
        %1957 = vmatpush2.bf16.msra.mxu0 0
        %1958 = vmatprep.subr.bf16.mxu0 0
        %1959 = vmatpush2.bf16.msra.mxu0 0
        %1960 = vmatprep.subr.bf16.mxu0 0
        %1961 = vmatpush2.bf16.msra.mxu0 0
        %1962 = vmatprep.subr.bf16.mxu0 0
        %1963 = vmatpush2.bf16.msra.mxu0 0
        %1964 = vmatprep.subr.bf16.mxu0 0
        %1965 = vmatpush2.bf16.msra.mxu0 0
        %1966 = vmatprep.mubr.bf16.mxu0 0
        %1967 = vmatmul.mubr.bf16.gmra.mxu0 %v1929
        %v1968 = vpop.f32.mrf.mxu0
        %v1969 = vadd.f32 0.0, %v1968
        %v1970 = vpop.f32.mrf.mxu0
        %v1971 = vpop.f32.mrf.mxu0
        %v1972 = vpop.f32.mrf.mxu0
        %1973 = vdwg.mxu0
        %v1975 = vsel %vm723, %v1835, 0
        %v1978 = vsel %vm959, %v1615, 0
        %1980 = vmatprep.subr.bf16.mxu0 0
        %1981 = vmatpush1.bf16.msra.mxu0 0
        %1982 = vmatprep.subr.bf16.mxu0 0
        %1983 = vmatpush1.bf16.msra.mxu0 0
        %1984 = vmatprep.subr.bf16.mxu0 0
        %1985 = vmatpush1.bf16.msra.mxu0 0
        %1986 = vmatprep.subr.bf16.mxu0 0
        %1987 = vmatpush1.bf16.msra.mxu0 0
        %1988 = vmatprep.subr.bf16.mxu0 0
        %1989 = vmatpush1.bf16.msra.mxu0 0
        %1990 = vmatprep.subr.bf16.mxu0 0
        %1991 = vmatpush1.bf16.msra.mxu0 0
        %1992 = vmatprep.subr.bf16.mxu0 0
        %1993 = vmatpush1.bf16.msra.mxu0 0
        %1994 = vmatprep.subr.bf16.mxu0 0
        %1995 = vmatpush1.bf16.msra.mxu0 %v1978
        %1996 = vmatprep.subr.bf16.mxu0 0
        %1997 = vmatpush2.bf16.msra.mxu0 0
        %1998 = vmatprep.subr.bf16.mxu0 0
        %1999 = vmatpush2.bf16.msra.mxu0 0
        %2000 = vmatprep.subr.bf16.mxu0 0
        %2001 = vmatpush2.bf16.msra.mxu0 0
        %2002 = vmatprep.subr.bf16.mxu0 0
        %2003 = vmatpush2.bf16.msra.mxu0 0
        %2004 = vmatprep.subr.bf16.mxu0 0
        %2005 = vmatpush2.bf16.msra.mxu0 0
        %2006 = vmatprep.subr.bf16.mxu0 0
        %2007 = vmatpush2.bf16.msra.mxu0 0
        %2008 = vmatprep.subr.bf16.mxu0 0
        %2009 = vmatpush2.bf16.msra.mxu0 0
        %2010 = vmatprep.subr.bf16.mxu0 0
        %2011 = vmatpush2.bf16.msra.mxu0 0
        %2012 = vmatprep.mubr.bf16.mxu0 0
        %2013 = vmatmul.mubr.bf16.gmra.mxu0 %v1975
        %v2014 = vpop.f32.mrf.mxu0
        %v2015 = vadd.f32 0.0, %v2014
        %v2016 = vpop.f32.mrf.mxu0
        %v2017 = vpop.f32.mrf.mxu0
        %v2018 = vpop.f32.mrf.mxu0
        %2019 = vdwg.mxu0
        %v2020 = vpack.c.bf16 %v1877, %v1877
        %v2022 = vunpack.c.l.s4 1983009808
        %v2023 = vunpack.c.0.s8 %v2022
        %v2024 = vlaneseq
        %v2025 = vshrl.u32 %v2024, 7
        %v2026 = vsub.s32 %v2023, %v2025
        %v2027 = vrot.slane %v2020, %v2026
        %v2028 = vpack.c.bf16 %v1969, %v1969
        %v2030 = vunpack.c.l.s4 1983009808
        %v2031 = vunpack.c.0.s8 %v2030
        %v2032 = vlaneseq
        %v2033 = vshrl.u32 %v2032, 7
        %v2034 = vsub.s32 %v2031, %v2033
        %v2035 = vrot.slane %v2028, %v2034
        %v2036 = vcombine.low %v2027, %v2035
        %v2037 = vcombine.high %v2027, %v2035
        %v2039 = vunpack.c.l.s4 1934713408
        %v2040 = vunpack.c.0.s8 %v2039
        %v2041 = vlaneseq
        %v2042 = vshrl.u32 %v2041, 7
        %v2043 = vsub.s32 %v2040, %v2042
        %v2044 = vrot.slane %v2036, %v2043
        %v2046 = vunpack.c.l.s4 1934713408
        %v2047 = vunpack.c.0.s8 %v2046
        %v2048 = vlaneseq
        %v2049 = vshrl.u32 %v2048, 7
        %v2050 = vsub.s32 %v2047, %v2049
        %v2051 = vrot.slane %v2037, %v2050
        %v2052 = vcombine.high %v2044, 0
        %v2053 = vcombine.high %v2051, 0
        %v2054 = vpack.c.bf16 %v1923, %v1923
        %v2056 = vunpack.c.l.s4 1983009808
        %v2057 = vunpack.c.0.s8 %v2056
        %v2058 = vlaneseq
        %v2059 = vshrl.u32 %v2058, 7
        %v2060 = vsub.s32 %v2057, %v2059
        %v2061 = vrot.slane %v2054, %v2060
        %v2062 = vpack.c.bf16 %v2015, %v2015
        %v2064 = vunpack.c.l.s4 1983009808
        %v2065 = vunpack.c.0.s8 %v2064
        %v2066 = vlaneseq
        %v2067 = vshrl.u32 %v2066, 7
        %v2068 = vsub.s32 %v2065, %v2067
        %v2069 = vrot.slane %v2062, %v2068
        %v2070 = vcombine.low %v2061, %v2069
        %v2071 = vcombine.high %v2061, %v2069
        %v2073 = vunpack.c.l.s4 1934713408
        %v2074 = vunpack.c.0.s8 %v2073
        %v2075 = vlaneseq
        %v2076 = vshrl.u32 %v2075, 7
        %v2077 = vsub.s32 %v2074, %v2076
        %v2078 = vrot.slane %v2070, %v2077
        %v2080 = vunpack.c.l.s4 1934713408
        %v2081 = vunpack.c.0.s8 %v2080
        %v2082 = vlaneseq
        %v2083 = vshrl.u32 %v2082, 7
        %v2084 = vsub.s32 %v2081, %v2083
        %v2085 = vrot.slane %v2071, %v2084
        %v2086 = vcombine.high %v2078, 0
        %v2087 = vcombine.high %v2085, 0
        %v2090 = vpack.i.b16 %v2078, %v2044
        %v2092 = vshrl.u32 %v2044, 16
        %v2093 = vshrl.u32 %v2078, 16
        %v2094 = vpack.i.b16 %v2093, %v2092
        %v2098 = vpack.i.b16 %v2086, %v2052
        %v2100 = vshrl.u32 %v2052, 16
        %v2101 = vshrl.u32 %v2086, 16
        %v2102 = vpack.i.b16 %v2101, %v2100
        %v2106 = vpack.i.b16 %v2085, %v2051
        %v2108 = vshrl.u32 %v2051, 16
        %v2109 = vshrl.u32 %v2085, 16
        %v2110 = vpack.i.b16 %v2109, %v2108
        %v2114 = vpack.i.b16 %v2087, %v2053
        %v2116 = vshrl.u32 %v2053, 16
        %v2117 = vshrl.u32 %v2087, 16
        %v2118 = vpack.i.b16 %v2117, %v2116
        %v2120 = vcombine.low %v2090, %v2106
        %v2122 = vunpack.c.l.s4 1983009808
        %v2123 = vunpack.c.0.s8 %v2122
        %v2124 = vlaneseq
        %v2125 = vshrl.u32 %v2124, 7
        %v2126 = vsub.s32 %v2123, %v2125
        %v2127 = vrot.slane %v2120, %v2126
        %v2128 = vcombine.low %v2098, %v2114
        %v2130 = vunpack.c.l.s4 1983009808
        %v2131 = vunpack.c.0.s8 %v2130
        %v2132 = vlaneseq
        %v2133 = vshrl.u32 %v2132, 7
        %v2134 = vsub.s32 %v2131, %v2133
        %v2135 = vrot.slane %v2128, %v2134
        %v2136 = vcombine.low %v2127, %v2135
        %v2138 = vunpack.c.l.s4 1934713408
        %v2139 = vunpack.c.0.s8 %v2138
        %v2140 = vlaneseq
        %v2141 = vshrl.u32 %v2140, 7
        %v2142 = vsub.s32 %v2139, %v2141
        %v2143 = vrot.slane %v2136, %v2142
        %v2144 = vcombine.high %v2143, 0
        %v2145 = vcombine.low %v2094, %v2110
        %v2147 = vunpack.c.l.s4 1983009808
        %v2148 = vunpack.c.0.s8 %v2147
        %v2149 = vlaneseq
        %v2150 = vshrl.u32 %v2149, 7
        %v2151 = vsub.s32 %v2148, %v2150
        %v2152 = vrot.slane %v2145, %v2151
        %v2153 = vcombine.low %v2102, %v2118
        %v2155 = vunpack.c.l.s4 1983009808
        %v2156 = vunpack.c.0.s8 %v2155
        %v2157 = vlaneseq
        %v2158 = vshrl.u32 %v2157, 7
        %v2159 = vsub.s32 %v2156, %v2158
        %v2160 = vrot.slane %v2153, %v2159
        %v2161 = vcombine.low %v2152, %v2160
        %v2163 = vunpack.c.l.s4 1934713408
        %v2164 = vunpack.c.0.s8 %v2163
        %v2165 = vlaneseq
        %v2166 = vshrl.u32 %v2165, 7
        %v2167 = vsub.s32 %v2164, %v2166
        %v2168 = vrot.slane %v2161, %v2167
        %v2169 = vcombine.high %v2168, 0
        %v2172 = vpack.i.b16 %v2168, %v2143
        %v2173 = vshrl.u32 %v2143, 16
        %v2174 = vshrl.u32 %v2168, 16
        %v2175 = vpack.i.b16 %v2174, %v2173
        %v2178 = vpack.i.b16 %v2169, %v2144
        %v2179 = vshrl.u32 %v2144, 16
        %v2180 = vshrl.u32 %v2169, 16
        %v2181 = vpack.i.b16 %v2180, %v2179
        %2182 = vrot.lane.b32.xlu0 %v2175, 8
        %v2183 = vpop.permute.xlu0 %2182
        %2184 = vrot.lane.b32.xlu0 %v2178, 16
        %v2185 = vpop.permute.xlu0 %2184
        %2186 = vrot.lane.b32.xlu0 %v2181, 24
        %v2187 = vpop.permute.xlu0 %2186
        %v2190 = vsel %vm723, %v2172, %v2183
        %v2192 = vsel %vm1312, %v2190, %v2185
        %v2194 = vsel %vm1315, %v2192, %v2187
        %v2196 = vrot.slane %v2194, 4
        %v2198 = vsel %vm959, %v1317, %v2196
        %v2199 = vld [vmem:[#allocation8] sm:$0xf]
        %v2200 = vld [vmem:[#allocation8 + $0x4] sm:$0xf]
        %v2201 = vld [vmem:[#allocation8 + $0x8] sm:$0xf]
        %v2202 = vld [vmem:[#allocation8 + $0xc] sm:$0xf]
        %v2203 = vld [vmem:[%s5] sm:$0x1]
        %v2205 = vlaneseq
        %v2206 = vshrl.u32 %v2205, 7
        %v2207 = vsub.s32 0, %v2206
        %v2208 = vrot.slane %v2203, %v2207
        %v2214 = vunpack.c.l.b16 %v2199
        %v2215 = vunpack.c.l.b16 %v2200
        %v2216 = vunpack.c.l.b16 %v2201
        %v2217 = vunpack.c.l.b16 %v2202
        %v2218 = vpack.c.b16 %v2215, %v2214
        %v2219 = vpack.c.b16 %v2217, %v2216
        %v2222 = vsel %vm319, %v2198, 0
        %2224 = vmatprep.subr.bf16.mxu0 0
        %2225 = vmatpush1.bf16.msra.mxu0 0
        %2226 = vmatprep.subr.bf16.mxu0 0
        %2227 = vmatpush1.bf16.msra.mxu0 0
        %2228 = vmatprep.subr.bf16.mxu0 0
        %2229 = vmatpush1.bf16.msra.mxu0 0
        %2230 = vmatprep.subr.bf16.mxu0 0
        %2231 = vmatpush1.bf16.msra.mxu0 0
        %2232 = vmatprep.subr.bf16.mxu0 0
        %2233 = vmatpush1.bf16.msra.mxu0 0
        %2234 = vmatprep.subr.bf16.mxu0 0
        %2235 = vmatpush1.bf16.msra.mxu0 0
        %2236 = vmatprep.subr.bf16.mxu0 0
        %2237 = vmatpush1.bf16.msra.mxu0 %v2219
        %2238 = vmatprep.subr.bf16.mxu0 0
        %2239 = vmatpush1.bf16.msra.mxu0 %v2218
        %2240 = vmatprep.subr.bf16.mxu0 0
        %2241 = vmatpush2.bf16.msra.mxu0 0
        %2242 = vmatprep.subr.bf16.mxu0 0
        %2243 = vmatpush2.bf16.msra.mxu0 0
        %2244 = vmatprep.subr.bf16.mxu0 0
        %2245 = vmatpush2.bf16.msra.mxu0 0
        %2246 = vmatprep.subr.bf16.mxu0 0
        %2247 = vmatpush2.bf16.msra.mxu0 0
        %2248 = vmatprep.subr.bf16.mxu0 0
        %2249 = vmatpush2.bf16.msra.mxu0 0
        %2250 = vmatprep.subr.bf16.mxu0 0
        %2251 = vmatpush2.bf16.msra.mxu0 0
        %2252 = vmatprep.subr.bf16.mxu0 0
        %2253 = vmatpush2.bf16.msra.mxu0 0
        %2254 = vmatprep.subr.bf16.mxu0 0
        %2255 = vmatpush2.bf16.msra.mxu0 0
        %2256 = vmatprep.mubr.bf16.mxu0 0
        %2257 = vmatmul.mubr.bf16.gmra.mxu0 %v2222
        %v2258 = vpop.f32.mrf.mxu0
        %v2259 = vadd.f32 %v2208, %v2258
        %v2260 = vpop.f32.mrf.mxu0
        %v2261 = vpop.f32.mrf.mxu0
        %v2262 = vadd.f32 %v2208, %v2261
        %v2263 = vpop.f32.mrf.mxu0
        %2264 = vdwg.mxu0
        %2265 = vst [vmem:[%s313] sm:$0xff] %v2259
        %2266 = vst [vmem:[%s313 + $0x8] sm:$0xff] %v2262
        %s2267 = sand.u32 %s164, 1
        %s2268 = scalar_lea.sflag [#allocation4], %s2267
        %s2269 = sand.u32 %s164, 1
        %s2270 = smul.addr %s2269, 16
        %s2271 = scalar_lea.vmem [#allocation10], %s2270
        // Predicated region
        $region61: #{tpu_custom_call.1} parent=43 // pred_check
          %p2272 = pneg %p174
        $region62: #{tpu_custom_call.1} parent=43 // pred_check_branch
          %2274 = sbr.rel (%p2272) target = $region64
        $region63: #{tpu_custom_call.1} parent=43 // pred_region
          %s2275 = smul.u32 2, %s25
          %s2277 = ssub.s32 256, 256
          %2278 = vsyncadd %s2268, %s2277
          %s2279 = smul.addr %s2275, 128
          %s2280 = scalar_lea.hbm %s6, %s2279
          %s2281 = sshll.u32 %s2271, 4
          %s2282 = int_to_ptr.vmem [resolvable:$true] %s2281
          %2287 = dma.vmem_to_hbm [thread:$0]  %s2282, 256, %s2280, %s2268, 128, 128, 8
        $region64: #{tpu_custom_call.1} parent=43 // pred_fallthru
          _
      $region44: #{tpu_custom_call.1} parent=5 // pred_fallthru
        _
      %p2288 = scmp.le.s32.totalorder 2, %s20
      // Predicated region
      $region65: #{tpu_custom_call.1} parent=5 // pred_check
        %p2289 = pneg %p2288
      $region66: #{tpu_custom_call.1} parent=5 // pred_check_branch
        %2291 = sbr.rel (%p2289) target = $region68
      $region67: #{tpu_custom_call.1} parent=5 // pred_region
        %s2292 = ssub.s32 %s20, 2
        // Predicated region
        $region69: #{tpu_custom_call.1} parent=67 // pred_check
          %p2293 = pneg %p180
        $region70: #{tpu_custom_call.1} parent=67 // pred_check_branch
          %2295 = sbr.rel (%p2293) target = $region72
        $region71: #{tpu_custom_call.1} parent=67 // pred_region
          %s2296 = sand.u32 %s165, 1
          %s2297 = scalar_lea.sflag [#allocation4], %s2296
          %s2298 = sand.u32 %s165, 1
          %s2299 = smul.addr %s2298, 16
          %s2300 = scalar_lea.vmem [#allocation10], %s2299
          %2301 = dma.done %s2297, 256
        $region72: #{tpu_custom_call.1} parent=67 // pred_fallthru
          _
      $region68: #{tpu_custom_call.1} parent=5 // pred_fallthru
        _
    $region6: #{tpu_custom_call.1} parent=1 // loop_footer
      %s24 = sadd.s32 1, %s20
    $region7: #{tpu_custom_call.1} parent=1 // loop_footer_branch
      %19 = sbr.rel target = $region3
    $region8: #{tpu_custom_call.1} parent=1 // loop_exit
      _
    %2302 = vsyncpa [#allocation3], 1
    %s2303 = scalar_lea.sflag [#allocation3], 1
    %2304 = vsyncpa %s2303, 1
    %2305 = vsyncpa [#allocation6], 1
    %2306 = vsyncpa [#allocation9], 1
    %2307 = vsyncpa [#allocation4], 1
    %s2308 = scalar_lea.sflag [#allocation4], 1
    %2309 = vsyncpa %s2308, 1

// kernel: tpu_custom_call.1
$region0: #{tpu_custom_call.1}
  #allocation0 [shape = 'u32[]', space=smem, size = 0x4, offset = 0x4, fixed_abs, tag = 'smem constant byte address 0x4 - core index']
  #allocation1 [shape = 'u32[144,128]{1,0:T(1,128)}', space=vmem, size = 0x12000, scoped, tag = 'internal scratch']
  %s0 = inlined_call_operand.hbm [shape: f32[8,8,32], index: 0, kind: input, shape index: {}]
  %s1 = inlined_call_operand.hbm [shape: bf16[4,8,8], index: 1, kind: input, shape index: {}]
  %s2 = inlined_call_operand.hbm [shape: bf16[32,64], index: 2, kind: input, shape index: {}]
  %s3 = inlined_call_operand.vmem [shape: f32[1,64], index: 3, kind: input, shape index: {}]
  %s4 = inlined_call_operand.hbm [shape: bf16[32,128], index: 4, kind: input, shape index: {}]
  %s5 = inlined_call_operand.vmem [shape: f32[1,128], index: 5, kind: input, shape index: {}]
  %s6 = inlined_call_operand.hbm [shape: f32[8,8,128], index: 6, kind: output, shape index: {}]
  %s7 = sld [smem:[#allocation0]]
  $region73: #{tpu_custom_call.1} parent=0
    _
  %s9 = ssub.s32 1, %s7
  %s10 = scalar_select 0, %s9, %s7
  $region1: #{tpu_custom_call.1} parent=0
    #allocation2 [shape = 'u8[16384]{0}', space=vmem, size = 0x4000, scoped, tag = 'input window, operand 0']
    #allocation3 [shape = 's32[2]{0}', space=sflag, size = 0x8, scoped, tag = 'scoped memory for tpu_custom_call.1']
    #allocation4 [shape = 's32[2]{0}', space=sflag, size = 0x8, scoped, tag = 'scoped memory for tpu_custom_call.1']
    #allocation5 [shape = 'u8[8192]{0}', space=vmem, size = 0x2000, scoped, tag = 'input window, operand 1, single buffered']
    #allocation6 [shape = 's32[1]{0}', space=sflag, size = 0x4, scoped, tag = 'scoped memory for tpu_custom_call.1']
    #allocation7 [shape = 'u8[8192]{0}', space=vmem, size = 0x2000, scoped, tag = 'input window, operand 2, single buffered']
    #allocation8 [shape = 'u8[8192]{0}', space=vmem, size = 0x2000, scoped, tag = 'input window, operand 4, single buffered']
    #allocation9 [shape = 's32[1]{0}', space=sflag, size = 0x4, scoped, tag = 'scoped memory for tpu_custom_call.1']
    #allocation10 [shape = 'u8[16384]{0}', space=vmem, size = 0x4000, scoped, tag = 'output window, operand 0']
    %11 = vsyncpa [#allocation3], 0
    %s12 = scalar_lea.sflag [#allocation3], 1
    %13 = vsyncpa %s12, 0
    %14 = vsyncpa [#allocation6], 0
    %15 = vsyncpa [#allocation9], 0
    %16 = vsyncpa [#allocation4], 0
    %s17 = scalar_lea.sflag [#allocation4], 1
    %18 = vsyncpa %s17, 0
    loop: start=0, step=1, limit=6
    $region2: #{tpu_custom_call.1} parent=1 // loop_pre_header
      _
    $region3: #{tpu_custom_call.1} parent=1 // loop_header
      %s20 = sphi 0, %s24
      %p21 = scmp.ge.s32.totalorder %s20, 6
      %s30 = sphi 0, %s32
      %s33 = sphi 0, %s30
      %s34 = sphi 0, %s33
      %s50 = sphi 0, %s34
      %s54 = sphi 0, %s54
      %s56 = sphi 0, %s54
      %s57 = sphi 0, %s56
      %s71 = sphi 0, %s57
      %s75 = sphi 0, %s75
      %s77 = sphi 0, %s75
      %s78 = sphi 0, %s77
      %s92 = sphi 0, %s78
      %s96 = sphi 0, %s96
      %s98 = sphi 0, %s96
      %s99 = sphi 0, %s98
      %s113 = sphi 0, %s99
      %s117 = sphi 0, %s117
      %s119 = sphi 0, %s117
      %s120 = sphi 0, %s119
      %s134 = sphi 0, %s120
      %s138 = sphi 0, %s138
      %s140 = sphi 0, %s138
      %s141 = sphi 0, %s140
      %s155 = sphi 0, %s141
      %s161 = sphi 0, %s163
      %s164 = sphi 0, %s161
      %s165 = sphi 0, %s164
      %s181 = sphi 0, %s165
    $region4: #{tpu_custom_call.1} parent=1 // loop_header_branch
      %23 = sbr.rel (%p21) target = $region8
    $region5: #{tpu_custom_call.1} parent=1 // loop_body
      %s25 = ssub.s32 %s20, 1
      %s26 = ssub.s32 %s20, 2
      %s27 = sadd.s32 %s20, 1
      %s28 = ssub.s32 %s20, %s27
      %p29 = scmp.eq.s32.totalorder %s28, 0
      %s31 = sadd.s32 %s30, 1
      %s32 = scalar_select %p29, %s30, %s31
      %p35 = pneg %p29
      %p36 = scmp.eq.s32.totalorder %s20, 3
      %p37 = por %p35, %p36
      %p38 = scmp.ne.s32.totalorder %s30, %s33
      %p39 = scmp.eq.s32.totalorder %s20, 0
      %p40 = por %p38, %p39
      %p41 = scmp.ne.s32.totalorder %s30, %s33
      %p42 = scmp.eq.s32.totalorder %s25, 3
      %p43 = por %p41, %p42
      %p44 = scmp.ne.s32.totalorder %s33, %s34
      %p45 = scmp.eq.s32.totalorder %s25, 0
      %p46 = por %p44, %p45
      %p47 = scmp.ne.s32.totalorder %s33, %s34
      %p48 = scmp.eq.s32.totalorder %s26, 3
      %p49 = por %p47, %p48
      %p51 = scmp.ne.s32.totalorder %s34, %s50
      %p52 = scmp.eq.s32.totalorder %s26, 0
      %p53 = por %p51, %p52
      %s55 = sadd.s32 %s54, 1
      %p58 = scmp.eq.s32.totalorder %s20, 3
      %p59 = scmp.ne.s32.totalorder %s54, %s56
      %p60 = scmp.eq.s32.totalorder %s20, 0
      %p61 = por %p59, %p60
      %p62 = scmp.ne.s32.totalorder %s54, %s56
      %p63 = scmp.eq.s32.totalorder %s25, 3
      %p64 = por %p62, %p63
      %p65 = scmp.ne.s32.totalorder %s56, %s57
      %p66 = scmp.eq.s32.totalorder %s25, 0
      %p67 = por %p65, %p66
      %p68 = scmp.ne.s32.totalorder %s56, %s57
      %p69 = scmp.eq.s32.totalorder %s26, 3
      %p70 = por %p68, %p69
      %p72 = scmp.ne.s32.totalorder %s57, %s71
      %p73 = scmp.eq.s32.totalorder %s26, 0
      %p74 = por %p72, %p73
      %s76 = sadd.s32 %s75, 1
      %p79 = scmp.eq.s32.totalorder %s20, 3
      %p80 = scmp.ne.s32.totalorder %s75, %s77
      %p81 = scmp.eq.s32.totalorder %s20, 0
      %p82 = por %p80, %p81
      %p83 = scmp.ne.s32.totalorder %s75, %s77
      %p84 = scmp.eq.s32.totalorder %s25, 3
      %p85 = por %p83, %p84
      %p86 = scmp.ne.s32.totalorder %s77, %s78
      %p87 = scmp.eq.s32.totalorder %s25, 0
      %p88 = por %p86, %p87
      %p89 = scmp.ne.s32.totalorder %s77, %s78
      %p90 = scmp.eq.s32.totalorder %s26, 3
      %p91 = por %p89, %p90
      %p93 = scmp.ne.s32.totalorder %s78, %s92
      %p94 = scmp.eq.s32.totalorder %s26, 0
      %p95 = por %p93, %p94
      %s97 = sadd.s32 %s96, 1
      %p100 = scmp.eq.s32.totalorder %s20, 3
      %p101 = scmp.ne.s32.totalorder %s96, %s98
      %p102 = scmp.eq.s32.totalorder %s20, 0
      %p103 = por %p101, %p102
      %p104 = scmp.ne.s32.totalorder %s96, %s98
      %p105 = scmp.eq.s32.totalorder %s25, 3
      %p106 = por %p104, %p105
      %p107 = scmp.ne.s32.totalorder %s98, %s99
      %p108 = scmp.eq.s32.totalorder %s25, 0
      %p109 = por %p107, %p108
      %p110 = scmp.ne.s32.totalorder %s98, %s99
      %p111 = scmp.eq.s32.totalorder %s26, 3
      %p112 = por %p110, %p111
      %p114 = scmp.ne.s32.totalorder %s99, %s113
      %p115 = scmp.eq.s32.totalorder %s26, 0
      %p116 = por %p114, %p115
      %s118 = sadd.s32 %s117, 1
      %p121 = scmp.eq.s32.totalorder %s20, 3
      %p122 = scmp.ne.s32.totalorder %s117, %s119
      %p123 = scmp.eq.s32.totalorder %s20, 0
      %p124 = por %p122, %p123
      %p125 = scmp.ne.s32.totalorder %s117, %s119
      %p126 = scmp.eq.s32.totalorder %s25, 3
      %p127 = por %p125, %p126
      %p128 = scmp.ne.s32.totalorder %s119, %s120
      %p129 = scmp.eq.s32.totalorder %s25, 0
      %p130 = por %p128, %p129
      %p131 = scmp.ne.s32.totalorder %s119, %s120
      %p132 = scmp.eq.s32.totalorder %s26, 3
      %p133 = por %p131, %p132
      %p135 = scmp.ne.s32.totalorder %s120, %s134
      %p136 = scmp.eq.s32.totalorder %s26, 0
      %p137 = por %p135, %p136
      %s139 = sadd.s32 %s138, 1
      %p142 = scmp.eq.s32.totalorder %s20, 3
      %p143 = scmp.ne.s32.totalorder %s138, %s140
      %p144 = scmp.eq.s32.totalorder %s20, 0
      %p145 = por %p143, %p144
      %p146 = scmp.ne.s32.totalorder %s138, %s140
      %p147 = scmp.eq.s32.totalorder %s25, 3
      %p148 = por %p146, %p147
      %p149 = scmp.ne.s32.totalorder %s140, %s141
      %p150 = scmp.eq.s32.totalorder %s25, 0
      %p151 = por %p149, %p150
      %p152 = scmp.ne.s32.totalorder %s140, %s141
      %p153 = scmp.eq.s32.totalorder %s26, 3
      %p154 = por %p152, %p153
      %p156 = scmp.ne.s32.totalorder %s141, %s155
      %p157 = scmp.eq.s32.totalorder %s26, 0
      %p158 = por %p156, %p157
      %s159 = ssub.s32 %s20, %s27
      %p160 = scmp.eq.s32.totalorder %s159, 0
      %s162 = sadd.s32 %s161, 1
      %s163 = scalar_select %p160, %s161, %s162
      %p166 = pneg %p160
      %p167 = scmp.eq.s32.totalorder %s20, 3
      %p168 = por %p166, %p167
      %p169 = scmp.ne.s32.totalorder %s161, %s164
      %p170 = scmp.eq.s32.totalorder %s20, 0
      %p171 = por %p169, %p170
      %p172 = scmp.ne.s32.totalorder %s161, %s164
      %p173 = scmp.eq.s32.totalorder %s25, 3
      %p174 = por %p172, %p173
      %p175 = scmp.ne.s32.totalorder %s164, %s165
      %p176 = scmp.eq.s32.totalorder %s25, 0
      %p177 = por %p175, %p176
      %p178 = scmp.ne.s32.totalorder %s164, %s165
      %p179 = scmp.eq.s32.totalorder %s26, 3
      %p180 = por %p178, %p179
      %p182 = scmp.ne.s32.totalorder %s165, %s181
      %p183 = scmp.eq.s32.totalorder %s26, 0
      %p184 = por %p182, %p183
      %p185 = scmp.le.s32.totalorder 1, %s20
      %p186 = scmp.lt.s32.totalorder %s20, 5
      %p187 = pnand %p185, %p186
      %p188 = pneg %p187
      // Predicated region
      $region9: #{tpu_custom_call.1} parent=5 // pred_check
        _
      $region10: #{tpu_custom_call.1} parent=5 // pred_check_branch
        %190 = sbr.rel (%p187) target = $region12
      $region11: #{tpu_custom_call.1} parent=5 // pred_region
        %s191 = ssub.s32 %s20, 1
        // Predicated region
        $region13: #{tpu_custom_call.1} parent=11 // pred_check
          %p192 = pneg %p67
        $region14: #{tpu_custom_call.1} parent=11 // pred_check_branch
          %194 = sbr.rel (%p192) target = $region16
        $region15: #{tpu_custom_call.1} parent=11 // pred_region
          %s196 = ssub.s32 256, 256
          %197 = vsyncadd [#allocation6], %s196
          %s198 = sshll.u32 [#allocation5], 4
          %s199 = int_to_ptr.vmem [resolvable:$true] %s198
          %204 = dma.hbm_to_vmem [thread:$0]  %s1, 256, %s199, [#allocation6], 64, 64, 4
        $region16: #{tpu_custom_call.1} parent=11 // pred_fallthru
          _
        // Predicated region
        $region17: #{tpu_custom_call.1} parent=11 // pred_check
          %p205 = pneg %p88
        $region18: #{tpu_custom_call.1} parent=11 // pred_check_branch
          %207 = sbr.rel (%p205) target = $region20
        $region19: #{tpu_custom_call.1} parent=11 // pred_region
          %s209 = ssub.s32 256, 256
          %210 = vsyncadd [#allocation6], %s209
          %s211 = sshll.u32 [#allocation7], 4
          %s212 = int_to_ptr.vmem [resolvable:$true] %s211
          %217 = dma.hbm_to_vmem [thread:$0]  %s2, 256, %s212, [#allocation6], 64, 64, 4
        $region20: #{tpu_custom_call.1} parent=11 // pred_fallthru
          _
        // Predicated region
        $region21: #{tpu_custom_call.1} parent=11 // pred_check
          %p218 = pneg %p109
        $region22: #{tpu_custom_call.1} parent=11 // pred_check_branch
          %220 = sbr.rel (%p218) target = $region24
        $region23: #{tpu_custom_call.1} parent=11 // pred_region
          _
        $region24: #{tpu_custom_call.1} parent=11 // pred_fallthru
          _
        // Predicated region
        $region25: #{tpu_custom_call.1} parent=11 // pred_check
          %p221 = pneg %p130
        $region26: #{tpu_custom_call.1} parent=11 // pred_check_branch
          %223 = sbr.rel (%p221) target = $region28
        $region27: #{tpu_custom_call.1} parent=11 // pred_region
          %s225 = ssub.s32 256, 256
          %226 = vsyncadd [#allocation9], %s225
          %s227 = sshll.u32 [#allocation8], 4
          %s228 = int_to_ptr.vmem [resolvable:$true] %s227
          %233 = dma.hbm_to_vmem [thread:$0]  %s4, 256, %s228, [#allocation9], 64, 64, 4
        $region28: #{tpu_custom_call.1} parent=11 // pred_fallthru
          _
        // Predicated region
        $region29: #{tpu_custom_call.1} parent=11 // pred_check
          %p234 = pneg %p151
        $region30: #{tpu_custom_call.1} parent=11 // pred_check_branch
          %236 = sbr.rel (%p234) target = $region32
        $region31: #{tpu_custom_call.1} parent=11 // pred_region
          _
        $region32: #{tpu_custom_call.1} parent=11 // pred_fallthru
          _
      $region12: #{tpu_custom_call.1} parent=5 // pred_fallthru
        _
      %p237 = scmp.lt.s32.totalorder %s20, 4
      // Predicated region
      $region33: #{tpu_custom_call.1} parent=5 // pred_check
        %p238 = pneg %p237
      $region34: #{tpu_custom_call.1} parent=5 // pred_check_branch
        %240 = sbr.rel (%p238) target = $region36
      $region35: #{tpu_custom_call.1} parent=5 // pred_region
        // Predicated region
        $region37: #{tpu_custom_call.1} parent=35 // pred_check
          %p241 = pneg %p40
        $region38: #{tpu_custom_call.1} parent=35 // pred_check_branch
          %243 = sbr.rel (%p241) target = $region40
        $region39: #{tpu_custom_call.1} parent=35 // pred_region
          %s244 = sand.u32 %s30, 1
          %s245 = scalar_lea.sflag [#allocation3], %s244
          %s246 = sand.u32 %s30, 1
          %s247 = smul.addr %s246, 16
          %s248 = scalar_lea.vmem [#allocation2], %s247
          %s249 = smul.u32 2, %s20
          %s251 = ssub.s32 256, 256
          %252 = vsyncadd %s245, %s251
          %s253 = smul.addr %s249, 128
          %s254 = scalar_lea.hbm %s0, %s253
          %s255 = sshll.u32 %s248, 4
          %s256 = int_to_ptr.vmem [resolvable:$true] %s255
          %261 = dma.hbm_to_vmem [thread:$0]  %s254, 256, %s256, %s245, 128, 128, 8
        $region40: #{tpu_custom_call.1} parent=35 // pred_fallthru
          _
      $region36: #{tpu_custom_call.1} parent=5 // pred_fallthru
        _
      %p262 = scmp.le.s32.totalorder 1, %s20
      %p263 = scmp.lt.s32.totalorder %s20, 5
      %p264 = pnand %p262, %p263
      %p265 = pneg %p264
      // Predicated region
      $region41: #{tpu_custom_call.1} parent=5 // pred_check
        _
      $region42: #{tpu_custom_call.1} parent=5 // pred_check_branch
        %267 = sbr.rel (%p264) target = $region44
      $region43: #{tpu_custom_call.1} parent=5 // pred_region
        %s268 = ssub.s32 %s20, 1
        %s269 = sand.u32 %s33, 1
        %s270 = scalar_lea.sflag [#allocation3], %s269
        %s271 = sand.u32 %s33, 1
        %s272 = smul.addr %s271, 16
        %s273 = scalar_lea.vmem [#allocation2], %s272
        // Predicated region
        $region45: #{tpu_custom_call.1} parent=43 // pred_check
          %p274 = pneg %p46
        $region46: #{tpu_custom_call.1} parent=43 // pred_check_branch
          %276 = sbr.rel (%p274) target = $region48
        $region47: #{tpu_custom_call.1} parent=43 // pred_region
          %277 = dma.done %s270, 256
        $region48: #{tpu_custom_call.1} parent=43 // pred_fallthru
          _
        // Predicated region
        $region49: #{tpu_custom_call.1} parent=43 // pred_check
          %p278 = pneg %p67
        $region50: #{tpu_custom_call.1} parent=43 // pred_check_branch
          %280 = sbr.rel (%p278) target = $region52
        $region51: #{tpu_custom_call.1} parent=43 // pred_region
          %281 = dma.done [#allocation6], 256
        $region52: #{tpu_custom_call.1} parent=43 // pred_fallthru
          _
        // Predicated region
        $region53: #{tpu_custom_call.1} parent=43 // pred_check
          %p282 = pneg %p88
        $region54: #{tpu_custom_call.1} parent=43 // pred_check_branch
          %284 = sbr.rel (%p282) target = $region56
        $region55: #{tpu_custom_call.1} parent=43 // pred_region
          %285 = dma.done [#allocation6], 256
        $region56: #{tpu_custom_call.1} parent=43 // pred_fallthru
          _
        // Predicated region
        $region57: #{tpu_custom_call.1} parent=43 // pred_check
          %p286 = pneg %p130
        $region58: #{tpu_custom_call.1} parent=43 // pred_check_branch
          %288 = sbr.rel (%p286) target = $region60
        $region59: #{tpu_custom_call.1} parent=43 // pred_region
          %289 = dma.done [#allocation9], 256
        $region60: #{tpu_custom_call.1} parent=43 // pred_fallthru
          _
        %s290 = sand.u32 %s33, 1
        %s291 = scalar_lea.sflag [#allocation3], %s290
        %s292 = sand.u32 %s33, 1
        %s293 = smul.addr %s292, 16
        %s294 = scalar_lea.vmem [#allocation2], %s293
        %p295 = pneg %p46
        %p296 = pneg %p43
        %p297 = pneg %p67
        %p298 = pneg %p64
        %p299 = pneg %p88
        %p300 = pneg %p85
        %p301 = pneg %p109
        %p302 = pneg %p106
        %p303 = pneg %p130
        %p304 = pneg %p127
        %p305 = pneg %p151
        %p306 = pneg %p148
        %p307 = pneg %p177
        %p308 = pneg %p174
        %s309 = sand.u32 %s164, 1
        %s310 = scalar_lea.sflag [#allocation4], %s309
        %s311 = sand.u32 %s164, 1
        %s312 = smul.addr %s311, 16
        %s313 = scalar_lea.vmem [#allocation10], %s312
        %s314 = smul.u32 2, %s25
        %s315 = smul.u32 2, %s25
        %v317 = vld [vmem:[%s273] sm:$0xff]
        %v318 = vld [vmem:[%s273 + $0x8] sm:$0xff]
        %vm319 = vcmask 261120
        %v320 = vsel %vm319, %v317, 0.0
        %321 = vadd.xlane.f32.xlu0 %v320
        %v322 = vpop.xlane.xlu0 %321
        %v323 = vsel %vm319, %v318, 0.0
        %324 = vadd.xlane.f32.xlu0 %v323
        %v325 = vpop.xlane.xlu0 %324
        %v326 = vrcp.pop 32.0
        %v327 = vmul.f32 %v322, %v326
        %v328 = vmul.f32 %v325, %v326
        %v329 = vsub.f32 %v317, %v327
        %v330 = vsub.f32 %v318, %v328
        %v331 = vmul.f32 %v329, %v329
        %v332 = vmul.f32 %v330, %v330
        %v333 = vsel %vm319, %v331, 0.0
        %334 = vadd.xlane.f32.xlu0 %v333
        %v335 = vpop.xlane.xlu0 %334
        %v336 = vsel %vm319, %v332, 0.0
        %337 = vadd.xlane.f32.xlu0 %v336
        %v338 = vpop.xlane.xlu0 %337
        %v339 = vmul.f32 %v335, %v326
        %v340 = vmul.f32 %v338, %v326
        %v341 = vadd.f32 %v339, 1e-05
        %v342 = vadd.f32 %v340, 1e-05
        %v343 = vrsqrt.pop %v341
        %v344 = vrsqrt.pop %v342
        %v345 = vmul.f32 %v329, %v343
        %v346 = vmul.f32 %v330, %v344
        %v347 = vpack.c.bf16 %v346, %v345
        %v348 = vld [vmem:[#allocation7] sm:$0xf]
        %v349 = vld [vmem:[#allocation7 + $0x4] sm:$0xf]
        %v350 = vld [vmem:[#allocation7 + $0x8] sm:$0xf]
        %v351 = vld [vmem:[#allocation7 + $0xc] sm:$0xf]
        %v352 = vld [vmem:[%s3] sm:$0x1]
        %v354 = vlaneseq
        %v355 = vshrl.u32 %v354, 7
        %v356 = vsub.s32 0, %v355
        %v357 = vrot.slane %v352, %v356
        %v363 = vunpack.c.l.b16 %v348
        %v364 = vunpack.c.l.b16 %v349
        %v365 = vunpack.c.l.b16 %v350
        %v366 = vunpack.c.l.b16 %v351
        %v367 = vpack.c.b16 %v364, %v363
        %v368 = vpack.c.b16 %v366, %v365
        %v372 = vsel %vm319, %v347, 0
        %374 = vmatprep.subr.bf16.mxu0 0
        %375 = vmatpush1.bf16.msra.mxu0 0
        %376 = vmatprep.subr.bf16.mxu0 0
        %377 = vmatpush1.bf16.msra.mxu0 0
        %378 = vmatprep.subr.bf16.mxu0 0
        %379 = vmatpush1.bf16.msra.mxu0 0
        %380 = vmatprep.subr.bf16.mxu0 0
        %381 = vmatpush1.bf16.msra.mxu0 0
        %382 = vmatprep.subr.bf16.mxu0 0
        %383 = vmatpush1.bf16.msra.mxu0 0
        %384 = vmatprep.subr.bf16.mxu0 0
        %385 = vmatpush1.bf16.msra.mxu0 0
        %386 = vmatprep.subr.bf16.mxu0 0
        %387 = vmatpush1.bf16.msra.mxu0 %v368
        %388 = vmatprep.subr.bf16.mxu0 0
        %389 = vmatpush1.bf16.msra.mxu0 %v367
        %390 = vmatprep.subr.bf16.mxu0 0
        %391 = vmatpush2.bf16.msra.mxu0 0
        %392 = vmatprep.subr.bf16.mxu0 0
        %393 = vmatpush2.bf16.msra.mxu0 0
        %394 = vmatprep.subr.bf16.mxu0 0
        %395 = vmatpush2.bf16.msra.mxu0 0
        %396 = vmatprep.subr.bf16.mxu0 0
        %397 = vmatpush2.bf16.msra.mxu0 0
        %398 = vmatprep.subr.bf16.mxu0 0
        %399 = vmatpush2.bf16.msra.mxu0 0
        %400 = vmatprep.subr.bf16.mxu0 0
        %401 = vmatpush2.bf16.msra.mxu0 0
        %402 = vmatprep.subr.bf16.mxu0 0
        %403 = vmatpush2.bf16.msra.mxu0 0
        %404 = vmatprep.subr.bf16.mxu0 0
        %405 = vmatpush2.bf16.msra.mxu0 0
        %406 = vmatprep.mubr.bf16.mxu0 0
        %407 = vmatmul.mubr.bf16.gmra.mxu0 %v372
        %v408 = vpop.f32.mrf.mxu0
        %v409 = vadd.f32 %v357, %v408
        %v410 = vpop.f32.mrf.mxu0
        %v411 = vpop.f32.mrf.mxu0
        %v412 = vadd.f32 %v357, %v411
        %v413 = vpop.f32.mrf.mxu0
        %414 = vdwg.mxu0
        %v415 = vpack.c.bf16 %v412, %v409
        %v417 = vunpack.c.l.b16 %v415
        %v418 = vunpack.c.h.b16 %v415
        %v419 = vpack.c.b16 %v417, %v417
        %v420 = vpack.c.b16 %v418, %v418
        %v421 = vld [vmem:[#allocation5] sm:$0xf]
        %v422 = vld [vmem:[#allocation5 + $0x4] sm:$0xf]
        %v423 = vld [vmem:[#allocation5 + $0x8] sm:$0xf]
        %v424 = vld [vmem:[#allocation5 + $0xc] sm:$0xf]
        %425 = vrot.lane.b32.xlu0 %v419, 120
        %v426 = vpop.permute.xlu0 %425
        %427 = vrot.lane.b32.xlu0 %v419, 112
        %v428 = vpop.permute.xlu0 %427
        %429 = vrot.lane.b32.xlu0 %v419, 104
        %v430 = vpop.permute.xlu0 %429
        %v433 = vpack.i.b16 %v426, %v419
        %v434 = vshrl.u32 %v419, 16
        %v435 = vshrl.u32 %v426, 16
        %v436 = vpack.i.b16 %v435, %v434
        %v439 = vpack.i.b16 %v430, %v428
        %v440 = vshrl.u32 %v428, 16
        %v441 = vshrl.u32 %v430, 16
        %v442 = vpack.i.b16 %v441, %v440
        %v445 = vunpack.c.l.s4 1983009808
        %v446 = vunpack.c.0.s8 %v445
        %v447 = vlaneseq
        %v448 = vshrl.u32 %v447, 7
        %v449 = vsub.s32 %v446, %v448
        %v450 = vrot.slane %v433, %v449
        %v453 = vunpack.c.l.s4 1983009808
        %v454 = vunpack.c.0.s8 %v453
        %v455 = vlaneseq
        %v456 = vshrl.u32 %v455, 7
        %v457 = vsub.s32 %v454, %v456
        %v458 = vrot.slane %v439, %v457
        %v459 = vcombine.low %v450, %v458
        %v460 = vcombine.high %v450, %v458
        %v462 = vunpack.c.l.s4 1934713408
        %v463 = vunpack.c.0.s8 %v462
        %v464 = vlaneseq
        %v465 = vshrl.u32 %v464, 7
        %v466 = vsub.s32 %v463, %v465
        %v467 = vrot.slane %v459, %v466
        %v469 = vunpack.c.l.s4 1934713408
        %v470 = vunpack.c.0.s8 %v469
        %v471 = vlaneseq
        %v472 = vshrl.u32 %v471, 7
        %v473 = vsub.s32 %v470, %v472
        %v474 = vrot.slane %v460, %v473
        %v475 = vcombine.high %v467, 0
        %v476 = vcombine.high %v474, 0
        %v479 = vunpack.c.l.s4 1983009808
        %v480 = vunpack.c.0.s8 %v479
        %v481 = vlaneseq
        %v482 = vshrl.u32 %v481, 7
        %v483 = vsub.s32 %v480, %v482
        %v484 = vrot.slane %v436, %v483
        %v487 = vunpack.c.l.s4 1983009808
        %v488 = vunpack.c.0.s8 %v487
        %v489 = vlaneseq
        %v490 = vshrl.u32 %v489, 7
        %v491 = vsub.s32 %v488, %v490
        %v492 = vrot.slane %v442, %v491
        %v493 = vcombine.low %v484, %v492
        %v494 = vcombine.high %v484, %v492
        %v496 = vunpack.c.l.s4 1934713408
        %v497 = vunpack.c.0.s8 %v496
        %v498 = vlaneseq
        %v499 = vshrl.u32 %v498, 7
        %v500 = vsub.s32 %v497, %v499
        %v501 = vrot.slane %v493, %v500
        %v503 = vunpack.c.l.s4 1934713408
        %v504 = vunpack.c.0.s8 %v503
        %v505 = vlaneseq
        %v506 = vshrl.u32 %v505, 7
        %v507 = vsub.s32 %v504, %v506
        %v508 = vrot.slane %v494, %v507
        %v509 = vcombine.high %v501, 0
        %v510 = vcombine.high %v508, 0
        %v511 = vcombine.low %v467, %v474
        %v513 = vunpack.c.l.s4 1983009808
        %v514 = vunpack.c.0.s8 %v513
        %v515 = vlaneseq
        %v516 = vshrl.u32 %v515, 7
        %v517 = vsub.s32 %v514, %v516
        %v518 = vrot.slane %v511, %v517
        %v519 = vcombine.low %v475, %v476
        %v521 = vunpack.c.l.s4 1983009808
        %v522 = vunpack.c.0.s8 %v521
        %v523 = vlaneseq
        %v524 = vshrl.u32 %v523, 7
        %v525 = vsub.s32 %v522, %v524
        %v526 = vrot.slane %v519, %v525
        %v527 = vcombine.low %v518, %v526
        %v529 = vunpack.c.l.s4 1934713408
        %v530 = vunpack.c.0.s8 %v529
        %v531 = vlaneseq
        %v532 = vshrl.u32 %v531, 7
        %v533 = vsub.s32 %v530, %v532
        %v534 = vrot.slane %v527, %v533
        %v535 = vcombine.high %v534, 0
        %v536 = vcombine.low %v501, %v508
        %v538 = vunpack.c.l.s4 1983009808
        %v539 = vunpack.c.0.s8 %v538
        %v540 = vlaneseq
        %v541 = vshrl.u32 %v540, 7
        %v542 = vsub.s32 %v539, %v541
        %v543 = vrot.slane %v536, %v542
        %v544 = vcombine.low %v509, %v510
        %v546 = vunpack.c.l.s4 1983009808
        %v547 = vunpack.c.0.s8 %v546
        %v548 = vlaneseq
        %v549 = vshrl.u32 %v548, 7
        %v550 = vsub.s32 %v547, %v549
        %v551 = vrot.slane %v544, %v550
        %v552 = vcombine.low %v543, %v551
        %v554 = vunpack.c.l.s4 1934713408
        %v555 = vunpack.c.0.s8 %v554
        %v556 = vlaneseq
        %v557 = vshrl.u32 %v556, 7
        %v558 = vsub.s32 %v555, %v557
        %v559 = vrot.slane %v552, %v558
        %v560 = vcombine.high %v559, 0
        %v563 = vpack.i.b16 %v559, %v534
        %v564 = vshrl.u32 %v534, 16
        %v565 = vshrl.u32 %v559, 16
        %v566 = vpack.i.b16 %v565, %v564
        %v569 = vpack.i.b16 %v560, %v535
        %v570 = vshrl.u32 %v535, 16
        %v571 = vshrl.u32 %v560, 16
        %v572 = vpack.i.b16 %v571, %v570
        %573 = vrot.lane.b32.xlu0 %v419, 96
        %v574 = vpop.permute.xlu0 %573
        %575 = vrot.lane.b32.xlu0 %v426, 96
        %v576 = vpop.permute.xlu0 %575
        %577 = vrot.lane.b32.xlu0 %v428, 96
        %v578 = vpop.permute.xlu0 %577
        %579 = vrot.lane.b32.xlu0 %v430, 96
        %v580 = vpop.permute.xlu0 %579
        %v583 = vpack.i.b16 %v576, %v574
        %v584 = vshrl.u32 %v574, 16
        %v585 = vshrl.u32 %v576, 16
        %v586 = vpack.i.b16 %v585, %v584
        %v589 = vpack.i.b16 %v580, %v578
        %v590 = vshrl.u32 %v578, 16
        %v591 = vshrl.u32 %v580, 16
        %v592 = vpack.i.b16 %v591, %v590
        %v595 = vunpack.c.l.s4 1983009808
        %v596 = vunpack.c.0.s8 %v595
        %v597 = vlaneseq
        %v598 = vshrl.u32 %v597, 7
        %v599 = vsub.s32 %v596, %v598
        %v600 = vrot.slane %v583, %v599
        %v603 = vunpack.c.l.s4 1983009808
        %v604 = vunpack.c.0.s8 %v603
        %v605 = vlaneseq
        %v606 = vshrl.u32 %v605, 7
        %v607 = vsub.s32 %v604, %v606
        %v608 = vrot.slane %v589, %v607
        %v609 = vcombine.low %v600, %v608
        %v610 = vcombine.high %v600, %v608
        %v612 = vunpack.c.l.s4 1934713408
        %v613 = vunpack.c.0.s8 %v612
        %v614 = vlaneseq
        %v615 = vshrl.u32 %v614, 7
        %v616 = vsub.s32 %v613, %v615
        %v617 = vrot.slane %v609, %v616
        %v619 = vunpack.c.l.s4 1934713408
        %v620 = vunpack.c.0.s8 %v619
        %v621 = vlaneseq
        %v622 = vshrl.u32 %v621, 7
        %v623 = vsub.s32 %v620, %v622
        %v624 = vrot.slane %v610, %v623
        %v625 = vcombine.high %v617, 0
        %v626 = vcombine.high %v624, 0
        %v629 = vunpack.c.l.s4 1983009808
        %v630 = vunpack.c.0.s8 %v629
        %v631 = vlaneseq
        %v632 = vshrl.u32 %v631, 7
        %v633 = vsub.s32 %v630, %v632
        %v634 = vrot.slane %v586, %v633
        %v637 = vunpack.c.l.s4 1983009808
        %v638 = vunpack.c.0.s8 %v637
        %v639 = vlaneseq
        %v640 = vshrl.u32 %v639, 7
        %v641 = vsub.s32 %v638, %v640
        %v642 = vrot.slane %v592, %v641
        %v643 = vcombine.low %v634, %v642
        %v644 = vcombine.high %v634, %v642
        %v646 = vunpack.c.l.s4 1934713408
        %v647 = vunpack.c.0.s8 %v646
        %v648 = vlaneseq
        %v649 = vshrl.u32 %v648, 7
        %v650 = vsub.s32 %v647, %v649
        %v651 = vrot.slane %v643, %v650
        %v653 = vunpack.c.l.s4 1934713408
        %v654 = vunpack.c.0.s8 %v653
        %v655 = vlaneseq
        %v656 = vshrl.u32 %v655, 7
        %v657 = vsub.s32 %v654, %v656
        %v658 = vrot.slane %v644, %v657
        %v659 = vcombine.high %v651, 0
        %v660 = vcombine.high %v658, 0
        %v661 = vcombine.low %v617, %v624
        %v663 = vunpack.c.l.s4 1983009808
        %v664 = vunpack.c.0.s8 %v663
        %v665 = vlaneseq
        %v666 = vshrl.u32 %v665, 7
        %v667 = vsub.s32 %v664, %v666
        %v668 = vrot.slane %v661, %v667
        %v669 = vcombine.low %v625, %v626
        %v671 = vunpack.c.l.s4 1983009808
        %v672 = vunpack.c.0.s8 %v671
        %v673 = vlaneseq
        %v674 = vshrl.u32 %v673, 7
        %v675 = vsub.s32 %v672, %v674
        %v676 = vrot.slane %v669, %v675
        %v677 = vcombine.low %v668, %v676
        %v679 = vunpack.c.l.s4 1934713408
        %v680 = vunpack.c.0.s8 %v679
        %v681 = vlaneseq
        %v682 = vshrl.u32 %v681, 7
        %v683 = vsub.s32 %v680, %v682
        %v684 = vrot.slane %v677, %v683
        %v685 = vcombine.high %v684, 0
        %v686 = vcombine.low %v651, %v658
        %v688 = vunpack.c.l.s4 1983009808
        %v689 = vunpack.c.0.s8 %v688
        %v690 = vlaneseq
        %v691 = vshrl.u32 %v690, 7
        %v692 = vsub.s32 %v689, %v691
        %v693 = vrot.slane %v686, %v692
        %v694 = vcombine.low %v659, %v660
        %v696 = vunpack.c.l.s4 1983009808
        %v697 = vunpack.c.0.s8 %v696
        %v698 = vlaneseq
        %v699 = vshrl.u32 %v698, 7
        %v700 = vsub.s32 %v697, %v699
        %v701 = vrot.slane %v694, %v700
        %v702 = vcombine.low %v693, %v701
        %v704 = vunpack.c.l.s4 1934713408
        %v705 = vunpack.c.0.s8 %v704
        %v706 = vlaneseq
        %v707 = vshrl.u32 %v706, 7
        %v708 = vsub.s32 %v705, %v707
        %v709 = vrot.slane %v702, %v708
        %v710 = vcombine.high %v709, 0
        %v713 = vpack.i.b16 %v709, %v684
        %v714 = vshrl.u32 %v684, 16
        %v715 = vshrl.u32 %v709, 16
        %v716 = vpack.i.b16 %v715, %v714
        %v719 = vpack.i.b16 %v710, %v685
        %v720 = vshrl.u32 %v685, 16
        %v721 = vshrl.u32 %v710, 16
        %v722 = vpack.i.b16 %v721, %v720
        %vm723 = vcmask 64512
        %v725 = vsel %vm723, %v421, 0
        %v728 = vsel %vm723, %v563, 0
        %730 = vmatprep.subr.bf16.mxu0 0
        %731 = vmatpush1.bf16.xpose.msra.mxu0 0
        %732 = vmatprep.subr.bf16.mxu0 0
        %733 = vmatpush1.bf16.xpose.msra.mxu0 0
        %734 = vmatprep.subr.bf16.mxu0 0
        %735 = vmatpush1.bf16.xpose.msra.mxu0 0
        %736 = vmatprep.subr.bf16.mxu0 0
        %737 = vmatpush1.bf16.xpose.msra.mxu0 0
        %738 = vmatprep.subr.bf16.mxu0 0
        %739 = vmatpush1.bf16.xpose.msra.mxu0 0
        %740 = vmatprep.subr.bf16.mxu0 0
        %741 = vmatpush1.bf16.xpose.msra.mxu0 0
        %742 = vmatprep.subr.bf16.mxu0 0
        %743 = vmatpush1.bf16.xpose.msra.mxu0 0
        %744 = vmatprep.subr.bf16.mxu0 0
        %745 = vmatpush1.bf16.xpose.msra.mxu0 %v728
        %746 = vmatprep.subr.bf16.mxu0 0
        %747 = vmatpush2.bf16.xpose.msra.mxu0 0
        %748 = vmatprep.subr.bf16.mxu0 0
        %749 = vmatpush2.bf16.xpose.msra.mxu0 0
        %750 = vmatprep.subr.bf16.mxu0 0
        %751 = vmatpush2.bf16.xpose.msra.mxu0 0
        %752 = vmatprep.subr.bf16.mxu0 0
        %753 = vmatpush2.bf16.xpose.msra.mxu0 0
        %754 = vmatprep.subr.bf16.mxu0 0
        %755 = vmatpush2.bf16.xpose.msra.mxu0 0
        %756 = vmatprep.subr.bf16.mxu0 0
        %757 = vmatpush2.bf16.xpose.msra.mxu0 0
        %758 = vmatprep.subr.bf16.mxu0 0
        %759 = vmatpush2.bf16.xpose.msra.mxu0 0
        %760 = vmatprep.subr.bf16.mxu0 0
        %761 = vmatpush2.bf16.xpose.msra.mxu0 0
        %762 = vmatprep.mubr.bf16.mxu0 0
        %763 = vmatmul.mubr.bf16.gmra.mxu0 %v725
        %v764 = vpop.f32.mrf.mxu0
        %v765 = vadd.f32 0.0, %v764
        %v766 = vpop.f32.mrf.mxu0
        %v767 = vpop.f32.mrf.mxu0
        %v768 = vpop.f32.mrf.mxu0
        %769 = vdwg.mxu0
        %v771 = vsel %vm723, %v422, 0
        %v774 = vsel %vm723, %v566, 0
        %776 = vmatprep.subr.bf16.mxu0 0
        %777 = vmatpush1.bf16.xpose.msra.mxu0 0
        %778 = vmatprep.subr.bf16.mxu0 0
        %779 = vmatpush1.bf16.xpose.msra.mxu0 0
        %780 = vmatprep.subr.bf16.mxu0 0
        %781 = vmatpush1.bf16.xpose.msra.mxu0 0
        %782 = vmatprep.subr.bf16.mxu0 0
        %783 = vmatpush1.bf16.xpose.msra.mxu0 0
        %784 = vmatprep.subr.bf16.mxu0 0
        %785 = vmatpush1.bf16.xpose.msra.mxu0 0
        %786 = vmatprep.subr.bf16.mxu0 0
        %787 = vmatpush1.bf16.xpose.msra.mxu0 0
        %788 = vmatprep.subr.bf16.mxu0 0
        %789 = vmatpush1.bf16.xpose.msra.mxu0 0
        %790 = vmatprep.subr.bf16.mxu0 0
        %791 = vmatpush1.bf16.xpose.msra.mxu0 %v774
        %792 = vmatprep.subr.bf16.mxu0 0
        %793 = vmatpush2.bf16.xpose.msra.mxu0 0
        %794 = vmatprep.subr.bf16.mxu0 0
        %795 = vmatpush2.bf16.xpose.msra.mxu0 0
        %796 = vmatprep.subr.bf16.mxu0 0
        %797 = vmatpush2.bf16.xpose.msra.mxu0 0
        %798 = vmatprep.subr.bf16.mxu0 0
        %799 = vmatpush2.bf16.xpose.msra.mxu0 0
        %800 = vmatprep.subr.bf16.mxu0 0
        %801 = vmatpush2.bf16.xpose.msra.mxu0 0
        %802 = vmatprep.subr.bf16.mxu0 0
        %803 = vmatpush2.bf16.xpose.msra.mxu0 0
        %804 = vmatprep.subr.bf16.mxu0 0
        %805 = vmatpush2.bf16.xpose.msra.mxu0 0
        %806 = vmatprep.subr.bf16.mxu0 0
        %807 = vmatpush2.bf16.xpose.msra.mxu0 0
        %808 = vmatprep.mubr.bf16.mxu0 0
        %809 = vmatmul.mubr.bf16.gmra.mxu0 %v771
        %v810 = vpop.f32.mrf.mxu0
        %v811 = vadd.f32 0.0, %v810
        %v812 = vpop.f32.mrf.mxu0
        %v813 = vpop.f32.mrf.mxu0
        %v814 = vpop.f32.mrf.mxu0
        %815 = vdwg.mxu0
        %v817 = vsel %vm723, %v423, 0
        %v820 = vsel %vm723, %v569, 0
        %822 = vmatprep.subr.bf16.mxu0 0
        %823 = vmatpush1.bf16.xpose.msra.mxu0 0
        %824 = vmatprep.subr.bf16.mxu0 0
        %825 = vmatpush1.bf16.xpose.msra.mxu0 0
        %826 = vmatprep.subr.bf16.mxu0 0
        %827 = vmatpush1.bf16.xpose.msra.mxu0 0
        %828 = vmatprep.subr.bf16.mxu0 0
        %829 = vmatpush1.bf16.xpose.msra.mxu0 0
        %830 = vmatprep.subr.bf16.mxu0 0
        %831 = vmatpush1.bf16.xpose.msra.mxu0 0
        %832 = vmatprep.subr.bf16.mxu0 0
        %833 = vmatpush1.bf16.xpose.msra.mxu0 0
        %834 = vmatprep.subr.bf16.mxu0 0
        %835 = vmatpush1.bf16.xpose.msra.mxu0 0
        %836 = vmatprep.subr.bf16.mxu0 0
        %837 = vmatpush1.bf16.xpose.msra.mxu0 %v820
        %838 = vmatprep.subr.bf16.mxu0 0
        %839 = vmatpush2.bf16.xpose.msra.mxu0 0
        %840 = vmatprep.subr.bf16.mxu0 0
        %841 = vmatpush2.bf16.xpose.msra.mxu0 0
        %842 = vmatprep.subr.bf16.mxu0 0
        %843 = vmatpush2.bf16.xpose.msra.mxu0 0
        %844 = vmatprep.subr.bf16.mxu0 0
        %845 = vmatpush2.bf16.xpose.msra.mxu0 0
        %846 = vmatprep.subr.bf16.mxu0 0
        %847 = vmatpush2.bf16.xpose.msra.mxu0 0
        %848 = vmatprep.subr.bf16.mxu0 0
        %849 = vmatpush2.bf16.xpose.msra.mxu0 0
        %850 = vmatprep.subr.bf16.mxu0 0
        %851 = vmatpush2.bf16.xpose.msra.mxu0 0
        %852 = vmatprep.subr.bf16.mxu0 0
        %853 = vmatpush2.bf16.xpose.msra.mxu0 0
        %854 = vmatprep.mubr.bf16.mxu0 0
        %855 = vmatmul.mubr.bf16.gmra.mxu0 %v817
        %v856 = vpop.f32.mrf.mxu0
        %v857 = vadd.f32 0.0, %v856
        %v858 = vpop.f32.mrf.mxu0
        %v859 = vpop.f32.mrf.mxu0
        %v860 = vpop.f32.mrf.mxu0
        %861 = vdwg.mxu0
        %v863 = vsel %vm723, %v424, 0
        %v866 = vsel %vm723, %v572, 0
        %868 = vmatprep.subr.bf16.mxu0 0
        %869 = vmatpush1.bf16.xpose.msra.mxu0 0
        %870 = vmatprep.subr.bf16.mxu0 0
        %871 = vmatpush1.bf16.xpose.msra.mxu0 0
        %872 = vmatprep.subr.bf16.mxu0 0
        %873 = vmatpush1.bf16.xpose.msra.mxu0 0
        %874 = vmatprep.subr.bf16.mxu0 0
        %875 = vmatpush1.bf16.xpose.msra.mxu0 0
        %876 = vmatprep.subr.bf16.mxu0 0
        %877 = vmatpush1.bf16.xpose.msra.mxu0 0
        %878 = vmatprep.subr.bf16.mxu0 0
        %879 = vmatpush1.bf16.xpose.msra.mxu0 0
        %880 = vmatprep.subr.bf16.mxu0 0
        %881 = vmatpush1.bf16.xpose.msra.mxu0 0
        %882 = vmatprep.subr.bf16.mxu0 0
        %883 = vmatpush1.bf16.xpose.msra.mxu0 %v866
        %884 = vmatprep.subr.bf16.mxu0 0
        %885 = vmatpush2.bf16.xpose.msra.mxu0 0
        %886 = vmatprep.subr.bf16.mxu0 0
        %887 = vmatpush2.bf16.xpose.msra.mxu0 0
        %888 = vmatprep.subr.bf16.mxu0 0
        %889 = vmatpush2.bf16.xpose.msra.mxu0 0
        %890 = vmatprep.subr.bf16.mxu0 0
        %891 = vmatpush2.bf16.xpose.msra.mxu0 0
        %892 = vmatprep.subr.bf16.mxu0 0
        %893 = vmatpush2.bf16.xpose.msra.mxu0 0
        %894 = vmatprep.subr.bf16.mxu0 0
        %895 = vmatpush2.bf16.xpose.msra.mxu0 0
        %896 = vmatprep.subr.bf16.mxu0 0
        %897 = vmatpush2.bf16.xpose.msra.mxu0 0
        %898 = vmatprep.subr.bf16.mxu0 0
        %899 = vmatpush2.bf16.xpose.msra.mxu0 0
        %900 = vmatprep.mubr.bf16.mxu0 0
        %901 = vmatmul.mubr.bf16.gmra.mxu0 %v863
        %v902 = vpop.f32.mrf.mxu0
        %v903 = vadd.f32 0.0, %v902
        %v904 = vpop.f32.mrf.mxu0
        %v905 = vpop.f32.mrf.mxu0
        %v906 = vpop.f32.mrf.mxu0
        %907 = vdwg.mxu0
        %v908 = vsel %vm723, %v765, -inf
        %909 = vmax.xlane.f32.xlu0 %v908
        %v910 = vpop.xlane.xlu0 %909
        %v911 = vsel %vm723, %v811, -inf
        %912 = vmax.xlane.f32.xlu0 %v911
        %v913 = vpop.xlane.xlu0 %912
        %v914 = vsel %vm723, %v857, -inf
        %915 = vmax.xlane.f32.xlu0 %v914
        %v916 = vpop.xlane.xlu0 %915
        %v917 = vsel %vm723, %v903, -inf
        %918 = vmax.xlane.f32.xlu0 %v917
        %v919 = vpop.xlane.xlu0 %918
        %v920 = vsub.f32 %v765, %v910
        %v921 = vsub.f32 %v811, %v913
        %v922 = vsub.f32 %v857, %v916
        %v923 = vsub.f32 %v903, %v919
        %v924 = vmul.f32 %v920, 1.442695
        %v925 = vpow.pop %v924
        %v926 = vmul.f32 %v921, 1.442695
        %v927 = vpow.pop %v926
        %v928 = vmul.f32 %v922, 1.442695
        %v929 = vpow.pop %v928
        %v930 = vmul.f32 %v923, 1.442695
        %v931 = vpow.pop %v930
        %v932 = vsel %vm723, %v925, 0.0
        %933 = vadd.xlane.f32.xlu0 %v932
        %v934 = vpop.xlane.xlu0 %933
        %v935 = vsel %vm723, %v927, 0.0
        %936 = vadd.xlane.f32.xlu0 %v935
        %v937 = vpop.xlane.xlu0 %936
        %v938 = vsel %vm723, %v929, 0.0
        %939 = vadd.xlane.f32.xlu0 %v938
        %v940 = vpop.xlane.xlu0 %939
        %v941 = vsel %vm723, %v931, 0.0
        %942 = vadd.xlane.f32.xlu0 %v941
        %v943 = vpop.xlane.xlu0 %942
        %v944 = vrcp.pop %v934
        %v945 = vrcp.pop %v937
        %v946 = vrcp.pop %v940
        %v947 = vrcp.pop %v943
        %v948 = vmul.f32 %v925, %v944
        %v949 = vmul.f32 %v927, %v945
        %v950 = vmul.f32 %v929, %v946
        %v951 = vmul.f32 %v931, %v947
        %v952 = vpack.c.bf16 %v948, %v948
        %v953 = vpack.c.bf16 %v949, %v949
        %v954 = vpack.c.bf16 %v950, %v950
        %v955 = vpack.c.bf16 %v951, %v951
        %v957 = vsel %vm723, %v952, 0
        %vm959 = vcmask 1043456
        %v961 = vsel %vm959, %v713, 0
        %963 = vmatprep.subr.bf16.mxu0 0
        %964 = vmatpush1.bf16.msra.mxu0 0
        %965 = vmatprep.subr.bf16.mxu0 0
        %966 = vmatpush1.bf16.msra.mxu0 0
        %967 = vmatprep.subr.bf16.mxu0 0
        %968 = vmatpush1.bf16.msra.mxu0 0
        %969 = vmatprep.subr.bf16.mxu0 0
        %970 = vmatpush1.bf16.msra.mxu0 0
        %971 = vmatprep.subr.bf16.mxu0 0
        %972 = vmatpush1.bf16.msra.mxu0 0
        %973 = vmatprep.subr.bf16.mxu0 0
        %974 = vmatpush1.bf16.msra.mxu0 0
        %975 = vmatprep.subr.bf16.mxu0 0
        %976 = vmatpush1.bf16.msra.mxu0 0
        %977 = vmatprep.subr.bf16.mxu0 0
        %978 = vmatpush1.bf16.msra.mxu0 %v961
        %979 = vmatprep.subr.bf16.mxu0 0
        %980 = vmatpush2.bf16.msra.mxu0 0
        %981 = vmatprep.subr.bf16.mxu0 0
        %982 = vmatpush2.bf16.msra.mxu0 0
        %983 = vmatprep.subr.bf16.mxu0 0
        %984 = vmatpush2.bf16.msra.mxu0 0
        %985 = vmatprep.subr.bf16.mxu0 0
        %986 = vmatpush2.bf16.msra.mxu0 0
        %987 = vmatprep.subr.bf16.mxu0 0
        %988 = vmatpush2.bf16.msra.mxu0 0
        %989 = vmatprep.subr.bf16.mxu0 0
        %990 = vmatpush2.bf16.msra.mxu0 0
        %991 = vmatprep.subr.bf16.mxu0 0
        %992 = vmatpush2.bf16.msra.mxu0 0
        %993 = vmatprep.subr.bf16.mxu0 0
        %994 = vmatpush2.bf16.msra.mxu0 0
        %995 = vmatprep.mubr.bf16.mxu0 0
        %996 = vmatmul.mubr.bf16.gmra.mxu0 %v957
        %v997 = vpop.f32.mrf.mxu0
        %v998 = vadd.f32 0.0, %v997
        %v999 = vpop.f32.mrf.mxu0
        %v1000 = vpop.f32.mrf.mxu0
        %v1001 = vpop.f32.mrf.mxu0
        %1002 = vdwg.mxu0
        %v1004 = vsel %vm723, %v953, 0
        %v1007 = vsel %vm959, %v716, 0
        %1009 = vmatprep.subr.bf16.mxu0 0
        %1010 = vmatpush1.bf16.msra.mxu0 0
        %1011 = vmatprep.subr.bf16.mxu0 0
        %1012 = vmatpush1.bf16.msra.mxu0 0
        %1013 = vmatprep.subr.bf16.mxu0 0
        %1014 = vmatpush1.bf16.msra.mxu0 0
        %1015 = vmatprep.subr.bf16.mxu0 0
        %1016 = vmatpush1.bf16.msra.mxu0 0
        %1017 = vmatprep.subr.bf16.mxu0 0
        %1018 = vmatpush1.bf16.msra.mxu0 0
        %1019 = vmatprep.subr.bf16.mxu0 0
        %1020 = vmatpush1.bf16.msra.mxu0 0
        %1021 = vmatprep.subr.bf16.mxu0 0
        %1022 = vmatpush1.bf16.msra.mxu0 0
        %1023 = vmatprep.subr.bf16.mxu0 0
        %1024 = vmatpush1.bf16.msra.mxu0 %v1007
        %1025 = vmatprep.subr.bf16.mxu0 0
        %1026 = vmatpush2.bf16.msra.mxu0 0
        %1027 = vmatprep.subr.bf16.mxu0 0
        %1028 = vmatpush2.bf16.msra.mxu0 0
        %1029 = vmatprep.subr.bf16.mxu0 0
        %1030 = vmatpush2.bf16.msra.mxu0 0
        %1031 = vmatprep.subr.bf16.mxu0 0
        %1032 = vmatpush2.bf16.msra.mxu0 0
        %1033 = vmatprep.subr.bf16.mxu0 0
        %1034 = vmatpush2.bf16.msra.mxu0 0
        %1035 = vmatprep.subr.bf16.mxu0 0
        %1036 = vmatpush2.bf16.msra.mxu0 0
        %1037 = vmatprep.subr.bf16.mxu0 0
        %1038 = vmatpush2.bf16.msra.mxu0 0
        %1039 = vmatprep.subr.bf16.mxu0 0
        %1040 = vmatpush2.bf16.msra.mxu0 0
        %1041 = vmatprep.mubr.bf16.mxu0 0
        %1042 = vmatmul.mubr.bf16.gmra.mxu0 %v1004
        %v1043 = vpop.f32.mrf.mxu0
        %v1044 = vadd.f32 0.0, %v1043
        %v1045 = vpop.f32.mrf.mxu0
        %v1046 = vpop.f32.mrf.mxu0
        %v1047 = vpop.f32.mrf.mxu0
        %1048 = vdwg.mxu0
        %v1050 = vsel %vm723, %v954, 0
        %v1053 = vsel %vm959, %v719, 0
        %1055 = vmatprep.subr.bf16.mxu0 0
        %1056 = vmatpush1.bf16.msra.mxu0 0
        %1057 = vmatprep.subr.bf16.mxu0 0
        %1058 = vmatpush1.bf16.msra.mxu0 0
        %1059 = vmatprep.subr.bf16.mxu0 0
        %1060 = vmatpush1.bf16.msra.mxu0 0
        %1061 = vmatprep.subr.bf16.mxu0 0
        %1062 = vmatpush1.bf16.msra.mxu0 0
        %1063 = vmatprep.subr.bf16.mxu0 0
        %1064 = vmatpush1.bf16.msra.mxu0 0
        %1065 = vmatprep.subr.bf16.mxu0 0
        %1066 = vmatpush1.bf16.msra.mxu0 0
        %1067 = vmatprep.subr.bf16.mxu0 0
        %1068 = vmatpush1.bf16.msra.mxu0 0
        %1069 = vmatprep.subr.bf16.mxu0 0
        %1070 = vmatpush1.bf16.msra.mxu0 %v1053
        %1071 = vmatprep.subr.bf16.mxu0 0
        %1072 = vmatpush2.bf16.msra.mxu0 0
        %1073 = vmatprep.subr.bf16.mxu0 0
        %1074 = vmatpush2.bf16.msra.mxu0 0
        %1075 = vmatprep.subr.bf16.mxu0 0
        %1076 = vmatpush2.bf16.msra.mxu0 0
        %1077 = vmatprep.subr.bf16.mxu0 0
        %1078 = vmatpush2.bf16.msra.mxu0 0
        %1079 = vmatprep.subr.bf16.mxu0 0
        %1080 = vmatpush2.bf16.msra.mxu0 0
        %1081 = vmatprep.subr.bf16.mxu0 0
        %1082 = vmatpush2.bf16.msra.mxu0 0
        %1083 = vmatprep.subr.bf16.mxu0 0
        %1084 = vmatpush2.bf16.msra.mxu0 0
        %1085 = vmatprep.subr.bf16.mxu0 0
        %1086 = vmatpush2.bf16.msra.mxu0 0
        %1087 = vmatprep.mubr.bf16.mxu0 0
        %1088 = vmatmul.mubr.bf16.gmra.mxu0 %v1050
        %v1089 = vpop.f32.mrf.mxu0
        %v1090 = vadd.f32 0.0, %v1089
        %v1091 = vpop.f32.mrf.mxu0
        %v1092 = vpop.f32.mrf.mxu0
        %v1093 = vpop.f32.mrf.mxu0
        %1094 = vdwg.mxu0
        %v1096 = vsel %vm723, %v955, 0
        %v1099 = vsel %vm959, %v722, 0
        %1101 = vmatprep.subr.bf16.mxu0 0
        %1102 = vmatpush1.bf16.msra.mxu0 0
        %1103 = vmatprep.subr.bf16.mxu0 0
        %1104 = vmatpush1.bf16.msra.mxu0 0
        %1105 = vmatprep.subr.bf16.mxu0 0
        %1106 = vmatpush1.bf16.msra.mxu0 0
        %1107 = vmatprep.subr.bf16.mxu0 0
        %1108 = vmatpush1.bf16.msra.mxu0 0
        %1109 = vmatprep.subr.bf16.mxu0 0
        %1110 = vmatpush1.bf16.msra.mxu0 0
        %1111 = vmatprep.subr.bf16.mxu0 0
        %1112 = vmatpush1.bf16.msra.mxu0 0
        %1113 = vmatprep.subr.bf16.mxu0 0
        %1114 = vmatpush1.bf16.msra.mxu0 0
        %1115 = vmatprep.subr.bf16.mxu0 0
        %1116 = vmatpush1.bf16.msra.mxu0 %v1099
        %1117 = vmatprep.subr.bf16.mxu0 0
        %1118 = vmatpush2.bf16.msra.mxu0 0
        %1119 = vmatprep.subr.bf16.mxu0 0
        %1120 = vmatpush2.bf16.msra.mxu0 0
        %1121 = vmatprep.subr.bf16.mxu0 0
        %1122 = vmatpush2.bf16.msra.mxu0 0
        %1123 = vmatprep.subr.bf16.mxu0 0
        %1124 = vmatpush2.bf16.msra.mxu0 0
        %1125 = vmatprep.subr.bf16.mxu0 0
        %1126 = vmatpush2.bf16.msra.mxu0 0
        %1127 = vmatprep.subr.bf16.mxu0 0
        %1128 = vmatpush2.bf16.msra.mxu0 0
        %1129 = vmatprep.subr.bf16.mxu0 0
        %1130 = vmatpush2.bf16.msra.mxu0 0
        %1131 = vmatprep.subr.bf16.mxu0 0
        %1132 = vmatpush2.bf16.msra.mxu0 0
        %1133 = vmatprep.mubr.bf16.mxu0 0
        %1134 = vmatmul.mubr.bf16.gmra.mxu0 %v1096
        %v1135 = vpop.f32.mrf.mxu0
        %v1136 = vadd.f32 0.0, %v1135
        %v1137 = vpop.f32.mrf.mxu0
        %v1138 = vpop.f32.mrf.mxu0
        %v1139 = vpop.f32.mrf.mxu0
        %1140 = vdwg.mxu0
        %v1141 = vpack.c.bf16 %v998, %v998
        %v1143 = vunpack.c.l.s4 1983009808
        %v1144 = vunpack.c.0.s8 %v1143
        %v1145 = vlaneseq
        %v1146 = vshrl.u32 %v1145, 7
        %v1147 = vsub.s32 %v1144, %v1146
        %v1148 = vrot.slane %v1141, %v1147
        %v1149 = vpack.c.bf16 %v1090, %v1090
        %v1151 = vunpack.c.l.s4 1983009808
        %v1152 = vunpack.c.0.s8 %v1151
        %v1153 = vlaneseq
        %v1154 = vshrl.u32 %v1153, 7
        %v1155 = vsub.s32 %v1152, %v1154
        %v1156 = vrot.slane %v1149, %v1155
        %v1157 = vcombine.low %v1148, %v1156
        %v1158 = vcombine.high %v1148, %v1156
        %v1160 = vunpack.c.l.s4 1934713408
        %v1161 = vunpack.c.0.s8 %v1160
        %v1162 = vlaneseq
        %v1163 = vshrl.u32 %v1162, 7
        %v1164 = vsub.s32 %v1161, %v1163
        %v1165 = vrot.slane %v1157, %v1164
        %v1167 = vunpack.c.l.s4 1934713408
        %v1168 = vunpack.c.0.s8 %v1167
        %v1169 = vlaneseq
        %v1170 = vshrl.u32 %v1169, 7
        %v1171 = vsub.s32 %v1168, %v1170
        %v1172 = vrot.slane %v1158, %v1171
        %v1173 = vcombine.high %v1165, 0
        %v1174 = vcombine.high %v1172, 0
        %v1175 = vpack.c.bf16 %v1044, %v1044
        %v1177 = vunpack.c.l.s4 1983009808
        %v1178 = vunpack.c.0.s8 %v1177
        %v1179 = vlaneseq
        %v1180 = vshrl.u32 %v1179, 7
        %v1181 = vsub.s32 %v1178, %v1180
        %v1182 = vrot.slane %v1175, %v1181
        %v1183 = vpack.c.bf16 %v1136, %v1136
        %v1185 = vunpack.c.l.s4 1983009808
        %v1186 = vunpack.c.0.s8 %v1185
        %v1187 = vlaneseq
        %v1188 = vshrl.u32 %v1187, 7
        %v1189 = vsub.s32 %v1186, %v1188
        %v1190 = vrot.slane %v1183, %v1189
        %v1191 = vcombine.low %v1182, %v1190
        %v1192 = vcombine.high %v1182, %v1190
        %v1194 = vunpack.c.l.s4 1934713408
        %v1195 = vunpack.c.0.s8 %v1194
        %v1196 = vlaneseq
        %v1197 = vshrl.u32 %v1196, 7
        %v1198 = vsub.s32 %v1195, %v1197
        %v1199 = vrot.slane %v1191, %v1198
        %v1201 = vunpack.c.l.s4 1934713408
        %v1202 = vunpack.c.0.s8 %v1201
        %v1203 = vlaneseq
        %v1204 = vshrl.u32 %v1203, 7
        %v1205 = vsub.s32 %v1202, %v1204
        %v1206 = vrot.slane %v1192, %v1205
        %v1207 = vcombine.high %v1199, 0
        %v1208 = vcombine.high %v1206, 0
        %v1211 = vpack.i.b16 %v1199, %v1165
        %v1213 = vshrl.u32 %v1165, 16
        %v1214 = vshrl.u32 %v1199, 16
        %v1215 = vpack.i.b16 %v1214, %v1213
        %v1219 = vpack.i.b16 %v1207, %v1173
        %v1221 = vshrl.u32 %v1173, 16
        %v1222 = vshrl.u32 %v1207, 16
        %v1223 = vpack.i.b16 %v1222, %v1221
        %v1227 = vpack.i.b16 %v1206, %v1172
        %v1229 = vshrl.u32 %v1172, 16
        %v1230 = vshrl.u32 %v1206, 16
        %v1231 = vpack.i.b16 %v1230, %v1229
        %v1235 = vpack.i.b16 %v1208, %v1174
        %v1237 = vshrl.u32 %v1174, 16
        %v1238 = vshrl.u32 %v1208, 16
        %v1239 = vpack.i.b16 %v1238, %v1237
        %v1241 = vcombine.low %v1211, %v1227
        %v1243 = vunpack.c.l.s4 1983009808
        %v1244 = vunpack.c.0.s8 %v1243
        %v1245 = vlaneseq
        %v1246 = vshrl.u32 %v1245, 7
        %v1247 = vsub.s32 %v1244, %v1246
        %v1248 = vrot.slane %v1241, %v1247
        %v1249 = vcombine.low %v1219, %v1235
        %v1251 = vunpack.c.l.s4 1983009808
        %v1252 = vunpack.c.0.s8 %v1251
        %v1253 = vlaneseq
        %v1254 = vshrl.u32 %v1253, 7
        %v1255 = vsub.s32 %v1252, %v1254
        %v1256 = vrot.slane %v1249, %v1255
        %v1257 = vcombine.low %v1248, %v1256
        %v1259 = vunpack.c.l.s4 1934713408
        %v1260 = vunpack.c.0.s8 %v1259
        %v1261 = vlaneseq
        %v1262 = vshrl.u32 %v1261, 7
        %v1263 = vsub.s32 %v1260, %v1262
        %v1264 = vrot.slane %v1257, %v1263
        %v1265 = vcombine.high %v1264, 0
        %v1266 = vcombine.low %v1215, %v1231
        %v1268 = vunpack.c.l.s4 1983009808
        %v1269 = vunpack.c.0.s8 %v1268
        %v1270 = vlaneseq
        %v1271 = vshrl.u32 %v1270, 7
        %v1272 = vsub.s32 %v1269, %v1271
        %v1273 = vrot.slane %v1266, %v1272
        %v1274 = vcombine.low %v1223, %v1239
        %v1276 = vunpack.c.l.s4 1983009808
        %v1277 = vunpack.c.0.s8 %v1276
        %v1278 = vlaneseq
        %v1279 = vshrl.u32 %v1278, 7
        %v1280 = vsub.s32 %v1277, %v1279
        %v1281 = vrot.slane %v1274, %v1280
        %v1282 = vcombine.low %v1273, %v1281
        %v1284 = vunpack.c.l.s4 1934713408
        %v1285 = vunpack.c.0.s8 %v1284
        %v1286 = vlaneseq
        %v1287 = vshrl.u32 %v1286, 7
        %v1288 = vsub.s32 %v1285, %v1287
        %v1289 = vrot.slane %v1282, %v1288
        %v1290 = vcombine.high %v1289, 0
        %v1293 = vpack.i.b16 %v1289, %v1264
        %v1294 = vshrl.u32 %v1264, 16
        %v1295 = vshrl.u32 %v1289, 16
        %v1296 = vpack.i.b16 %v1295, %v1294
        %v1299 = vpack.i.b16 %v1290, %v1265
        %v1300 = vshrl.u32 %v1265, 16
        %v1301 = vshrl.u32 %v1290, 16
        %v1302 = vpack.i.b16 %v1301, %v1300
        %1303 = vrot.lane.b32.xlu0 %v1296, 8
        %v1304 = vpop.permute.xlu0 %1303
        %1305 = vrot.lane.b32.xlu0 %v1299, 16
        %v1306 = vpop.permute.xlu0 %1305
        %1307 = vrot.lane.b32.xlu0 %v1302, 24
        %v1308 = vpop.permute.xlu0 %1307
        %v1311 = vsel %vm723, %v1293, %v1304
        %vm1312 = vcmask 130048
        %v1314 = vsel %vm1312, %v1311, %v1306
        %vm1315 = vcmask 195584
        %v1317 = vsel %vm1315, %v1314, %v1308
        %1318 = vrot.lane.b32.xlu0 %v420, 120
        %v1319 = vpop.permute.xlu0 %1318
        %1320 = vrot.lane.b32.xlu0 %v420, 112
        %v1321 = vpop.permute.xlu0 %1320
        %1322 = vrot.lane.b32.xlu0 %v420, 104
        %v1323 = vpop.permute.xlu0 %1322
        %v1326 = vpack.i.b16 %v1319, %v420
        %v1327 = vshrl.u32 %v420, 16
        %v1328 = vshrl.u32 %v1319, 16
        %v1329 = vpack.i.b16 %v1328, %v1327
        %v1332 = vpack.i.b16 %v1323, %v1321
        %v1333 = vshrl.u32 %v1321, 16
        %v1334 = vshrl.u32 %v1323, 16
        %v1335 = vpack.i.b16 %v1334, %v1333
        %v1338 = vunpack.c.l.s4 1983009808
        %v1339 = vunpack.c.0.s8 %v1338
        %v1340 = vlaneseq
        %v1341 = vshrl.u32 %v1340, 7
        %v1342 = vsub.s32 %v1339, %v1341
        %v1343 = vrot.slane %v1326, %v1342
        %v1346 = vunpack.c.l.s4 1983009808
        %v1347 = vunpack.c.0.s8 %v1346
        %v1348 = vlaneseq
        %v1349 = vshrl.u32 %v1348, 7
        %v1350 = vsub.s32 %v1347, %v1349
        %v1351 = vrot.slane %v1332, %v1350
        %v1352 = vcombine.low %v1343, %v1351
        %v1353 = vcombine.high %v1343, %v1351
        %v1355 = vunpack.c.l.s4 1934713408
        %v1356 = vunpack.c.0.s8 %v1355
        %v1357 = vlaneseq
        %v1358 = vshrl.u32 %v1357, 7
        %v1359 = vsub.s32 %v1356, %v1358
        %v1360 = vrot.slane %v1352, %v1359
        %v1362 = vunpack.c.l.s4 1934713408
        %v1363 = vunpack.c.0.s8 %v1362
        %v1364 = vlaneseq
        %v1365 = vshrl.u32 %v1364, 7
        %v1366 = vsub.s32 %v1363, %v1365
        %v1367 = vrot.slane %v1353, %v1366
        %v1368 = vcombine.high %v1360, 0
        %v1369 = vcombine.high %v1367, 0
        %v1372 = vunpack.c.l.s4 1983009808
        %v1373 = vunpack.c.0.s8 %v1372
        %v1374 = vlaneseq
        %v1375 = vshrl.u32 %v1374, 7
        %v1376 = vsub.s32 %v1373, %v1375
        %v1377 = vrot.slane %v1329, %v1376
        %v1380 = vunpack.c.l.s4 1983009808
        %v1381 = vunpack.c.0.s8 %v1380
        %v1382 = vlaneseq
        %v1383 = vshrl.u32 %v1382, 7
        %v1384 = vsub.s32 %v1381, %v1383
        %v1385 = vrot.slane %v1335, %v1384
        %v1386 = vcombine.low %v1377, %v1385
        %v1387 = vcombine.high %v1377, %v1385
        %v1389 = vunpack.c.l.s4 1934713408
        %v1390 = vunpack.c.0.s8 %v1389
        %v1391 = vlaneseq
        %v1392 = vshrl.u32 %v1391, 7
        %v1393 = vsub.s32 %v1390, %v1392
        %v1394 = vrot.slane %v1386, %v1393
        %v1396 = vunpack.c.l.s4 1934713408
        %v1397 = vunpack.c.0.s8 %v1396
        %v1398 = vlaneseq
        %v1399 = vshrl.u32 %v1398, 7
        %v1400 = vsub.s32 %v1397, %v1399
        %v1401 = vrot.slane %v1387, %v1400
        %v1402 = vcombine.high %v1394, 0
        %v1403 = vcombine.high %v1401, 0
        %v1404 = vcombine.low %v1360, %v1367
        %v1406 = vunpack.c.l.s4 1983009808
        %v1407 = vunpack.c.0.s8 %v1406
        %v1408 = vlaneseq
        %v1409 = vshrl.u32 %v1408, 7
        %v1410 = vsub.s32 %v1407, %v1409
        %v1411 = vrot.slane %v1404, %v1410
        %v1412 = vcombine.low %v1368, %v1369
        %v1414 = vunpack.c.l.s4 1983009808
        %v1415 = vunpack.c.0.s8 %v1414
        %v1416 = vlaneseq
        %v1417 = vshrl.u32 %v1416, 7
        %v1418 = vsub.s32 %v1415, %v1417
        %v1419 = vrot.slane %v1412, %v1418
        %v1420 = vcombine.low %v1411, %v1419
        %v1422 = vunpack.c.l.s4 1934713408
        %v1423 = vunpack.c.0.s8 %v1422
        %v1424 = vlaneseq
        %v1425 = vshrl.u32 %v1424, 7
        %v1426 = vsub.s32 %v1423, %v1425
        %v1427 = vrot.slane %v1420, %v1426
        %v1428 = vcombine.high %v1427, 0
        %v1429 = vcombine.low %v1394, %v1401
        %v1431 = vunpack.c.l.s4 1983009808
        %v1432 = vunpack.c.0.s8 %v1431
        %v1433 = vlaneseq
        %v1434 = vshrl.u32 %v1433, 7
        %v1435 = vsub.s32 %v1432, %v1434
        %v1436 = vrot.slane %v1429, %v1435
        %v1437 = vcombine.low %v1402, %v1403
        %v1439 = vunpack.c.l.s4 1983009808
        %v1440 = vunpack.c.0.s8 %v1439
        %v1441 = vlaneseq
        %v1442 = vshrl.u32 %v1441, 7
        %v1443 = vsub.s32 %v1440, %v1442
        %v1444 = vrot.slane %v1437, %v1443
        %v1445 = vcombine.low %v1436, %v1444
        %v1447 = vunpack.c.l.s4 1934713408
        %v1448 = vunpack.c.0.s8 %v1447
        %v1449 = vlaneseq
        %v1450 = vshrl.u32 %v1449, 7
        %v1451 = vsub.s32 %v1448, %v1450
        %v1452 = vrot.slane %v1445, %v1451
        %v1453 = vcombine.high %v1452, 0
        %v1456 = vpack.i.b16 %v1452, %v1427
        %v1457 = vshrl.u32 %v1427, 16
        %v1458 = vshrl.u32 %v1452, 16
        %v1459 = vpack.i.b16 %v1458, %v1457
        %v1462 = vpack.i.b16 %v1453, %v1428
        %v1463 = vshrl.u32 %v1428, 16
        %v1464 = vshrl.u32 %v1453, 16
        %v1465 = vpack.i.b16 %v1464, %v1463
        %1466 = vrot.lane.b32.xlu0 %v420, 96
        %v1467 = vpop.permute.xlu0 %1466
        %1468 = vrot.lane.b32.xlu0 %v1319, 96
        %v1469 = vpop.permute.xlu0 %1468
        %1470 = vrot.lane.b32.xlu0 %v1321, 96
        %v1471 = vpop.permute.xlu0 %1470
        %1472 = vrot.lane.b32.xlu0 %v1323, 96
        %v1473 = vpop.permute.xlu0 %1472
        %v1476 = vpack.i.b16 %v1469, %v1467
        %v1477 = vshrl.u32 %v1467, 16
        %v1478 = vshrl.u32 %v1469, 16
        %v1479 = vpack.i.b16 %v1478, %v1477
        %v1482 = vpack.i.b16 %v1473, %v1471
        %v1483 = vshrl.u32 %v1471, 16
        %v1484 = vshrl.u32 %v1473, 16
        %v1485 = vpack.i.b16 %v1484, %v1483
        %v1488 = vunpack.c.l.s4 1983009808
        %v1489 = vunpack.c.0.s8 %v1488
        %v1490 = vlaneseq
        %v1491 = vshrl.u32 %v1490, 7
        %v1492 = vsub.s32 %v1489, %v1491
        %v1493 = vrot.slane %v1476, %v1492
        %v1496 = vunpack.c.l.s4 1983009808
        %v1497 = vunpack.c.0.s8 %v1496
        %v1498 = vlaneseq
        %v1499 = vshrl.u32 %v1498, 7
        %v1500 = vsub.s32 %v1497, %v1499
        %v1501 = vrot.slane %v1482, %v1500
        %v1502 = vcombine.low %v1493, %v1501
        %v1503 = vcombine.high %v1493, %v1501
        %v1505 = vunpack.c.l.s4 1934713408
        %v1506 = vunpack.c.0.s8 %v1505
        %v1507 = vlaneseq
        %v1508 = vshrl.u32 %v1507, 7
        %v1509 = vsub.s32 %v1506, %v1508
        %v1510 = vrot.slane %v1502, %v1509
        %v1512 = vunpack.c.l.s4 1934713408
        %v1513 = vunpack.c.0.s8 %v1512
        %v1514 = vlaneseq
        %v1515 = vshrl.u32 %v1514, 7
        %v1516 = vsub.s32 %v1513, %v1515
        %v1517 = vrot.slane %v1503, %v1516
        %v1518 = vcombine.high %v1510, 0
        %v1519 = vcombine.high %v1517, 0
        %v1522 = vunpack.c.l.s4 1983009808
        %v1523 = vunpack.c.0.s8 %v1522
        %v1524 = vlaneseq
        %v1525 = vshrl.u32 %v1524, 7
        %v1526 = vsub.s32 %v1523, %v1525
        %v1527 = vrot.slane %v1479, %v1526
        %v1530 = vunpack.c.l.s4 1983009808
        %v1531 = vunpack.c.0.s8 %v1530
        %v1532 = vlaneseq
        %v1533 = vshrl.u32 %v1532, 7
        %v1534 = vsub.s32 %v1531, %v1533
        %v1535 = vrot.slane %v1485, %v1534
        %v1536 = vcombine.low %v1527, %v1535
        %v1537 = vcombine.high %v1527, %v1535
        %v1539 = vunpack.c.l.s4 1934713408
        %v1540 = vunpack.c.0.s8 %v1539
        %v1541 = vlaneseq
        %v1542 = vshrl.u32 %v1541, 7
        %v1543 = vsub.s32 %v1540, %v1542
        %v1544 = vrot.slane %v1536, %v1543
        %v1546 = vunpack.c.l.s4 1934713408
        %v1547 = vunpack.c.0.s8 %v1546
        %v1548 = vlaneseq
        %v1549 = vshrl.u32 %v1548, 7
        %v1550 = vsub.s32 %v1547, %v1549
        %v1551 = vrot.slane %v1537, %v1550
        %v1552 = vcombine.high %v1544, 0
        %v1553 = vcombine.high %v1551, 0
        %v1554 = vcombine.low %v1510, %v1517
        %v1556 = vunpack.c.l.s4 1983009808
        %v1557 = vunpack.c.0.s8 %v1556
        %v1558 = vlaneseq
        %v1559 = vshrl.u32 %v1558, 7
        %v1560 = vsub.s32 %v1557, %v1559
        %v1561 = vrot.slane %v1554, %v1560
        %v1562 = vcombine.low %v1518, %v1519
        %v1564 = vunpack.c.l.s4 1983009808
        %v1565 = vunpack.c.0.s8 %v1564
        %v1566 = vlaneseq
        %v1567 = vshrl.u32 %v1566, 7
        %v1568 = vsub.s32 %v1565, %v1567
        %v1569 = vrot.slane %v1562, %v1568
        %v1570 = vcombine.low %v1561, %v1569
        %v1572 = vunpack.c.l.s4 1934713408
        %v1573 = vunpack.c.0.s8 %v1572
        %v1574 = vlaneseq
        %v1575 = vshrl.u32 %v1574, 7
        %v1576 = vsub.s32 %v1573, %v1575
        %v1577 = vrot.slane %v1570, %v1576
        %v1578 = vcombine.high %v1577, 0
        %v1579 = vcombine.low %v1544, %v1551
        %v1581 = vunpack.c.l.s4 1983009808
        %v1582 = vunpack.c.0.s8 %v1581
        %v1583 = vlaneseq
        %v1584 = vshrl.u32 %v1583, 7
        %v1585 = vsub.s32 %v1582, %v1584
        %v1586 = vrot.slane %v1579, %v1585
        %v1587 = vcombine.low %v1552, %v1553
        %v1589 = vunpack.c.l.s4 1983009808
        %v1590 = vunpack.c.0.s8 %v1589
        %v1591 = vlaneseq
        %v1592 = vshrl.u32 %v1591, 7
        %v1593 = vsub.s32 %v1590, %v1592
        %v1594 = vrot.slane %v1587, %v1593
        %v1595 = vcombine.low %v1586, %v1594
        %v1597 = vunpack.c.l.s4 1934713408
        %v1598 = vunpack.c.0.s8 %v1597
        %v1599 = vlaneseq
        %v1600 = vshrl.u32 %v1599, 7
        %v1601 = vsub.s32 %v1598, %v1600
        %v1602 = vrot.slane %v1595, %v1601
        %v1603 = vcombine.high %v1602, 0
        %v1606 = vpack.i.b16 %v1602, %v1577
        %v1607 = vshrl.u32 %v1577, 16
        %v1608 = vshrl.u32 %v1602, 16
        %v1609 = vpack.i.b16 %v1608, %v1607
        %v1612 = vpack.i.b16 %v1603, %v1578
        %v1613 = vshrl.u32 %v1578, 16
        %v1614 = vshrl.u32 %v1603, 16
        %v1615 = vpack.i.b16 %v1614, %v1613
        %v1617 = vsel %vm723, %v1456, 0
        %1619 = vmatprep.subr.bf16.mxu0 0
        %1620 = vmatpush1.bf16.xpose.msra.mxu0 0
        %1621 = vmatprep.subr.bf16.mxu0 0
        %1622 = vmatpush1.bf16.xpose.msra.mxu0 0
        %1623 = vmatprep.subr.bf16.mxu0 0
        %1624 = vmatpush1.bf16.xpose.msra.mxu0 0
        %1625 = vmatprep.subr.bf16.mxu0 0
        %1626 = vmatpush1.bf16.xpose.msra.mxu0 0
        %1627 = vmatprep.subr.bf16.mxu0 0
        %1628 = vmatpush1.bf16.xpose.msra.mxu0 0
        %1629 = vmatprep.subr.bf16.mxu0 0
        %1630 = vmatpush1.bf16.xpose.msra.mxu0 0
        %1631 = vmatprep.subr.bf16.mxu0 0
        %1632 = vmatpush1.bf16.xpose.msra.mxu0 0
        %1633 = vmatprep.subr.bf16.mxu0 0
        %1634 = vmatpush1.bf16.xpose.msra.mxu0 %v1617
        %1635 = vmatprep.subr.bf16.mxu0 0
        %1636 = vmatpush2.bf16.xpose.msra.mxu0 0
        %1637 = vmatprep.subr.bf16.mxu0 0
        %1638 = vmatpush2.bf16.xpose.msra.mxu0 0
        %1639 = vmatprep.subr.bf16.mxu0 0
        %1640 = vmatpush2.bf16.xpose.msra.mxu0 0
        %1641 = vmatprep.subr.bf16.mxu0 0
        %1642 = vmatpush2.bf16.xpose.msra.mxu0 0
        %1643 = vmatprep.subr.bf16.mxu0 0
        %1644 = vmatpush2.bf16.xpose.msra.mxu0 0
        %1645 = vmatprep.subr.bf16.mxu0 0
        %1646 = vmatpush2.bf16.xpose.msra.mxu0 0
        %1647 = vmatprep.subr.bf16.mxu0 0
        %1648 = vmatpush2.bf16.xpose.msra.mxu0 0
        %1649 = vmatprep.subr.bf16.mxu0 0
        %1650 = vmatpush2.bf16.xpose.msra.mxu0 0
        %1651 = vmatprep.mubr.bf16.mxu0 0
        %1652 = vmatmul.mubr.bf16.gmra.mxu0 %v725
        %v1653 = vpop.f32.mrf.mxu0
        %v1654 = vadd.f32 0.0, %v1653
        %v1655 = vpop.f32.mrf.mxu0
        %v1656 = vpop.f32.mrf.mxu0
        %v1657 = vpop.f32.mrf.mxu0
        %1658 = vdwg.mxu0
        %v1660 = vsel %vm723, %v1459, 0
        %1662 = vmatprep.subr.bf16.mxu0 0
        %1663 = vmatpush1.bf16.xpose.msra.mxu0 0
        %1664 = vmatprep.subr.bf16.mxu0 0
        %1665 = vmatpush1.bf16.xpose.msra.mxu0 0
        %1666 = vmatprep.subr.bf16.mxu0 0
        %1667 = vmatpush1.bf16.xpose.msra.mxu0 0
        %1668 = vmatprep.subr.bf16.mxu0 0
        %1669 = vmatpush1.bf16.xpose.msra.mxu0 0
        %1670 = vmatprep.subr.bf16.mxu0 0
        %1671 = vmatpush1.bf16.xpose.msra.mxu0 0
        %1672 = vmatprep.subr.bf16.mxu0 0
        %1673 = vmatpush1.bf16.xpose.msra.mxu0 0
        %1674 = vmatprep.subr.bf16.mxu0 0
        %1675 = vmatpush1.bf16.xpose.msra.mxu0 0
        %1676 = vmatprep.subr.bf16.mxu0 0
        %1677 = vmatpush1.bf16.xpose.msra.mxu0 %v1660
        %1678 = vmatprep.subr.bf16.mxu0 0
        %1679 = vmatpush2.bf16.xpose.msra.mxu0 0
        %1680 = vmatprep.subr.bf16.mxu0 0
        %1681 = vmatpush2.bf16.xpose.msra.mxu0 0
        %1682 = vmatprep.subr.bf16.mxu0 0
        %1683 = vmatpush2.bf16.xpose.msra.mxu0 0
        %1684 = vmatprep.subr.bf16.mxu0 0
        %1685 = vmatpush2.bf16.xpose.msra.mxu0 0
        %1686 = vmatprep.subr.bf16.mxu0 0
        %1687 = vmatpush2.bf16.xpose.msra.mxu0 0
        %1688 = vmatprep.subr.bf16.mxu0 0
        %1689 = vmatpush2.bf16.xpose.msra.mxu0 0
        %1690 = vmatprep.subr.bf16.mxu0 0
        %1691 = vmatpush2.bf16.xpose.msra.mxu0 0
        %1692 = vmatprep.subr.bf16.mxu0 0
        %1693 = vmatpush2.bf16.xpose.msra.mxu0 0
        %1694 = vmatprep.mubr.bf16.mxu0 0
        %1695 = vmatmul.mubr.bf16.gmra.mxu0 %v771
        %v1696 = vpop.f32.mrf.mxu0
        %v1697 = vadd.f32 0.0, %v1696
        %v1698 = vpop.f32.mrf.mxu0
        %v1699 = vpop.f32.mrf.mxu0
        %v1700 = vpop.f32.mrf.mxu0
        %1701 = vdwg.mxu0
        %v1703 = vsel %vm723, %v1462, 0
        %1705 = vmatprep.subr.bf16.mxu0 0
        %1706 = vmatpush1.bf16.xpose.msra.mxu0 0
        %1707 = vmatprep.subr.bf16.mxu0 0
        %1708 = vmatpush1.bf16.xpose.msra.mxu0 0
        %1709 = vmatprep.subr.bf16.mxu0 0
        %1710 = vmatpush1.bf16.xpose.msra.mxu0 0
        %1711 = vmatprep.subr.bf16.mxu0 0
        %1712 = vmatpush1.bf16.xpose.msra.mxu0 0
        %1713 = vmatprep.subr.bf16.mxu0 0
        %1714 = vmatpush1.bf16.xpose.msra.mxu0 0
        %1715 = vmatprep.subr.bf16.mxu0 0
        %1716 = vmatpush1.bf16.xpose.msra.mxu0 0
        %1717 = vmatprep.subr.bf16.mxu0 0
        %1718 = vmatpush1.bf16.xpose.msra.mxu0 0
        %1719 = vmatprep.subr.bf16.mxu0 0
        %1720 = vmatpush1.bf16.xpose.msra.mxu0 %v1703
        %1721 = vmatprep.subr.bf16.mxu0 0
        %1722 = vmatpush2.bf16.xpose.msra.mxu0 0
        %1723 = vmatprep.subr.bf16.mxu0 0
        %1724 = vmatpush2.bf16.xpose.msra.mxu0 0
        %1725 = vmatprep.subr.bf16.mxu0 0
        %1726 = vmatpush2.bf16.xpose.msra.mxu0 0
        %1727 = vmatprep.subr.bf16.mxu0 0
        %1728 = vmatpush2.bf16.xpose.msra.mxu0 0
        %1729 = vmatprep.subr.bf16.mxu0 0
        %1730 = vmatpush2.bf16.xpose.msra.mxu0 0
        %1731 = vmatprep.subr.bf16.mxu0 0
        %1732 = vmatpush2.bf16.xpose.msra.mxu0 0
        %1733 = vmatprep.subr.bf16.mxu0 0
        %1734 = vmatpush2.bf16.xpose.msra.mxu0 0
        %1735 = vmatprep.subr.bf16.mxu0 0
        %1736 = vmatpush2.bf16.xpose.msra.mxu0 0
        %1737 = vmatprep.mubr.bf16.mxu0 0
        %1738 = vmatmul.mubr.bf16.gmra.mxu0 %v817
        %v1739 = vpop.f32.mrf.mxu0
        %v1740 = vadd.f32 0.0, %v1739
        %v1741 = vpop.f32.mrf.mxu0
        %v1742 = vpop.f32.mrf.mxu0
        %v1743 = vpop.f32.mrf.mxu0
        %1744 = vdwg.mxu0
        %v1746 = vsel %vm723, %v1465, 0
        %1748 = vmatprep.subr.bf16.mxu0 0
        %1749 = vmatpush1.bf16.xpose.msra.mxu0 0
        %1750 = vmatprep.subr.bf16.mxu0 0
        %1751 = vmatpush1.bf16.xpose.msra.mxu0 0
        %1752 = vmatprep.subr.bf16.mxu0 0
        %1753 = vmatpush1.bf16.xpose.msra.mxu0 0
        %1754 = vmatprep.subr.bf16.mxu0 0
        %1755 = vmatpush1.bf16.xpose.msra.mxu0 0
        %1756 = vmatprep.subr.bf16.mxu0 0
        %1757 = vmatpush1.bf16.xpose.msra.mxu0 0
        %1758 = vmatprep.subr.bf16.mxu0 0
        %1759 = vmatpush1.bf16.xpose.msra.mxu0 0
        %1760 = vmatprep.subr.bf16.mxu0 0
        %1761 = vmatpush1.bf16.xpose.msra.mxu0 0
        %1762 = vmatprep.subr.bf16.mxu0 0
        %1763 = vmatpush1.bf16.xpose.msra.mxu0 %v1746
        %1764 = vmatprep.subr.bf16.mxu0 0
        %1765 = vmatpush2.bf16.xpose.msra.mxu0 0
        %1766 = vmatprep.subr.bf16.mxu0 0
        %1767 = vmatpush2.bf16.xpose.msra.mxu0 0
        %1768 = vmatprep.subr.bf16.mxu0 0
        %1769 = vmatpush2.bf16.xpose.msra.mxu0 0
        %1770 = vmatprep.subr.bf16.mxu0 0
        %1771 = vmatpush2.bf16.xpose.msra.mxu0 0
        %1772 = vmatprep.subr.bf16.mxu0 0
        %1773 = vmatpush2.bf16.xpose.msra.mxu0 0
        %1774 = vmatprep.subr.bf16.mxu0 0
        %1775 = vmatpush2.bf16.xpose.msra.mxu0 0
        %1776 = vmatprep.subr.bf16.mxu0 0
        %1777 = vmatpush2.bf16.xpose.msra.mxu0 0
        %1778 = vmatprep.subr.bf16.mxu0 0
        %1779 = vmatpush2.bf16.xpose.msra.mxu0 0
        %1780 = vmatprep.mubr.bf16.mxu0 0
        %1781 = vmatmul.mubr.bf16.gmra.mxu0 %v863
        %v1782 = vpop.f32.mrf.mxu0
        %v1783 = vadd.f32 0.0, %v1782
        %v1784 = vpop.f32.mrf.mxu0
        %v1785 = vpop.f32.mrf.mxu0
        %v1786 = vpop.f32.mrf.mxu0
        %1787 = vdwg.mxu0
        %v1788 = vsel %vm723, %v1654, -inf
        %1789 = vmax.xlane.f32.xlu0 %v1788
        %v1790 = vpop.xlane.xlu0 %1789
        %v1791 = vsel %vm723, %v1697, -inf
        %1792 = vmax.xlane.f32.xlu0 %v1791
        %v1793 = vpop.xlane.xlu0 %1792
        %v1794 = vsel %vm723, %v1740, -inf
        %1795 = vmax.xlane.f32.xlu0 %v1794
        %v1796 = vpop.xlane.xlu0 %1795
        %v1797 = vsel %vm723, %v1783, -inf
        %1798 = vmax.xlane.f32.xlu0 %v1797
        %v1799 = vpop.xlane.xlu0 %1798
        %v1800 = vsub.f32 %v1654, %v1790
        %v1801 = vsub.f32 %v1697, %v1793
        %v1802 = vsub.f32 %v1740, %v1796
        %v1803 = vsub.f32 %v1783, %v1799
        %v1804 = vmul.f32 %v1800, 1.442695
        %v1805 = vpow.pop %v1804
        %v1806 = vmul.f32 %v1801, 1.442695
        %v1807 = vpow.pop %v1806
        %v1808 = vmul.f32 %v1802, 1.442695
        %v1809 = vpow.pop %v1808
        %v1810 = vmul.f32 %v1803, 1.442695
        %v1811 = vpow.pop %v1810
        %v1812 = vsel %vm723, %v1805, 0.0
        %1813 = vadd.xlane.f32.xlu0 %v1812
        %v1814 = vpop.xlane.xlu0 %1813
        %v1815 = vsel %vm723, %v1807, 0.0
        %1816 = vadd.xlane.f32.xlu0 %v1815
        %v1817 = vpop.xlane.xlu0 %1816
        %v1818 = vsel %vm723, %v1809, 0.0
        %1819 = vadd.xlane.f32.xlu0 %v1818
        %v1820 = vpop.xlane.xlu0 %1819
        %v1821 = vsel %vm723, %v1811, 0.0
        %1822 = vadd.xlane.f32.xlu0 %v1821
        %v1823 = vpop.xlane.xlu0 %1822
        %v1824 = vrcp.pop %v1814
        %v1825 = vrcp.pop %v1817
        %v1826 = vrcp.pop %v1820
        %v1827 = vrcp.pop %v1823
        %v1828 = vmul.f32 %v1805, %v1824
        %v1829 = vmul.f32 %v1807, %v1825
        %v1830 = vmul.f32 %v1809, %v1826
        %v1831 = vmul.f32 %v1811, %v1827
        %v1832 = vpack.c.bf16 %v1828, %v1828
        %v1833 = vpack.c.bf16 %v1829, %v1829
        %v1834 = vpack.c.bf16 %v1830, %v1830
        %v1835 = vpack.c.bf16 %v1831, %v1831
        %v1837 = vsel %vm723, %v1832, 0
        %v1840 = vsel %vm959, %v1606, 0
        %1842 = vmatprep.subr.bf16.mxu0 0
        %1843 = vmatpush1.bf16.msra.mxu0 0
        %1844 = vmatprep.subr.bf16.mxu0 0
        %1845 = vmatpush1.bf16.msra.mxu0 0
        %1846 = vmatprep.subr.bf16.mxu0 0
        %1847 = vmatpush1.bf16.msra.mxu0 0
        %1848 = vmatprep.subr.bf16.mxu0 0
        %1849 = vmatpush1.bf16.msra.mxu0 0
        %1850 = vmatprep.subr.bf16.mxu0 0
        %1851 = vmatpush1.bf16.msra.mxu0 0
        %1852 = vmatprep.subr.bf16.mxu0 0
        %1853 = vmatpush1.bf16.msra.mxu0 0
        %1854 = vmatprep.subr.bf16.mxu0 0
        %1855 = vmatpush1.bf16.msra.mxu0 0
        %1856 = vmatprep.subr.bf16.mxu0 0
        %1857 = vmatpush1.bf16.msra.mxu0 %v1840
        %1858 = vmatprep.subr.bf16.mxu0 0
        %1859 = vmatpush2.bf16.msra.mxu0 0
        %1860 = vmatprep.subr.bf16.mxu0 0
        %1861 = vmatpush2.bf16.msra.mxu0 0
        %1862 = vmatprep.subr.bf16.mxu0 0
        %1863 = vmatpush2.bf16.msra.mxu0 0
        %1864 = vmatprep.subr.bf16.mxu0 0
        %1865 = vmatpush2.bf16.msra.mxu0 0
        %1866 = vmatprep.subr.bf16.mxu0 0
        %1867 = vmatpush2.bf16.msra.mxu0 0
        %1868 = vmatprep.subr.bf16.mxu0 0
        %1869 = vmatpush2.bf16.msra.mxu0 0
        %1870 = vmatprep.subr.bf16.mxu0 0
        %1871 = vmatpush2.bf16.msra.mxu0 0
        %1872 = vmatprep.subr.bf16.mxu0 0
        %1873 = vmatpush2.bf16.msra.mxu0 0
        %1874 = vmatprep.mubr.bf16.mxu0 0
        %1875 = vmatmul.mubr.bf16.gmra.mxu0 %v1837
        %v1876 = vpop.f32.mrf.mxu0
        %v1877 = vadd.f32 0.0, %v1876
        %v1878 = vpop.f32.mrf.mxu0
        %v1879 = vpop.f32.mrf.mxu0
        %v1880 = vpop.f32.mrf.mxu0
        %1881 = vdwg.mxu0
        %v1883 = vsel %vm723, %v1833, 0
        %v1886 = vsel %vm959, %v1609, 0
        %1888 = vmatprep.subr.bf16.mxu0 0
        %1889 = vmatpush1.bf16.msra.mxu0 0
        %1890 = vmatprep.subr.bf16.mxu0 0
        %1891 = vmatpush1.bf16.msra.mxu0 0
        %1892 = vmatprep.subr.bf16.mxu0 0
        %1893 = vmatpush1.bf16.msra.mxu0 0
        %1894 = vmatprep.subr.bf16.mxu0 0
        %1895 = vmatpush1.bf16.msra.mxu0 0
        %1896 = vmatprep.subr.bf16.mxu0 0
        %1897 = vmatpush1.bf16.msra.mxu0 0
        %1898 = vmatprep.subr.bf16.mxu0 0
        %1899 = vmatpush1.bf16.msra.mxu0 0
        %1900 = vmatprep.subr.bf16.mxu0 0
        %1901 = vmatpush1.bf16.msra.mxu0 0
        %1902 = vmatprep.subr.bf16.mxu0 0
        %1903 = vmatpush1.bf16.msra.mxu0 %v1886
        %1904 = vmatprep.subr.bf16.mxu0 0
        %1905 = vmatpush2.bf16.msra.mxu0 0
        %1906 = vmatprep.subr.bf16.mxu0 0
        %1907 = vmatpush2.bf16.msra.mxu0 0
        %1908 = vmatprep.subr.bf16.mxu0 0
        %1909 = vmatpush2.bf16.msra.mxu0 0
        %1910 = vmatprep.subr.bf16.mxu0 0
        %1911 = vmatpush2.bf16.msra.mxu0 0
        %1912 = vmatprep.subr.bf16.mxu0 0
        %1913 = vmatpush2.bf16.msra.mxu0 0
        %1914 = vmatprep.subr.bf16.mxu0 0
        %1915 = vmatpush2.bf16.msra.mxu0 0
        %1916 = vmatprep.subr.bf16.mxu0 0
        %1917 = vmatpush2.bf16.msra.mxu0 0
        %1918 = vmatprep.subr.bf16.mxu0 0
        %1919 = vmatpush2.bf16.msra.mxu0 0
        %1920 = vmatprep.mubr.bf16.mxu0 0
        %1921 = vmatmul.mubr.bf16.gmra.mxu0 %v1883
        %v1922 = vpop.f32.mrf.mxu0
        %v1923 = vadd.f32 0.0, %v1922
        %v1924 = vpop.f32.mrf.mxu0
        %v1925 = vpop.f32.mrf.mxu0
        %v1926 = vpop.f32.mrf.mxu0
        %1927 = vdwg.mxu0
        %v1929 = vsel %vm723, %v1834, 0
        %v1932 = vsel %vm959, %v1612, 0
        %1934 = vmatprep.subr.bf16.mxu0 0
        %1935 = vmatpush1.bf16.msra.mxu0 0
        %1936 = vmatprep.subr.bf16.mxu0 0
        %1937 = vmatpush1.bf16.msra.mxu0 0
        %1938 = vmatprep.subr.bf16.mxu0 0
        %1939 = vmatpush1.bf16.msra.mxu0 0
        %1940 = vmatprep.subr.bf16.mxu0 0
        %1941 = vmatpush1.bf16.msra.mxu0 0
        %1942 = vmatprep.subr.bf16.mxu0 0
        %1943 = vmatpush1.bf16.msra.mxu0 0
        %1944 = vmatprep.subr.bf16.mxu0 0
        %1945 = vmatpush1.bf16.msra.mxu0 0
        %1946 = vmatprep.subr.bf16.mxu0 0
        %1947 = vmatpush1.bf16.msra.mxu0 0
        %1948 = vmatprep.subr.bf16.mxu0 0
        %1949 = vmatpush1.bf16.msra.mxu0 %v1932
        %1950 = vmatprep.subr.bf16.mxu0 0
        %1951 = vmatpush2.bf16.msra.mxu0 0
        %1952 = vmatprep.subr.bf16.mxu0 0
        %1953 = vmatpush2.bf16.msra.mxu0 0
        %1954 = vmatprep.subr.bf16.mxu0 0
        %1955 = vmatpush2.bf16.msra.mxu0 0
        %1956 = vmatprep.subr.bf16.mxu0 0
        %1957 = vmatpush2.bf16.msra.mxu0 0
        %1958 = vmatprep.subr.bf16.mxu0 0
        %1959 = vmatpush2.bf16.msra.mxu0 0
        %1960 = vmatprep.subr.bf16.mxu0 0
        %1961 = vmatpush2.bf16.msra.mxu0 0
        %1962 = vmatprep.subr.bf16.mxu0 0
        %1963 = vmatpush2.bf16.msra.mxu0 0
        %1964 = vmatprep.subr.bf16.mxu0 0
        %1965 = vmatpush2.bf16.msra.mxu0 0
        %1966 = vmatprep.mubr.bf16.mxu0 0
        %1967 = vmatmul.mubr.bf16.gmra.mxu0 %v1929
        %v1968 = vpop.f32.mrf.mxu0
        %v1969 = vadd.f32 0.0, %v1968
        %v1970 = vpop.f32.mrf.mxu0
        %v1971 = vpop.f32.mrf.mxu0
        %v1972 = vpop.f32.mrf.mxu0
        %1973 = vdwg.mxu0
        %v1975 = vsel %vm723, %v1835, 0
        %v1978 = vsel %vm959, %v1615, 0
        %1980 = vmatprep.subr.bf16.mxu0 0
        %1981 = vmatpush1.bf16.msra.mxu0 0
        %1982 = vmatprep.subr.bf16.mxu0 0
        %1983 = vmatpush1.bf16.msra.mxu0 0
        %1984 = vmatprep.subr.bf16.mxu0 0
        %1985 = vmatpush1.bf16.msra.mxu0 0
        %1986 = vmatprep.subr.bf16.mxu0 0
        %1987 = vmatpush1.bf16.msra.mxu0 0
        %1988 = vmatprep.subr.bf16.mxu0 0
        %1989 = vmatpush1.bf16.msra.mxu0 0
        %1990 = vmatprep.subr.bf16.mxu0 0
        %1991 = vmatpush1.bf16.msra.mxu0 0
        %1992 = vmatprep.subr.bf16.mxu0 0
        %1993 = vmatpush1.bf16.msra.mxu0 0
        %1994 = vmatprep.subr.bf16.mxu0 0
        %1995 = vmatpush1.bf16.msra.mxu0 %v1978
        %1996 = vmatprep.subr.bf16.mxu0 0
        %1997 = vmatpush2.bf16.msra.mxu0 0
        %1998 = vmatprep.subr.bf16.mxu0 0
        %1999 = vmatpush2.bf16.msra.mxu0 0
        %2000 = vmatprep.subr.bf16.mxu0 0
        %2001 = vmatpush2.bf16.msra.mxu0 0
        %2002 = vmatprep.subr.bf16.mxu0 0
        %2003 = vmatpush2.bf16.msra.mxu0 0
        %2004 = vmatprep.subr.bf16.mxu0 0
        %2005 = vmatpush2.bf16.msra.mxu0 0
        %2006 = vmatprep.subr.bf16.mxu0 0
        %2007 = vmatpush2.bf16.msra.mxu0 0
        %2008 = vmatprep.subr.bf16.mxu0 0
        %2009 = vmatpush2.bf16.msra.mxu0 0
        %2010 = vmatprep.subr.bf16.mxu0 0
        %2011 = vmatpush2.bf16.msra.mxu0 0
        %2012 = vmatprep.mubr.bf16.mxu0 0
        %2013 = vmatmul.mubr.bf16.gmra.mxu0 %v1975
        %v2014 = vpop.f32.mrf.mxu0
        %v2015 = vadd.f32 0.0, %v2014
        %v2016 = vpop.f32.mrf.mxu0
        %v2017 = vpop.f32.mrf.mxu0
        %v2018 = vpop.f32.mrf.mxu0
        %2019 = vdwg.mxu0
        %v2020 = vpack.c.bf16 %v1877, %v1877
        %v2022 = vunpack.c.l.s4 1983009808
        %v2023 = vunpack.c.0.s8 %v2022
        %v2024 = vlaneseq
        %v2025 = vshrl.u32 %v2024, 7
        %v2026 = vsub.s32 %v2023, %v2025
        %v2027 = vrot.slane %v2020, %v2026
        %v2028 = vpack.c.bf16 %v1969, %v1969
        %v2030 = vunpack.c.l.s4 1983009808
        %v2031 = vunpack.c.0.s8 %v2030
        %v2032 = vlaneseq
        %v2033 = vshrl.u32 %v2032, 7
        %v2034 = vsub.s32 %v2031, %v2033
        %v2035 = vrot.slane %v2028, %v2034
        %v2036 = vcombine.low %v2027, %v2035
        %v2037 = vcombine.high %v2027, %v2035
        %v2039 = vunpack.c.l.s4 1934713408
        %v2040 = vunpack.c.0.s8 %v2039
        %v2041 = vlaneseq
        %v2042 = vshrl.u32 %v2041, 7
        %v2043 = vsub.s32 %v2040, %v2042
        %v2044 = vrot.slane %v2036, %v2043
        %v2046 = vunpack.c.l.s4 1934713408
        %v2047 = vunpack.c.0.s8 %v2046
        %v2048 = vlaneseq
        %v2049 = vshrl.u32 %v2048, 7
        %v2050 = vsub.s32 %v2047, %v2049
        %v2051 = vrot.slane %v2037, %v2050
        %v2052 = vcombine.high %v2044, 0
        %v2053 = vcombine.high %v2051, 0
        %v2054 = vpack.c.bf16 %v1923, %v1923
        %v2056 = vunpack.c.l.s4 1983009808
        %v2057 = vunpack.c.0.s8 %v2056
        %v2058 = vlaneseq
        %v2059 = vshrl.u32 %v2058, 7
        %v2060 = vsub.s32 %v2057, %v2059
        %v2061 = vrot.slane %v2054, %v2060
        %v2062 = vpack.c.bf16 %v2015, %v2015
        %v2064 = vunpack.c.l.s4 1983009808
        %v2065 = vunpack.c.0.s8 %v2064
        %v2066 = vlaneseq
        %v2067 = vshrl.u32 %v2066, 7
        %v2068 = vsub.s32 %v2065, %v2067
        %v2069 = vrot.slane %v2062, %v2068
        %v2070 = vcombine.low %v2061, %v2069
        %v2071 = vcombine.high %v2061, %v2069
        %v2073 = vunpack.c.l.s4 1934713408
        %v2074 = vunpack.c.0.s8 %v2073
        %v2075 = vlaneseq
        %v2076 = vshrl.u32 %v2075, 7
        %v2077 = vsub.s32 %v2074, %v2076
        %v2078 = vrot.slane %v2070, %v2077
        %v2080 = vunpack.c.l.s4 1934713408
        %v2081 = vunpack.c.0.s8 %v2080
        %v2082 = vlaneseq
        %v2083 = vshrl.u32 %v2082, 7
        %v2084 = vsub.s32 %v2081, %v2083
        %v2085 = vrot.slane %v2071, %v2084
        %v2086 = vcombine.high %v2078, 0
        %v2087 = vcombine.high %v2085, 0
        %v2090 = vpack.i.b16 %v2078, %v2044
        %v2092 = vshrl.u32 %v2044, 16
        %v2093 = vshrl.u32 %v2078, 16
        %v2094 = vpack.i.b16 %v2093, %v2092
        %v2098 = vpack.i.b16 %v2086, %v2052
        %v2100 = vshrl.u32 %v2052, 16
        %v2101 = vshrl.u32 %v2086, 16
        %v2102 = vpack.i.b16 %v2101, %v2100
        %v2106 = vpack.i.b16 %v2085, %v2051
        %v2108 = vshrl.u32 %v2051, 16
        %v2109 = vshrl.u32 %v2085, 16
        %v2110 = vpack.i.b16 %v2109, %v2108
        %v2114 = vpack.i.b16 %v2087, %v2053
        %v2116 = vshrl.u32 %v2053, 16
        %v2117 = vshrl.u32 %v2087, 16
        %v2118 = vpack.i.b16 %v2117, %v2116
        %v2120 = vcombine.low %v2090, %v2106
        %v2122 = vunpack.c.l.s4 1983009808
        %v2123 = vunpack.c.0.s8 %v2122
        %v2124 = vlaneseq
        %v2125 = vshrl.u32 %v2124, 7
        %v2126 = vsub.s32 %v2123, %v2125
        %v2127 = vrot.slane %v2120, %v2126
        %v2128 = vcombine.low %v2098, %v2114
        %v2130 = vunpack.c.l.s4 1983009808
        %v2131 = vunpack.c.0.s8 %v2130
        %v2132 = vlaneseq
        %v2133 = vshrl.u32 %v2132, 7
        %v2134 = vsub.s32 %v2131, %v2133
        %v2135 = vrot.slane %v2128, %v2134
        %v2136 = vcombine.low %v2127, %v2135
        %v2138 = vunpack.c.l.s4 1934713408
        %v2139 = vunpack.c.0.s8 %v2138
        %v2140 = vlaneseq
        %v2141 = vshrl.u32 %v2140, 7
        %v2142 = vsub.s32 %v2139, %v2141
        %v2143 = vrot.slane %v2136, %v2142
        %v2144 = vcombine.high %v2143, 0
        %v2145 = vcombine.low %v2094, %v2110
        %v2147 = vunpack.c.l.s4 1983009808
        %v2148 = vunpack.c.0.s8 %v2147
        %v2149 = vlaneseq
        %v2150 = vshrl.u32 %v2149, 7
        %v2151 = vsub.s32 %v2148, %v2150
        %v2152 = vrot.slane %v2145, %v2151
        %v2153 = vcombine.low %v2102, %v2118
        %v2155 = vunpack.c.l.s4 1983009808
        %v2156 = vunpack.c.0.s8 %v2155
        %v2157 = vlaneseq
        %v2158 = vshrl.u32 %v2157, 7
        %v2159 = vsub.s32 %v2156, %v2158
        %v2160 = vrot.slane %v2153, %v2159
        %v2161 = vcombine.low %v2152, %v2160
        %v2163 = vunpack.c.l.s4 1934713408
        %v2164 = vunpack.c.0.s8 %v2163
        %v2165 = vlaneseq
        %v2166 = vshrl.u32 %v2165, 7
        %v2167 = vsub.s32 %v2164, %v2166
        %v2168 = vrot.slane %v2161, %v2167
        %v2169 = vcombine.high %v2168, 0
        %v2172 = vpack.i.b16 %v2168, %v2143
        %v2173 = vshrl.u32 %v2143, 16
        %v2174 = vshrl.u32 %v2168, 16
        %v2175 = vpack.i.b16 %v2174, %v2173
        %v2178 = vpack.i.b16 %v2169, %v2144
        %v2179 = vshrl.u32 %v2144, 16
        %v2180 = vshrl.u32 %v2169, 16
        %v2181 = vpack.i.b16 %v2180, %v2179
        %2182 = vrot.lane.b32.xlu0 %v2175, 8
        %v2183 = vpop.permute.xlu0 %2182
        %2184 = vrot.lane.b32.xlu0 %v2178, 16
        %v2185 = vpop.permute.xlu0 %2184
        %2186 = vrot.lane.b32.xlu0 %v2181, 24
        %v2187 = vpop.permute.xlu0 %2186
        %v2190 = vsel %vm723, %v2172, %v2183
        %v2192 = vsel %vm1312, %v2190, %v2185
        %v2194 = vsel %vm1315, %v2192, %v2187
        %v2196 = vrot.slane %v2194, 4
        %v2198 = vsel %vm959, %v1317, %v2196
        %v2199 = vld [vmem:[#allocation8] sm:$0xf]
        %v2200 = vld [vmem:[#allocation8 + $0x4] sm:$0xf]
        %v2201 = vld [vmem:[#allocation8 + $0x8] sm:$0xf]
        %v2202 = vld [vmem:[#allocation8 + $0xc] sm:$0xf]
        %v2203 = vld [vmem:[%s5] sm:$0x1]
        %v2205 = vlaneseq
        %v2206 = vshrl.u32 %v2205, 7
        %v2207 = vsub.s32 0, %v2206
        %v2208 = vrot.slane %v2203, %v2207
        %v2214 = vunpack.c.l.b16 %v2199
        %v2215 = vunpack.c.l.b16 %v2200
        %v2216 = vunpack.c.l.b16 %v2201
        %v2217 = vunpack.c.l.b16 %v2202
        %v2218 = vpack.c.b16 %v2215, %v2214
        %v2219 = vpack.c.b16 %v2217, %v2216
        %v2222 = vsel %vm319, %v2198, 0
        %2224 = vmatprep.subr.bf16.mxu0 0
        %2225 = vmatpush1.bf16.msra.mxu0 0
        %2226 = vmatprep.subr.bf16.mxu0 0
        %2227 = vmatpush1.bf16.msra.mxu0 0
        %2228 = vmatprep.subr.bf16.mxu0 0
        %2229 = vmatpush1.bf16.msra.mxu0 0
        %2230 = vmatprep.subr.bf16.mxu0 0
        %2231 = vmatpush1.bf16.msra.mxu0 0
        %2232 = vmatprep.subr.bf16.mxu0 0
        %2233 = vmatpush1.bf16.msra.mxu0 0
        %2234 = vmatprep.subr.bf16.mxu0 0
        %2235 = vmatpush1.bf16.msra.mxu0 0
        %2236 = vmatprep.subr.bf16.mxu0 0
        %2237 = vmatpush1.bf16.msra.mxu0 %v2219
        %2238 = vmatprep.subr.bf16.mxu0 0
        %2239 = vmatpush1.bf16.msra.mxu0 %v2218
        %2240 = vmatprep.subr.bf16.mxu0 0
        %2241 = vmatpush2.bf16.msra.mxu0 0
        %2242 = vmatprep.subr.bf16.mxu0 0
        %2243 = vmatpush2.bf16.msra.mxu0 0
        %2244 = vmatprep.subr.bf16.mxu0 0
        %2245 = vmatpush2.bf16.msra.mxu0 0
        %2246 = vmatprep.subr.bf16.mxu0 0
        %2247 = vmatpush2.bf16.msra.mxu0 0
        %2248 = vmatprep.subr.bf16.mxu0 0
        %2249 = vmatpush2.bf16.msra.mxu0 0
        %2250 = vmatprep.subr.bf16.mxu0 0
        %2251 = vmatpush2.bf16.msra.mxu0 0
        %2252 = vmatprep.subr.bf16.mxu0 0
        %2253 = vmatpush2.bf16.msra.mxu0 0
        %2254 = vmatprep.subr.bf16.mxu0 0
        %2255 = vmatpush2.bf16.msra.mxu0 0
        %2256 = vmatprep.mubr.bf16.mxu0 0
        %2257 = vmatmul.mubr.bf16.gmra.mxu0 %v2222
        %v2258 = vpop.f32.mrf.mxu0
        %v2259 = vadd.f32 %v2208, %v2258
        %v2260 = vpop.f32.mrf.mxu0
        %v2261 = vpop.f32.mrf.mxu0
        %v2262 = vadd.f32 %v2208, %v2261
        %v2263 = vpop.f32.mrf.mxu0
        %2264 = vdwg.mxu0
        %2265 = vst [vmem:[%s313] sm:$0xff] %v2259
        %2266 = vst [vmem:[%s313 + $0x8] sm:$0xff] %v2262
        %s2267 = sand.u32 %s164, 1
        %s2268 = scalar_lea.sflag [#allocation4], %s2267
        %s2269 = sand.u32 %s164, 1
        %s2270 = smul.addr %s2269, 16
        %s2271 = scalar_lea.vmem [#allocation10], %s2270
        // Predicated region
        $region61: #{tpu_custom_call.1} parent=43 // pred_check
          %p2272 = pneg %p174
        $region62: #{tpu_custom_call.1} parent=43 // pred_check_branch
          %2274 = sbr.rel (%p2272) target = $region64
        $region63: #{tpu_custom_call.1} parent=43 // pred_region
          %s2275 = smul.u32 2, %s25
          %s2277 = ssub.s32 256, 256
          %2278 = vsyncadd %s2268, %s2277
          %s2279 = smul.addr %s2275, 128
          %s2280 = scalar_lea.hbm %s6, %s2279
          %s2281 = sshll.u32 %s2271, 4
          %s2282 = int_to_ptr.vmem [resolvable:$true] %s2281
          %2287 = dma.vmem_to_hbm [thread:$0]  %s2282, 256, %s2280, %s2268, 128, 128, 8
        $region64: #{tpu_custom_call.1} parent=43 // pred_fallthru
          _
      $region44: #{tpu_custom_call.1} parent=5 // pred_fallthru
        _
      %p2288 = scmp.le.s32.totalorder 2, %s20
      // Predicated region
      $region65: #{tpu_custom_call.1} parent=5 // pred_check
        %p2289 = pneg %p2288
      $region66: #{tpu_custom_call.1} parent=5 // pred_check_branch
        %2291 = sbr.rel (%p2289) target = $region68
      $region67: #{tpu_custom_call.1} parent=5 // pred_region
        %s2292 = ssub.s32 %s20, 2
        // Predicated region
        $region69: #{tpu_custom_call.1} parent=67 // pred_check
          %p2293 = pneg %p180
        $region70: #{tpu_custom_call.1} parent=67 // pred_check_branch
          %2295 = sbr.rel (%p2293) target = $region72
        $region71: #{tpu_custom_call.1} parent=67 // pred_region
          %s2296 = sand.u32 %s165, 1
          %s2297 = scalar_lea.sflag [#allocation4], %s2296
          %s2298 = sand.u32 %s165, 1
          %s2299 = smul.addr %s2298, 16
          %s2300 = scalar_lea.vmem [#allocation10], %s2299
          %2301 = dma.done %s2297, 256
        $region72: #{tpu_custom_call.1} parent=67 // pred_fallthru
          _
      $region68: #{tpu_custom_call.1} parent=5 // pred_fallthru
        _
    $region6: #{tpu_custom_call.1} parent=1 // loop_footer
      %s24 = sadd.s32 1, %s20
    $region7: #{tpu_custom_call.1} parent=1 // loop_footer_branch
      %19 = sbr.rel target = $region3
    $region8: #{tpu_custom_call.1} parent=1 // loop_exit
      _
    %2302 = vsyncpa [#allocation3], 1
    %s2303 = scalar_lea.sflag [#allocation3], 1
    %2304 = vsyncpa %s2303, 1
    %2305 = vsyncpa [#allocation6], 1
    %2306 = vsyncpa [#allocation9], 1
    %2307 = vsyncpa [#allocation4], 1
    %s2308 = scalar_lea.sflag [#allocation4], 1
    %2309 = vsyncpa %s2308, 1

</llo_original>
